<compile_context>
chip_gen: v7x
topology: tpu7x:2x2x1
jax: 0.10.0
libtpu: 0.0.40
codegen_flags: <defaults>
</compile_context>

<pallas_src>
import functools
import math

import jax
import jax.numpy as jnp
from jax.experimental import pallas as pl
from jax.experimental.pallas import tpu as pltpu

# ------------------------- model config (small) -------------------------
B = 2            # batch
S = 8            # sequence length
H = 32           # hidden size
NHEADS = 2
HEAD_DIM = H // NHEADS
INTER = 64       # FFN intermediate size
NLAYERS = 2
VOCAB = 50
MAX_POS = 16
TYPE_VOCAB = 2
NLABELS = 2      # classifier labels (FineTunedBERT pipeline)


# ------------------------- fused Pallas kernel ---------------------------
def _bert_fused_kernel(
    x_ref, mask_ref, emb_ln_g_ref, emb_ln_b_ref,
    wqkv_ref, bqkv_ref, wo_ref, bo_ref, ln1_g_ref, ln1_b_ref,
    w1_ref, b1_ref, w2_ref, b2_ref, ln2_g_ref, ln2_b_ref,
    pooler_w_ref, pooler_b_ref, cls_w_ref, cls_b_ref,
    hidden_ref, emb_ref, logits_ref,
    *, n_heads, pool,
):
    """Whole BERT encoder + pooling + classifier on VMEM-resident tiles.

    x_ref     : [B*S, H]   summed (word+pos+type) embeddings, pre-LayerNorm
    mask_ref  : [B, S]     attention mask (float)
    weights   : stacked over the layer axis where applicable
    outputs   : hidden [B, S, H], embeddings [B, H], logits [B, NLABELS]
    """
    Bm, Sm = mask_ref.shape
    Hm = x_ref.shape[-1]
    Dh = Hm // n_heads
    n_layers = wqkv_ref.shape[0]
    scale = 1.0 / math.sqrt(Dh)

    mask = mask_ref[...]                               # [B, S]
    neg_bias = ((1.0 - mask) * (-1e9))[:, None, :]     # [B, 1, S] additive mask

    def layer_norm(v, g, b):
        mu = jnp.mean(v, axis=-1, keepdims=True)
        var = jnp.mean((v - mu) ** 2, axis=-1, keepdims=True)
        return (v - mu) * jax.lax.rsqrt(var + 1e-12) * g + b

    # Embedding LayerNorm.
    x = layer_norm(x_ref[...], emb_ln_g_ref[...], emb_ln_b_ref[...])   # [B*S, H]

    for l in range(n_layers):                          # static unroll (NLAYERS=2)
        # ---- fused QKV projection: one [B*S, H] @ [H, 3H] matmul ----
        qkv = jnp.dot(x, wqkv_ref[l],
                      preferred_element_type=jnp.float32) + bqkv_ref[l]   # [B*S, 3H]

        # ---- per-head masked softmax attention (heads via lane slices) ----
        ctx_heads = []
        for h in range(n_heads):                       # static unroll (NHEADS=2)
            q = qkv[:, h * Dh:(h + 1) * Dh].reshape(Bm, Sm, Dh)
            k = qkv[:, Hm + h * Dh:Hm + (h + 1) * Dh].reshape(Bm, Sm, Dh)
            v = qkv[:, 2 * Hm + h * Dh:2 * Hm + (h + 1) * Dh].reshape(Bm, Sm, Dh)

            s = jnp.einsum("bqd,bkd->bqk", q, k,
                           preferred_element_type=jnp.float32) * scale   # [B, S, S]
            s = s + neg_bias
            s = s - jnp.max(s, axis=-1, keepdims=True)
            p = jnp.exp(s)
            p = p * pl.reciprocal(jnp.sum(p, axis=-1, keepdims=True), approx=True)
            ctx = jnp.einsum("bqk,bkd->bqd", p, v,
                             preferred_element_type=jnp.float32)         # [B, S, D]
            ctx_heads.append(ctx.reshape(Bm * Sm, Dh))
        ctx = jnp.concatenate(ctx_heads, axis=-1)                        # [B*S, H]

        # ---- attention output projection + residual + LayerNorm ----
        attn_out = jnp.dot(ctx, wo_ref[l],
                           preferred_element_type=jnp.float32) + bo_ref[l]
        x = layer_norm(x + attn_out, ln1_g_ref[l], ln1_b_ref[l])

        # ---- FFN (GELU) + residual + LayerNorm ----
        inter = jnp.dot(x, w1_ref[l],
                        preferred_element_type=jnp.float32) + b1_ref[l]
        # TODO(synk): tanh-approximate GELU; swap for exact erf-GELU if strict HF parity is needed.
        c = math.sqrt(2.0 / math.pi)
        inter = 0.5 * inter * (1.0 + jnp.tanh(c * (inter + 0.044715 * inter * inter * inter)))
        ffn = jnp.dot(inter, w2_ref[l],
                      preferred_element_type=jnp.float32) + b2_ref[l]
        x = layer_norm(x + ffn, ln2_g_ref[l], ln2_b_ref[l])

    hidden3 = x.reshape(Bm, Sm, Hm)
    hidden_ref[...] = hidden3

    # ---- pooling (static choice; pooler dense only traced for 'cls') ----
    if pool == "mean":
        # Masked mean over the sequence axis (multiply + sum: no batched dot).
        summed = jnp.sum(hidden3 * mask[:, :, None], axis=1)             # [B, H]
        denom = jnp.maximum(jnp.sum(mask, axis=-1, keepdims=True), 1e-9)
        emb = summed / denom
    elif pool == "cls":
        cls_tok = hidden3[:, 0, :]                                       # [B, H]
        emb = jnp.tanh(jnp.dot(cls_tok, pooler_w_ref[...],
                               preferred_element_type=jnp.float32) + pooler_b_ref[...])
    else:  # trace-time error only
        raise ValueError("Pooling value error.")

    emb_ref[...] = emb
    logits_ref[...] = jnp.dot(emb, cls_w_ref[...],
                              preferred_element_type=jnp.float32) + cls_b_ref[...]


def _bert_fused_call(x_flat, mask_f32, p, pool):
    Bi, Si = mask_f32.shape
    Hh = x_flat.shape[-1]
    L = p["cls_w"].shape[-1]

    inputs = (
        x_flat, mask_f32, p["emb_ln_g"], p["emb_ln_b"],
        p["wqkv"], p["bqkv"], p["wo"], p["bo"], p["ln1_g"], p["ln1_b"],
        p["w1"], p["b1"], p["w2"], p["b2"], p["ln2_g"], p["ln2_b"],
        p["pooler_w"], p["pooler_b"], p["cls_w"], p["cls_b"],
    )
    vmem_spec = pl.BlockSpec(memory_space=pltpu.MemorySpace.VMEM)
    kernel = functools.partial(_bert_fused_kernel, n_heads=NHEADS, pool=pool)

    hidden, emb, logits = pl.pallas_call(
        kernel,
        out_shape=(
            jax.ShapeDtypeStruct((Bi, Si, Hh), jnp.float32),   # last hidden state
            jax.ShapeDtypeStruct((Bi, Hh), jnp.float32),       # pooled embeddings
            jax.ShapeDtypeStruct((Bi, L), jnp.float32),        # logits
        ),
        in_specs=[vmem_spec] * len(inputs),
        out_specs=(vmem_spec, vmem_spec, vmem_spec),
        compiler_params=pltpu.CompilerParams(vmem_limit_bytes=32 * 1024 * 1024),
    )(*inputs)
    return hidden, emb, logits


# ------------------------- parameter init (deterministic) ----------------
def init_params(key):
    keys = list(jax.random.split(key, 64))
    it = iter(keys)

    def w(shape):
        return jax.random.normal(next(it), shape, jnp.float32) * 0.02

    def zeros(shape):
        return jnp.zeros(shape, jnp.float32)

    def ones(shape):
        return jnp.ones(shape, jnp.float32)

    params = {
        "word_emb": w((VOCAB, H)),
        "pos_emb": w((MAX_POS, H)),
        "type_emb": w((TYPE_VOCAB, H)),
        "emb_ln_g": ones((1, H)), "emb_ln_b": zeros((1, H)),
        # fused QKV weight per layer: [H, 3H]  (Q | K | V along the lane axis)
        "wqkv": jnp.stack([jnp.concatenate([w((H, H)), w((H, H)), w((H, H))], axis=1)
                           for _ in range(NLAYERS)]),
        "bqkv": zeros((NLAYERS, 1, 3 * H)),
        "wo": jnp.stack([w((H, H)) for _ in range(NLAYERS)]),
        "bo": zeros((NLAYERS, 1, H)),
        "ln1_g": ones((NLAYERS, 1, H)), "ln1_b": zeros((NLAYERS, 1, H)),
        "w1": jnp.stack([w((H, INTER)) for _ in range(NLAYERS)]),
        "b1": zeros((NLAYERS, 1, INTER)),
        "w2": jnp.stack([w((INTER, H)) for _ in range(NLAYERS)]),
        "b2": zeros((NLAYERS, 1, H)),
        "ln2_g": ones((NLAYERS, 1, H)), "ln2_b": zeros((NLAYERS, 1, H)),
        "pooler_w": w((H, H)), "pooler_b": zeros((1, H)),
        "cls_w": w((H, NLABELS)), "cls_b": zeros((1, NLABELS)),
    }
    return params


# ------------------------- forward pass -----------------------------------
def fine_tuned_bert_forward(params, input_ids, attention_mask,
                            pool="mean", return_hidden=False):
    """Mirrors FineTunedBERT.forward (default pool='mean')."""
    pool = pool.lower()
    if pool == "max":
        # TODO(synk): max_pooling is referenced but not defined in the PyTorch module.
        raise NotImplementedError("max pooling not defined in reference module")
    if pool not in ("mean", "cls"):
        raise ValueError("Pooling value error.")

    Bi, Si = input_ids.shape
    mask_f32 = attention_mask.astype(jnp.float32)

    # Embedding gathers are plain-JAX glue; everything downstream is one Pallas call.
    we = params["word_emb"][input_ids]                     # [B, S, H]
    pe = params["pos_emb"][jnp.arange(Si)]                 # [S, H]
    te = params["type_emb"][0]                             # [H]  (token_type_ids == 0)
    x_flat = (we + pe[None, :, :] + te[None, None, :]).reshape(Bi * Si, -1)

    hidden, embeddings, logits = _bert_fused_call(x_flat, mask_f32, params, pool)

    if return_hidden:
        return hidden, logits
    return embeddings, logits


# ------------------------- main ------------------------------------------
if __name__ == "__main__":
    key = jax.random.PRNGKey(0)
    pkey, ikey = jax.random.split(key)
    params = init_params(pkey)

    input_ids = jax.random.randint(ikey, (B, S), 0, VOCAB, dtype=jnp.int32)
    attention_mask = jnp.array(
        [[1, 1, 1, 1, 1, 1, 1, 1],
         [1, 1, 1, 1, 1, 1, 0, 0]], dtype=jnp.int32)

    forward = jax.jit(fine_tuned_bert_forward,
                      static_argnames=("pool", "return_hidden"))
    embeddings, logits = forward(params, input_ids, attention_mask)
    jax.block_until_ready((embeddings, logits))

    assert embeddings.shape == (B, H), embeddings.shape
    assert logits.shape == (B, NLABELS), logits.shape
    assert jnp.all(jnp.isfinite(embeddings)) and jnp.all(jnp.isfinite(logits))

    # Also exercise the return_hidden path once (same fused kernel).
    hidden, logits2 = forward(params, input_ids, attention_mask, return_hidden=True)
    jax.block_until_ready((hidden, logits2))
    assert hidden.shape == (B, S, H), hidden.shape
    assert jnp.all(jnp.isfinite(hidden))

    print("KERNEL_OK")
</pallas_src>

<mosaic_0001>
module attributes {stable_mosaic.version = 11 : i64} {
  func.func @_bert_fused_kernel(%arg0: memref<16x32xf32, #tpu.memory_space<vmem>>, %arg1: memref<2x8xf32, #tpu.memory_space<vmem>>, %arg2: memref<1x32xf32, #tpu.memory_space<vmem>>, %arg3: memref<1x32xf32, #tpu.memory_space<vmem>>, %arg4: memref<2x32x96xf32, #tpu.memory_space<vmem>>, %arg5: memref<2x1x96xf32, #tpu.memory_space<vmem>>, %arg6: memref<2x32x32xf32, #tpu.memory_space<vmem>>, %arg7: memref<2x1x32xf32, #tpu.memory_space<vmem>>, %arg8: memref<2x1x32xf32, #tpu.memory_space<vmem>>, %arg9: memref<2x1x32xf32, #tpu.memory_space<vmem>>, %arg10: memref<2x32x64xf32, #tpu.memory_space<vmem>>, %arg11: memref<2x1x64xf32, #tpu.memory_space<vmem>>, %arg12: memref<2x64x32xf32, #tpu.memory_space<vmem>>, %arg13: memref<2x1x32xf32, #tpu.memory_space<vmem>>, %arg14: memref<2x1x32xf32, #tpu.memory_space<vmem>>, %arg15: memref<2x1x32xf32, #tpu.memory_space<vmem>>, %arg16: memref<32x32xf32, #tpu.memory_space<vmem>>, %arg17: memref<1x32xf32, #tpu.memory_space<vmem>>, %arg18: memref<32x2xf32, #tpu.memory_space<vmem>>, %arg19: memref<1x2xf32, #tpu.memory_space<vmem>>, %arg20: memref<2x8x32xf32, #tpu.memory_space<vmem>>, %arg21: memref<2x32xf32, #tpu.memory_space<vmem>>, %arg22: memref<2x2xf32, #tpu.memory_space<vmem>>) attributes {dimension_semantics = [], scalar_prefetch = 0 : i64, scratch_operands = 0 : i64, tpu.core_type = #tpu.core_type<tc>} {
    %c0 = arith.constant 0 : index
    %c0_0 = arith.constant 0 : index
    %0 = vector.load %arg1[%c0, %c0_0] : memref<2x8xf32, #tpu.memory_space<vmem>>, vector<2x8xf32>
    %cst = arith.constant 1.000000e+00 : f32
    %1 = vector.broadcast %cst : f32 to vector<2x8xf32>
    %2 = arith.subf %1, %0 : vector<2x8xf32>
    %cst_1 = arith.constant -1.000000e+09 : f32
    %3 = vector.broadcast %cst_1 : f32 to vector<2x8xf32>
    %4 = arith.mulf %2, %3 : vector<2x8xf32>
    %5 = vector.shape_cast %4 : vector<2x8xf32> to vector<2x1x8xf32>
    %c0_2 = arith.constant 0 : index
    %c0_3 = arith.constant 0 : index
    %6 = vector.load %arg0[%c0_2, %c0_3] : memref<16x32xf32, #tpu.memory_space<vmem>>, vector<16x32xf32>
    %c0_4 = arith.constant 0 : index
    %c0_5 = arith.constant 0 : index
    %7 = vector.load %arg2[%c0_4, %c0_5] : memref<1x32xf32, #tpu.memory_space<vmem>>, vector<1x32xf32>
    %c0_6 = arith.constant 0 : index
    %c0_7 = arith.constant 0 : index
    %8 = vector.load %arg3[%c0_6, %c0_7] : memref<1x32xf32, #tpu.memory_space<vmem>>, vector<1x32xf32>
    %cst_8 = arith.constant dense<0.000000e+00> : vector<16xf32>
    %9 = vector.multi_reduction <add>, %6, %cst_8 [1] : vector<16x32xf32> to vector<16xf32>
    %10 = vector.shape_cast %9 : vector<16xf32> to vector<16x1xf32>
    %cst_9 = arith.constant 3.200000e+01 : f32
    %11 = vector.broadcast %cst_9 : f32 to vector<16x1xf32>
    %12 = arith.divf %10, %11 : vector<16x1xf32>
    %13 = vector.broadcast %12 : vector<16x1xf32> to vector<16x32xf32>
    %14 = arith.subf %6, %13 : vector<16x32xf32>
    %15 = arith.mulf %14, %14 : vector<16x32xf32>
    %cst_10 = arith.constant dense<0.000000e+00> : vector<16xf32>
    %16 = vector.multi_reduction <add>, %15, %cst_10 [1] : vector<16x32xf32> to vector<16xf32>
    %17 = vector.shape_cast %16 : vector<16xf32> to vector<16x1xf32>
    %cst_11 = arith.constant 3.200000e+01 : f32
    %18 = vector.broadcast %cst_11 : f32 to vector<16x1xf32>
    %19 = arith.divf %17, %18 : vector<16x1xf32>
    %20 = vector.broadcast %12 : vector<16x1xf32> to vector<16x32xf32>
    %21 = arith.subf %6, %20 : vector<16x32xf32>
    %cst_12 = arith.constant 9.99999996E-13 : f32
    %22 = vector.broadcast %cst_12 : f32 to vector<16x1xf32>
    %23 = arith.addf %19, %22 : vector<16x1xf32>
    %24 = math.rsqrt %23 : vector<16x1xf32>
    %25 = vector.broadcast %24 : vector<16x1xf32> to vector<16x32xf32>
    %26 = arith.mulf %21, %25 : vector<16x32xf32>
    %27 = vector.broadcast %7 : vector<1x32xf32> to vector<16x32xf32>
    %28 = arith.mulf %26, %27 : vector<16x32xf32>
    %29 = vector.broadcast %8 : vector<1x32xf32> to vector<16x32xf32>
    %30 = arith.addf %28, %29 : vector<16x32xf32>
    %c0_13 = arith.constant 0 : index
    %c0_14 = arith.constant 0 : index
    %c0_15 = arith.constant 0 : index
    %31 = vector.load %arg4[%c0_13, %c0_14, %c0_15] : memref<2x32x96xf32, #tpu.memory_space<vmem>>, vector<1x32x96xf32>
    %32 = vector.shape_cast %31 : vector<1x32x96xf32> to vector<32x96xf32>
    %cst_16 = arith.constant dense<0.000000e+00> : vector<16x96xf32>
    %33 = tpu.matmul %30, %32, %cst_16 {dimension_numbers = #tpu.dot_dimension_numbers<[1], [0], [0], [1], [0, 0, 1, 1], [], []>} : vector<16x32xf32>, vector<32x96xf32>, vector<16x96xf32> -> vector<16x96xf32>
    %c0_17 = arith.constant 0 : index
    %c0_18 = arith.constant 0 : index
    %c0_19 = arith.constant 0 : index
    %34 = vector.load %arg5[%c0_17, %c0_18, %c0_19] : memref<2x1x96xf32, #tpu.memory_space<vmem>>, vector<1x1x96xf32>
    %35 = vector.shape_cast %34 : vector<1x1x96xf32> to vector<1x96xf32>
    %36 = vector.broadcast %35 : vector<1x96xf32> to vector<16x96xf32>
    %37 = arith.addf %33, %36 : vector<16x96xf32>
    %38 = vector.extract_strided_slice %37 {offsets = [0, 0], sizes = [16, 16], strides = [1, 1]} : vector<16x96xf32> to vector<16x16xf32>
    %39 = vector.shape_cast %38 : vector<16x16xf32> to vector<2x8x16xf32>
    %40 = vector.extract_strided_slice %37 {offsets = [0, 32], sizes = [16, 16], strides = [1, 1]} : vector<16x96xf32> to vector<16x16xf32>
    %41 = vector.shape_cast %40 : vector<16x16xf32> to vector<2x8x16xf32>
    %42 = vector.extract_strided_slice %37 {offsets = [0, 64], sizes = [16, 16], strides = [1, 1]} : vector<16x96xf32> to vector<16x16xf32>
    %43 = vector.shape_cast %42 : vector<16x16xf32> to vector<2x8x16xf32>
    "tpu.trace_start"() <{level = 10 : i32, message = "bqd,bkd->bqk"}> : () -> ()
    %cst_20 = arith.constant dense<0.000000e+00> : vector<2x8x8xf32>
    %44 = tpu.matmul %39, %41, %cst_20 {dimension_numbers = #tpu.dot_dimension_numbers<[2], [2], [1], [1], [0, 0, 0, 1, 1, 1], [0], [0]>} : vector<2x8x16xf32>, vector<2x8x16xf32>, vector<2x8x8xf32> -> vector<2x8x8xf32>
    "tpu.trace_stop"() : () -> ()
    %cst_21 = arith.constant 2.500000e-01 : f32
    %45 = vector.broadcast %cst_21 : f32 to vector<2x8x8xf32>
    %46 = arith.mulf %44, %45 : vector<2x8x8xf32>
    %47 = vector.broadcast %5 : vector<2x1x8xf32> to vector<2x8x8xf32>
    %48 = arith.addf %46, %47 : vector<2x8x8xf32>
    %cst_22 = arith.constant dense<0xFF800000> : vector<2x8xf32>
    %49 = vector.multi_reduction <maximumf>, %48, %cst_22 [2] : vector<2x8x8xf32> to vector<2x8xf32>
    %50 = vector.shape_cast %49 : vector<2x8xf32> to vector<2x8x1xf32>
    %51 = vector.broadcast %50 : vector<2x8x1xf32> to vector<2x8x8xf32>
    %52 = arith.subf %48, %51 : vector<2x8x8xf32>
    %53 = math.exp %52 : vector<2x8x8xf32>
    %cst_23 = arith.constant dense<0.000000e+00> : vector<2x8xf32>
    %54 = vector.multi_reduction <add>, %53, %cst_23 [2] : vector<2x8x8xf32> to vector<2x8xf32>
    %55 = vector.shape_cast %54 : vector<2x8xf32> to vector<2x8x1xf32>
    %56 = tpu.reciprocal %55 {approx = true} : vector<2x8x1xf32> -> vector<2x8x1xf32>
    %57 = vector.broadcast %56 : vector<2x8x1xf32> to vector<2x8x8xf32>
    %58 = arith.mulf %53, %57 : vector<2x8x8xf32>
    "tpu.trace_start"() <{level = 10 : i32, message = "bqk,bkd->bqd"}> : () -> ()
    %cst_24 = arith.constant dense<0.000000e+00> : vector<2x8x16xf32>
    %59 = tpu.matmul %58, %43, %cst_24 {dimension_numbers = #tpu.dot_dimension_numbers<[2], [1], [1], [2], [0, 0, 0, 1, 1, 2], [0], [0]>} : vector<2x8x8xf32>, vector<2x8x16xf32>, vector<2x8x16xf32> -> vector<2x8x16xf32>
    "tpu.trace_stop"() : () -> ()
    %60 = vector.shape_cast %59 : vector<2x8x16xf32> to vector<16x16xf32>
    %61 = vector.extract_strided_slice %37 {offsets = [0, 16], sizes = [16, 16], strides = [1, 1]} : vector<16x96xf32> to vector<16x16xf32>
    %62 = vector.shape_cast %61 : vector<16x16xf32> to vector<2x8x16xf32>
    %63 = vector.extract_strided_slice %37 {offsets = [0, 48], sizes = [16, 16], strides = [1, 1]} : vector<16x96xf32> to vector<16x16xf32>
    %64 = vector.shape_cast %63 : vector<16x16xf32> to vector<2x8x16xf32>
    %65 = vector.extract_strided_slice %37 {offsets = [0, 80], sizes = [16, 16], strides = [1, 1]} : vector<16x96xf32> to vector<16x16xf32>
    %66 = vector.shape_cast %65 : vector<16x16xf32> to vector<2x8x16xf32>
    "tpu.trace_start"() <{level = 10 : i32, message = "bqd,bkd->bqk"}> : () -> ()
    %cst_25 = arith.constant dense<0.000000e+00> : vector<2x8x8xf32>
    %67 = tpu.matmul %62, %64, %cst_25 {dimension_numbers = #tpu.dot_dimension_numbers<[2], [2], [1], [1], [0, 0, 0, 1, 1, 1], [0], [0]>} : vector<2x8x16xf32>, vector<2x8x16xf32>, vector<2x8x8xf32> -> vector<2x8x8xf32>
    "tpu.trace_stop"() : () -> ()
    %cst_26 = arith.constant 2.500000e-01 : f32
    %68 = vector.broadcast %cst_26 : f32 to vector<2x8x8xf32>
    %69 = arith.mulf %67, %68 : vector<2x8x8xf32>
    %70 = vector.broadcast %5 : vector<2x1x8xf32> to vector<2x8x8xf32>
    %71 = arith.addf %69, %70 : vector<2x8x8xf32>
    %cst_27 = arith.constant dense<0xFF800000> : vector<2x8xf32>
    %72 = vector.multi_reduction <maximumf>, %71, %cst_27 [2] : vector<2x8x8xf32> to vector<2x8xf32>
    %73 = vector.shape_cast %72 : vector<2x8xf32> to vector<2x8x1xf32>
    %74 = vector.broadcast %73 : vector<2x8x1xf32> to vector<2x8x8xf32>
    %75 = arith.subf %71, %74 : vector<2x8x8xf32>
    %76 = math.exp %75 : vector<2x8x8xf32>
    %cst_28 = arith.constant dense<0.000000e+00> : vector<2x8xf32>
    %77 = vector.multi_reduction <add>, %76, %cst_28 [2] : vector<2x8x8xf32> to vector<2x8xf32>
    %78 = vector.shape_cast %77 : vector<2x8xf32> to vector<2x8x1xf32>
    %79 = tpu.reciprocal %78 {approx = true} : vector<2x8x1xf32> -> vector<2x8x1xf32>
    %80 = vector.broadcast %79 : vector<2x8x1xf32> to vector<2x8x8xf32>
    %81 = arith.mulf %76, %80 : vector<2x8x8xf32>
    "tpu.trace_start"() <{level = 10 : i32, message = "bqk,bkd->bqd"}> : () -> ()
    %cst_29 = arith.constant dense<0.000000e+00> : vector<2x8x16xf32>
    %82 = tpu.matmul %81, %66, %cst_29 {dimension_numbers = #tpu.dot_dimension_numbers<[2], [1], [1], [2], [0, 0, 0, 1, 1, 2], [0], [0]>} : vector<2x8x8xf32>, vector<2x8x16xf32>, vector<2x8x16xf32> -> vector<2x8x16xf32>
    "tpu.trace_stop"() : () -> ()
    %83 = vector.shape_cast %82 : vector<2x8x16xf32> to vector<16x16xf32>
    %84 = tpu.concatenate %60, %83 in 1 : vector<16x16xf32>, vector<16x16xf32> -> vector<16x32xf32>
    %c0_30 = arith.constant 0 : index
    %c0_31 = arith.constant 0 : index
    %c0_32 = arith.constant 0 : index
    %85 = vector.load %arg6[%c0_30, %c0_31, %c0_32] : memref<2x32x32xf32, #tpu.memory_space<vmem>>, vector<1x32x32xf32>
    %86 = vector.shape_cast %85 : vector<1x32x32xf32> to vector<32x32xf32>
    %cst_33 = arith.constant dense<0.000000e+00> : vector<16x32xf32>
    %87 = tpu.matmul %84, %86, %cst_33 {dimension_numbers = #tpu.dot_dimension_numbers<[1], [0], [0], [1], [0, 0, 1, 1], [], []>} : vector<16x32xf32>, vector<32x32xf32>, vector<16x32xf32> -> vector<16x32xf32>
    %c0_34 = arith.constant 0 : index
    %c0_35 = arith.constant 0 : index
    %c0_36 = arith.constant 0 : index
    %88 = vector.load %arg7[%c0_34, %c0_35, %c0_36] : memref<2x1x32xf32, #tpu.memory_space<vmem>>, vector<1x1x32xf32>
    %89 = vector.shape_cast %88 : vector<1x1x32xf32> to vector<1x32xf32>
    %90 = vector.broadcast %89 : vector<1x32xf32> to vector<16x32xf32>
    %91 = arith.addf %87, %90 : vector<16x32xf32>
    %92 = arith.addf %30, %91 : vector<16x32xf32>
    %c0_37 = arith.constant 0 : index
    %c0_38 = arith.constant 0 : index
    %c0_39 = arith.constant 0 : index
    %93 = vector.load %arg8[%c0_37, %c0_38, %c0_39] : memref<2x1x32xf32, #tpu.memory_space<vmem>>, vector<1x1x32xf32>
    %94 = vector.shape_cast %93 : vector<1x1x32xf32> to vector<1x32xf32>
    %c0_40 = arith.constant 0 : index
    %c0_41 = arith.constant 0 : index
    %c0_42 = arith.constant 0 : index
    %95 = vector.load %arg9[%c0_40, %c0_41, %c0_42] : memref<2x1x32xf32, #tpu.memory_space<vmem>>, vector<1x1x32xf32>
    %96 = vector.shape_cast %95 : vector<1x1x32xf32> to vector<1x32xf32>
    %cst_43 = arith.constant dense<0.000000e+00> : vector<16xf32>
    %97 = vector.multi_reduction <add>, %92, %cst_43 [1] : vector<16x32xf32> to vector<16xf32>
    %98 = vector.shape_cast %97 : vector<16xf32> to vector<16x1xf32>
    %cst_44 = arith.constant 3.200000e+01 : f32
    %99 = vector.broadcast %cst_44 : f32 to vector<16x1xf32>
    %100 = arith.divf %98, %99 : vector<16x1xf32>
    %101 = vector.broadcast %100 : vector<16x1xf32> to vector<16x32xf32>
    %102 = arith.subf %92, %101 : vector<16x32xf32>
    %103 = arith.mulf %102, %102 : vector<16x32xf32>
    %cst_45 = arith.constant dense<0.000000e+00> : vector<16xf32>
    %104 = vector.multi_reduction <add>, %103, %cst_45 [1] : vector<16x32xf32> to vector<16xf32>
    %105 = vector.shape_cast %104 : vector<16xf32> to vector<16x1xf32>
    %cst_46 = arith.constant 3.200000e+01 : f32
    %106 = vector.broadcast %cst_46 : f32 to vector<16x1xf32>
    %107 = arith.divf %105, %106 : vector<16x1xf32>
    %108 = vector.broadcast %100 : vector<16x1xf32> to vector<16x32xf32>
    %109 = arith.subf %92, %108 : vector<16x32xf32>
    %cst_47 = arith.constant 9.99999996E-13 : f32
    %110 = vector.broadcast %cst_47 : f32 to vector<16x1xf32>
    %111 = arith.addf %107, %110 : vector<16x1xf32>
    %112 = math.rsqrt %111 : vector<16x1xf32>
    %113 = vector.broadcast %112 : vector<16x1xf32> to vector<16x32xf32>
    %114 = arith.mulf %109, %113 : vector<16x32xf32>
    %115 = vector.broadcast %94 : vector<1x32xf32> to vector<16x32xf32>
    %116 = arith.mulf %114, %115 : vector<16x32xf32>
    %117 = vector.broadcast %96 : vector<1x32xf32> to vector<16x32xf32>
    %118 = arith.addf %116, %117 : vector<16x32xf32>
    %c0_48 = arith.constant 0 : index
    %c0_49 = arith.constant 0 : index
    %c0_50 = arith.constant 0 : index
    %119 = vector.load %arg10[%c0_48, %c0_49, %c0_50] : memref<2x32x64xf32, #tpu.memory_space<vmem>>, vector<1x32x64xf32>
    %120 = vector.shape_cast %119 : vector<1x32x64xf32> to vector<32x64xf32>
    %cst_51 = arith.constant dense<0.000000e+00> : vector<16x64xf32>
    %121 = tpu.matmul %118, %120, %cst_51 {dimension_numbers = #tpu.dot_dimension_numbers<[1], [0], [0], [1], [0, 0, 1, 1], [], []>} : vector<16x32xf32>, vector<32x64xf32>, vector<16x64xf32> -> vector<16x64xf32>
    %c0_52 = arith.constant 0 : index
    %c0_53 = arith.constant 0 : index
    %c0_54 = arith.constant 0 : index
    %122 = vector.load %arg11[%c0_52, %c0_53, %c0_54] : memref<2x1x64xf32, #tpu.memory_space<vmem>>, vector<1x1x64xf32>
    %123 = vector.shape_cast %122 : vector<1x1x64xf32> to vector<1x64xf32>
    %124 = vector.broadcast %123 : vector<1x64xf32> to vector<16x64xf32>
    %125 = arith.addf %121, %124 : vector<16x64xf32>
    %cst_55 = arith.constant 5.000000e-01 : f32
    %126 = vector.broadcast %cst_55 : f32 to vector<16x64xf32>
    %127 = arith.mulf %126, %125 : vector<16x64xf32>
    %cst_56 = arith.constant 4.471500e-02 : f32
    %128 = vector.broadcast %cst_56 : f32 to vector<16x64xf32>
    %129 = arith.mulf %128, %125 : vector<16x64xf32>
    %130 = arith.mulf %129, %125 : vector<16x64xf32>
    %131 = arith.mulf %130, %125 : vector<16x64xf32>
    %132 = arith.addf %125, %131 : vector<16x64xf32>
    %cst_57 = arith.constant 0.797884583 : f32
    %133 = vector.broadcast %cst_57 : f32 to vector<16x64xf32>
    %134 = arith.mulf %133, %132 : vector<16x64xf32>
    %135 = math.tanh %134 : vector<16x64xf32>
    %cst_58 = arith.constant 1.000000e+00 : f32
    %136 = vector.broadcast %cst_58 : f32 to vector<16x64xf32>
    %137 = arith.addf %136, %135 : vector<16x64xf32>
    %138 = arith.mulf %127, %137 : vector<16x64xf32>
    %c0_59 = arith.constant 0 : index
    %c0_60 = arith.constant 0 : index
    %c0_61 = arith.constant 0 : index
    %139 = vector.load %arg12[%c0_59, %c0_60, %c0_61] : memref<2x64x32xf32, #tpu.memory_space<vmem>>, vector<1x64x32xf32>
    %140 = vector.shape_cast %139 : vector<1x64x32xf32> to vector<64x32xf32>
    %cst_62 = arith.constant dense<0.000000e+00> : vector<16x32xf32>
    %141 = tpu.matmul %138, %140, %cst_62 {dimension_numbers = #tpu.dot_dimension_numbers<[1], [0], [0], [1], [0, 0, 1, 1], [], []>} : vector<16x64xf32>, vector<64x32xf32>, vector<16x32xf32> -> vector<16x32xf32>
    %c0_63 = arith.constant 0 : index
    %c0_64 = arith.constant 0 : index
    %c0_65 = arith.constant 0 : index
    %142 = vector.load %arg13[%c0_63, %c0_64, %c0_65] : memref<2x1x32xf32, #tpu.memory_space<vmem>>, vector<1x1x32xf32>
    %143 = vector.shape_cast %142 : vector<1x1x32xf32> to vector<1x32xf32>
    %144 = vector.broadcast %143 : vector<1x32xf32> to vector<16x32xf32>
    %145 = arith.addf %141, %144 : vector<16x32xf32>
    %146 = arith.addf %118, %145 : vector<16x32xf32>
    %c0_66 = arith.constant 0 : index
    %c0_67 = arith.constant 0 : index
    %c0_68 = arith.constant 0 : index
    %147 = vector.load %arg14[%c0_66, %c0_67, %c0_68] : memref<2x1x32xf32, #tpu.memory_space<vmem>>, vector<1x1x32xf32>
    %148 = vector.shape_cast %147 : vector<1x1x32xf32> to vector<1x32xf32>
    %c0_69 = arith.constant 0 : index
    %c0_70 = arith.constant 0 : index
    %c0_71 = arith.constant 0 : index
    %149 = vector.load %arg15[%c0_69, %c0_70, %c0_71] : memref<2x1x32xf32, #tpu.memory_space<vmem>>, vector<1x1x32xf32>
    %150 = vector.shape_cast %149 : vector<1x1x32xf32> to vector<1x32xf32>
    %cst_72 = arith.constant dense<0.000000e+00> : vector<16xf32>
    %151 = vector.multi_reduction <add>, %146, %cst_72 [1] : vector<16x32xf32> to vector<16xf32>
    %152 = vector.shape_cast %151 : vector<16xf32> to vector<16x1xf32>
    %cst_73 = arith.constant 3.200000e+01 : f32
    %153 = vector.broadcast %cst_73 : f32 to vector<16x1xf32>
    %154 = arith.divf %152, %153 : vector<16x1xf32>
    %155 = vector.broadcast %154 : vector<16x1xf32> to vector<16x32xf32>
    %156 = arith.subf %146, %155 : vector<16x32xf32>
    %157 = arith.mulf %156, %156 : vector<16x32xf32>
    %cst_74 = arith.constant dense<0.000000e+00> : vector<16xf32>
    %158 = vector.multi_reduction <add>, %157, %cst_74 [1] : vector<16x32xf32> to vector<16xf32>
    %159 = vector.shape_cast %158 : vector<16xf32> to vector<16x1xf32>
    %cst_75 = arith.constant 3.200000e+01 : f32
    %160 = vector.broadcast %cst_75 : f32 to vector<16x1xf32>
    %161 = arith.divf %159, %160 : vector<16x1xf32>
    %162 = vector.broadcast %154 : vector<16x1xf32> to vector<16x32xf32>
    %163 = arith.subf %146, %162 : vector<16x32xf32>
    %cst_76 = arith.constant 9.99999996E-13 : f32
    %164 = vector.broadcast %cst_76 : f32 to vector<16x1xf32>
    %165 = arith.addf %161, %164 : vector<16x1xf32>
    %166 = math.rsqrt %165 : vector<16x1xf32>
    %167 = vector.broadcast %166 : vector<16x1xf32> to vector<16x32xf32>
    %168 = arith.mulf %163, %167 : vector<16x32xf32>
    %169 = vector.broadcast %148 : vector<1x32xf32> to vector<16x32xf32>
    %170 = arith.mulf %168, %169 : vector<16x32xf32>
    %171 = vector.broadcast %150 : vector<1x32xf32> to vector<16x32xf32>
    %172 = arith.addf %170, %171 : vector<16x32xf32>
    %c1 = arith.constant 1 : index
    %c0_77 = arith.constant 0 : index
    %c0_78 = arith.constant 0 : index
    %173 = vector.load %arg4[%c1, %c0_77, %c0_78] : memref<2x32x96xf32, #tpu.memory_space<vmem>>, vector<1x32x96xf32>
    %174 = vector.shape_cast %173 : vector<1x32x96xf32> to vector<32x96xf32>
    %cst_79 = arith.constant dense<0.000000e+00> : vector<16x96xf32>
    %175 = tpu.matmul %172, %174, %cst_79 {dimension_numbers = #tpu.dot_dimension_numbers<[1], [0], [0], [1], [0, 0, 1, 1], [], []>} : vector<16x32xf32>, vector<32x96xf32>, vector<16x96xf32> -> vector<16x96xf32>
    %c1_80 = arith.constant 1 : index
    %c0_81 = arith.constant 0 : index
    %c0_82 = arith.constant 0 : index
    %176 = vector.load %arg5[%c1_80, %c0_81, %c0_82] : memref<2x1x96xf32, #tpu.memory_space<vmem>>, vector<1x1x96xf32>
    %177 = vector.shape_cast %176 : vector<1x1x96xf32> to vector<1x96xf32>
    %178 = vector.broadcast %177 : vector<1x96xf32> to vector<16x96xf32>
    %179 = arith.addf %175, %178 : vector<16x96xf32>
    %180 = vector.extract_strided_slice %179 {offsets = [0, 0], sizes = [16, 16], strides = [1, 1]} : vector<16x96xf32> to vector<16x16xf32>
    %181 = vector.shape_cast %180 : vector<16x16xf32> to vector<2x8x16xf32>
    %182 = vector.extract_strided_slice %179 {offsets = [0, 32], sizes = [16, 16], strides = [1, 1]} : vector<16x96xf32> to vector<16x16xf32>
    %183 = vector.shape_cast %182 : vector<16x16xf32> to vector<2x8x16xf32>
    %184 = vector.extract_strided_slice %179 {offsets = [0, 64], sizes = [16, 16], strides = [1, 1]} : vector<16x96xf32> to vector<16x16xf32>
    %185 = vector.shape_cast %184 : vector<16x16xf32> to vector<2x8x16xf32>
    "tpu.trace_start"() <{level = 10 : i32, message = "bqd,bkd->bqk"}> : () -> ()
    %cst_83 = arith.constant dense<0.000000e+00> : vector<2x8x8xf32>
    %186 = tpu.matmul %181, %183, %cst_83 {dimension_numbers = #tpu.dot_dimension_numbers<[2], [2], [1], [1], [0, 0, 0, 1, 1, 1], [0], [0]>} : vector<2x8x16xf32>, vector<2x8x16xf32>, vector<2x8x8xf32> -> vector<2x8x8xf32>
    "tpu.trace_stop"() : () -> ()
    %cst_84 = arith.constant 2.500000e-01 : f32
    %187 = vector.broadcast %cst_84 : f32 to vector<2x8x8xf32>
    %188 = arith.mulf %186, %187 : vector<2x8x8xf32>
    %189 = vector.broadcast %5 : vector<2x1x8xf32> to vector<2x8x8xf32>
    %190 = arith.addf %188, %189 : vector<2x8x8xf32>
    %cst_85 = arith.constant dense<0xFF800000> : vector<2x8xf32>
    %191 = vector.multi_reduction <maximumf>, %190, %cst_85 [2] : vector<2x8x8xf32> to vector<2x8xf32>
    %192 = vector.shape_cast %191 : vector<2x8xf32> to vector<2x8x1xf32>
    %193 = vector.broadcast %192 : vector<2x8x1xf32> to vector<2x8x8xf32>
    %194 = arith.subf %190, %193 : vector<2x8x8xf32>
    %195 = math.exp %194 : vector<2x8x8xf32>
    %cst_86 = arith.constant dense<0.000000e+00> : vector<2x8xf32>
    %196 = vector.multi_reduction <add>, %195, %cst_86 [2] : vector<2x8x8xf32> to vector<2x8xf32>
    %197 = vector.shape_cast %196 : vector<2x8xf32> to vector<2x8x1xf32>
    %198 = tpu.reciprocal %197 {approx = true} : vector<2x8x1xf32> -> vector<2x8x1xf32>
    %199 = vector.broadcast %198 : vector<2x8x1xf32> to vector<2x8x8xf32>
    %200 = arith.mulf %195, %199 : vector<2x8x8xf32>
    "tpu.trace_start"() <{level = 10 : i32, message = "bqk,bkd->bqd"}> : () -> ()
    %cst_87 = arith.constant dense<0.000000e+00> : vector<2x8x16xf32>
    %201 = tpu.matmul %200, %185, %cst_87 {dimension_numbers = #tpu.dot_dimension_numbers<[2], [1], [1], [2], [0, 0, 0, 1, 1, 2], [0], [0]>} : vector<2x8x8xf32>, vector<2x8x16xf32>, vector<2x8x16xf32> -> vector<2x8x16xf32>
    "tpu.trace_stop"() : () -> ()
    %202 = vector.shape_cast %201 : vector<2x8x16xf32> to vector<16x16xf32>
    %203 = vector.extract_strided_slice %179 {offsets = [0, 16], sizes = [16, 16], strides = [1, 1]} : vector<16x96xf32> to vector<16x16xf32>
    %204 = vector.shape_cast %203 : vector<16x16xf32> to vector<2x8x16xf32>
    %205 = vector.extract_strided_slice %179 {offsets = [0, 48], sizes = [16, 16], strides = [1, 1]} : vector<16x96xf32> to vector<16x16xf32>
    %206 = vector.shape_cast %205 : vector<16x16xf32> to vector<2x8x16xf32>
    %207 = vector.extract_strided_slice %179 {offsets = [0, 80], sizes = [16, 16], strides = [1, 1]} : vector<16x96xf32> to vector<16x16xf32>
    %208 = vector.shape_cast %207 : vector<16x16xf32> to vector<2x8x16xf32>
    "tpu.trace_start"() <{level = 10 : i32, message = "bqd,bkd->bqk"}> : () -> ()
    %cst_88 = arith.constant dense<0.000000e+00> : vector<2x8x8xf32>
    %209 = tpu.matmul %204, %206, %cst_88 {dimension_numbers = #tpu.dot_dimension_numbers<[2], [2], [1], [1], [0, 0, 0, 1, 1, 1], [0], [0]>} : vector<2x8x16xf32>, vector<2x8x16xf32>, vector<2x8x8xf32> -> vector<2x8x8xf32>
    "tpu.trace_stop"() : () -> ()
    %cst_89 = arith.constant 2.500000e-01 : f32
    %210 = vector.broadcast %cst_89 : f32 to vector<2x8x8xf32>
    %211 = arith.mulf %209, %210 : vector<2x8x8xf32>
    %212 = vector.broadcast %5 : vector<2x1x8xf32> to vector<2x8x8xf32>
    %213 = arith.addf %211, %212 : vector<2x8x8xf32>
    %cst_90 = arith.constant dense<0xFF800000> : vector<2x8xf32>
    %214 = vector.multi_reduction <maximumf>, %213, %cst_90 [2] : vector<2x8x8xf32> to vector<2x8xf32>
    %215 = vector.shape_cast %214 : vector<2x8xf32> to vector<2x8x1xf32>
    %216 = vector.broadcast %215 : vector<2x8x1xf32> to vector<2x8x8xf32>
    %217 = arith.subf %213, %216 : vector<2x8x8xf32>
    %218 = math.exp %217 : vector<2x8x8xf32>
    %cst_91 = arith.constant dense<0.000000e+00> : vector<2x8xf32>
    %219 = vector.multi_reduction <add>, %218, %cst_91 [2] : vector<2x8x8xf32> to vector<2x8xf32>
    %220 = vector.shape_cast %219 : vector<2x8xf32> to vector<2x8x1xf32>
    %221 = tpu.reciprocal %220 {approx = true} : vector<2x8x1xf32> -> vector<2x8x1xf32>
    %222 = vector.broadcast %221 : vector<2x8x1xf32> to vector<2x8x8xf32>
    %223 = arith.mulf %218, %222 : vector<2x8x8xf32>
    "tpu.trace_start"() <{level = 10 : i32, message = "bqk,bkd->bqd"}> : () -> ()
    %cst_92 = arith.constant dense<0.000000e+00> : vector<2x8x16xf32>
    %224 = tpu.matmul %223, %208, %cst_92 {dimension_numbers = #tpu.dot_dimension_numbers<[2], [1], [1], [2], [0, 0, 0, 1, 1, 2], [0], [0]>} : vector<2x8x8xf32>, vector<2x8x16xf32>, vector<2x8x16xf32> -> vector<2x8x16xf32>
    "tpu.trace_stop"() : () -> ()
    %225 = vector.shape_cast %224 : vector<2x8x16xf32> to vector<16x16xf32>
    %226 = tpu.concatenate %202, %225 in 1 : vector<16x16xf32>, vector<16x16xf32> -> vector<16x32xf32>
    %c1_93 = arith.constant 1 : index
    %c0_94 = arith.constant 0 : index
    %c0_95 = arith.constant 0 : index
    %227 = vector.load %arg6[%c1_93, %c0_94, %c0_95] : memref<2x32x32xf32, #tpu.memory_space<vmem>>, vector<1x32x32xf32>
    %228 = vector.shape_cast %227 : vector<1x32x32xf32> to vector<32x32xf32>
    %cst_96 = arith.constant dense<0.000000e+00> : vector<16x32xf32>
    %229 = tpu.matmul %226, %228, %cst_96 {dimension_numbers = #tpu.dot_dimension_numbers<[1], [0], [0], [1], [0, 0, 1, 1], [], []>} : vector<16x32xf32>, vector<32x32xf32>, vector<16x32xf32> -> vector<16x32xf32>
    %c1_97 = arith.constant 1 : index
    %c0_98 = arith.constant 0 : index
    %c0_99 = arith.constant 0 : index
    %230 = vector.load %arg7[%c1_97, %c0_98, %c0_99] : memref<2x1x32xf32, #tpu.memory_space<vmem>>, vector<1x1x32xf32>
    %231 = vector.shape_cast %230 : vector<1x1x32xf32> to vector<1x32xf32>
    %232 = vector.broadcast %231 : vector<1x32xf32> to vector<16x32xf32>
    %233 = arith.addf %229, %232 : vector<16x32xf32>
    %234 = arith.addf %172, %233 : vector<16x32xf32>
    %c1_100 = arith.constant 1 : index
    %c0_101 = arith.constant 0 : index
    %c0_102 = arith.constant 0 : index
    %235 = vector.load %arg8[%c1_100, %c0_101, %c0_102] : memref<2x1x32xf32, #tpu.memory_space<vmem>>, vector<1x1x32xf32>
    %236 = vector.shape_cast %235 : vector<1x1x32xf32> to vector<1x32xf32>
    %c1_103 = arith.constant 1 : index
    %c0_104 = arith.constant 0 : index
    %c0_105 = arith.constant 0 : index
    %237 = vector.load %arg9[%c1_103, %c0_104, %c0_105] : memref<2x1x32xf32, #tpu.memory_space<vmem>>, vector<1x1x32xf32>
    %238 = vector.shape_cast %237 : vector<1x1x32xf32> to vector<1x32xf32>
    %cst_106 = arith.constant dense<0.000000e+00> : vector<16xf32>
    %239 = vector.multi_reduction <add>, %234, %cst_106 [1] : vector<16x32xf32> to vector<16xf32>
    %240 = vector.shape_cast %239 : vector<16xf32> to vector<16x1xf32>
    %cst_107 = arith.constant 3.200000e+01 : f32
    %241 = vector.broadcast %cst_107 : f32 to vector<16x1xf32>
    %242 = arith.divf %240, %241 : vector<16x1xf32>
    %243 = vector.broadcast %242 : vector<16x1xf32> to vector<16x32xf32>
    %244 = arith.subf %234, %243 : vector<16x32xf32>
    %245 = arith.mulf %244, %244 : vector<16x32xf32>
    %cst_108 = arith.constant dense<0.000000e+00> : vector<16xf32>
    %246 = vector.multi_reduction <add>, %245, %cst_108 [1] : vector<16x32xf32> to vector<16xf32>
    %247 = vector.shape_cast %246 : vector<16xf32> to vector<16x1xf32>
    %cst_109 = arith.constant 3.200000e+01 : f32
    %248 = vector.broadcast %cst_109 : f32 to vector<16x1xf32>
    %249 = arith.divf %247, %248 : vector<16x1xf32>
    %250 = vector.broadcast %242 : vector<16x1xf32> to vector<16x32xf32>
    %251 = arith.subf %234, %250 : vector<16x32xf32>
    %cst_110 = arith.constant 9.99999996E-13 : f32
    %252 = vector.broadcast %cst_110 : f32 to vector<16x1xf32>
    %253 = arith.addf %249, %252 : vector<16x1xf32>
    %254 = math.rsqrt %253 : vector<16x1xf32>
    %255 = vector.broadcast %254 : vector<16x1xf32> to vector<16x32xf32>
    %256 = arith.mulf %251, %255 : vector<16x32xf32>
    %257 = vector.broadcast %236 : vector<1x32xf32> to vector<16x32xf32>
    %258 = arith.mulf %256, %257 : vector<16x32xf32>
    %259 = vector.broadcast %238 : vector<1x32xf32> to vector<16x32xf32>
    %260 = arith.addf %258, %259 : vector<16x32xf32>
    %c1_111 = arith.constant 1 : index
    %c0_112 = arith.constant 0 : index
    %c0_113 = arith.constant 0 : index
    %261 = vector.load %arg10[%c1_111, %c0_112, %c0_113] : memref<2x32x64xf32, #tpu.memory_space<vmem>>, vector<1x32x64xf32>
    %262 = vector.shape_cast %261 : vector<1x32x64xf32> to vector<32x64xf32>
    %cst_114 = arith.constant dense<0.000000e+00> : vector<16x64xf32>
    %263 = tpu.matmul %260, %262, %cst_114 {dimension_numbers = #tpu.dot_dimension_numbers<[1], [0], [0], [1], [0, 0, 1, 1], [], []>} : vector<16x32xf32>, vector<32x64xf32>, vector<16x64xf32> -> vector<16x64xf32>
    %c1_115 = arith.constant 1 : index
    %c0_116 = arith.constant 0 : index
    %c0_117 = arith.constant 0 : index
    %264 = vector.load %arg11[%c1_115, %c0_116, %c0_117] : memref<2x1x64xf32, #tpu.memory_space<vmem>>, vector<1x1x64xf32>
    %265 = vector.shape_cast %264 : vector<1x1x64xf32> to vector<1x64xf32>
    %266 = vector.broadcast %265 : vector<1x64xf32> to vector<16x64xf32>
    %267 = arith.addf %263, %266 : vector<16x64xf32>
    %cst_118 = arith.constant 5.000000e-01 : f32
    %268 = vector.broadcast %cst_118 : f32 to vector<16x64xf32>
    %269 = arith.mulf %268, %267 : vector<16x64xf32>
    %cst_119 = arith.constant 4.471500e-02 : f32
    %270 = vector.broadcast %cst_119 : f32 to vector<16x64xf32>
    %271 = arith.mulf %270, %267 : vector<16x64xf32>
    %272 = arith.mulf %271, %267 : vector<16x64xf32>
    %273 = arith.mulf %272, %267 : vector<16x64xf32>
    %274 = arith.addf %267, %273 : vector<16x64xf32>
    %cst_120 = arith.constant 0.797884583 : f32
    %275 = vector.broadcast %cst_120 : f32 to vector<16x64xf32>
    %276 = arith.mulf %275, %274 : vector<16x64xf32>
    %277 = math.tanh %276 : vector<16x64xf32>
    %cst_121 = arith.constant 1.000000e+00 : f32
    %278 = vector.broadcast %cst_121 : f32 to vector<16x64xf32>
    %279 = arith.addf %278, %277 : vector<16x64xf32>
    %280 = arith.mulf %269, %279 : vector<16x64xf32>
    %c1_122 = arith.constant 1 : index
    %c0_123 = arith.constant 0 : index
    %c0_124 = arith.constant 0 : index
    %281 = vector.load %arg12[%c1_122, %c0_123, %c0_124] : memref<2x64x32xf32, #tpu.memory_space<vmem>>, vector<1x64x32xf32>
    %282 = vector.shape_cast %281 : vector<1x64x32xf32> to vector<64x32xf32>
    %cst_125 = arith.constant dense<0.000000e+00> : vector<16x32xf32>
    %283 = tpu.matmul %280, %282, %cst_125 {dimension_numbers = #tpu.dot_dimension_numbers<[1], [0], [0], [1], [0, 0, 1, 1], [], []>} : vector<16x64xf32>, vector<64x32xf32>, vector<16x32xf32> -> vector<16x32xf32>
    %c1_126 = arith.constant 1 : index
    %c0_127 = arith.constant 0 : index
    %c0_128 = arith.constant 0 : index
    %284 = vector.load %arg13[%c1_126, %c0_127, %c0_128] : memref<2x1x32xf32, #tpu.memory_space<vmem>>, vector<1x1x32xf32>
    %285 = vector.shape_cast %284 : vector<1x1x32xf32> to vector<1x32xf32>
    %286 = vector.broadcast %285 : vector<1x32xf32> to vector<16x32xf32>
    %287 = arith.addf %283, %286 : vector<16x32xf32>
    %288 = arith.addf %260, %287 : vector<16x32xf32>
    %c1_129 = arith.constant 1 : index
    %c0_130 = arith.constant 0 : index
    %c0_131 = arith.constant 0 : index
    %289 = vector.load %arg14[%c1_129, %c0_130, %c0_131] : memref<2x1x32xf32, #tpu.memory_space<vmem>>, vector<1x1x32xf32>
    %290 = vector.shape_cast %289 : vector<1x1x32xf32> to vector<1x32xf32>
    %c1_132 = arith.constant 1 : index
    %c0_133 = arith.constant 0 : index
    %c0_134 = arith.constant 0 : index
    %291 = vector.load %arg15[%c1_132, %c0_133, %c0_134] : memref<2x1x32xf32, #tpu.memory_space<vmem>>, vector<1x1x32xf32>
    %292 = vector.shape_cast %291 : vector<1x1x32xf32> to vector<1x32xf32>
    %cst_135 = arith.constant dense<0.000000e+00> : vector<16xf32>
    %293 = vector.multi_reduction <add>, %288, %cst_135 [1] : vector<16x32xf32> to vector<16xf32>
    %294 = vector.shape_cast %293 : vector<16xf32> to vector<16x1xf32>
    %cst_136 = arith.constant 3.200000e+01 : f32
    %295 = vector.broadcast %cst_136 : f32 to vector<16x1xf32>
    %296 = arith.divf %294, %295 : vector<16x1xf32>
    %297 = vector.broadcast %296 : vector<16x1xf32> to vector<16x32xf32>
    %298 = arith.subf %288, %297 : vector<16x32xf32>
    %299 = arith.mulf %298, %298 : vector<16x32xf32>
    %cst_137 = arith.constant dense<0.000000e+00> : vector<16xf32>
    %300 = vector.multi_reduction <add>, %299, %cst_137 [1] : vector<16x32xf32> to vector<16xf32>
    %301 = vector.shape_cast %300 : vector<16xf32> to vector<16x1xf32>
    %cst_138 = arith.constant 3.200000e+01 : f32
    %302 = vector.broadcast %cst_138 : f32 to vector<16x1xf32>
    %303 = arith.divf %301, %302 : vector<16x1xf32>
    %304 = vector.broadcast %296 : vector<16x1xf32> to vector<16x32xf32>
    %305 = arith.subf %288, %304 : vector<16x32xf32>
    %cst_139 = arith.constant 9.99999996E-13 : f32
    %306 = vector.broadcast %cst_139 : f32 to vector<16x1xf32>
    %307 = arith.addf %303, %306 : vector<16x1xf32>
    %308 = math.rsqrt %307 : vector<16x1xf32>
    %309 = vector.broadcast %308 : vector<16x1xf32> to vector<16x32xf32>
    %310 = arith.mulf %305, %309 : vector<16x32xf32>
    %311 = vector.broadcast %290 : vector<1x32xf32> to vector<16x32xf32>
    %312 = arith.mulf %310, %311 : vector<16x32xf32>
    %313 = vector.broadcast %292 : vector<1x32xf32> to vector<16x32xf32>
    %314 = arith.addf %312, %313 : vector<16x32xf32>
    %315 = vector.shape_cast %314 : vector<16x32xf32> to vector<2x8x32xf32>
    %c0_140 = arith.constant 0 : index
    %c0_141 = arith.constant 0 : index
    %c0_142 = arith.constant 0 : index
    %316 = vector.load %arg20[%c0_140, %c0_141, %c0_142] : memref<2x8x32xf32, #tpu.memory_space<vmem>>, vector<2x8x32xf32>
    tpu.vector_store %arg20[%c0_140, %c0_141, %c0_142], %315 {strides = array<i32>} : memref<2x8x32xf32, #tpu.memory_space<vmem>>, vector<2x8x32xf32>,
    %317 = vector.shape_cast %0 : vector<2x8xf32> to vector<2x8x1xf32>
    %318 = vector.broadcast %317 : vector<2x8x1xf32> to vector<2x8x32xf32>
    %319 = arith.mulf %315, %318 : vector<2x8x32xf32>
    %cst_143 = arith.constant dense<0.000000e+00> : vector<2x32xf32>
    %320 = vector.multi_reduction <add>, %319, %cst_143 [1] : vector<2x8x32xf32> to vector<2x32xf32>
    %cst_144 = arith.constant dense<0.000000e+00> : vector<2xf32>
    %321 = vector.multi_reduction <add>, %0, %cst_144 [1] : vector<2x8xf32> to vector<2xf32>
    %322 = vector.shape_cast %321 : vector<2xf32> to vector<2x1xf32>
    %cst_145 = arith.constant 9.99999971E-10 : f32
    %323 = vector.broadcast %cst_145 : f32 to vector<2x1xf32>
    %324 = arith.maximumf %322, %323 : vector<2x1xf32>
    %325 = vector.broadcast %324 : vector<2x1xf32> to vector<2x32xf32>
    %326 = arith.divf %320, %325 : vector<2x32xf32>
    %c0_146 = arith.constant 0 : index
    %c0_147 = arith.constant 0 : index
    %327 = vector.load %arg21[%c0_146, %c0_147] : memref<2x32xf32, #tpu.memory_space<vmem>>, vector<2x32xf32>
    tpu.vector_store %arg21[%c0_146, %c0_147], %326 {strides = array<i32>} : memref<2x32xf32, #tpu.memory_space<vmem>>, vector<2x32xf32>,
    %c0_148 = arith.constant 0 : index
    %c0_149 = arith.constant 0 : index
    %328 = vector.load %arg18[%c0_148, %c0_149] : memref<32x2xf32, #tpu.memory_space<vmem>>, vector<32x2xf32>
    %cst_150 = arith.constant dense<0.000000e+00> : vector<2x2xf32>
    %329 = tpu.matmul %326, %328, %cst_150 {dimension_numbers = #tpu.dot_dimension_numbers<[1], [0], [0], [1], [0, 0, 1, 1], [], []>} : vector<2x32xf32>, vector<32x2xf32>, vector<2x2xf32> -> vector<2x2xf32>
    %c0_151 = arith.constant 0 : index
    %c0_152 = arith.constant 0 : index
    %330 = vector.load %arg19[%c0_151, %c0_152] : memref<1x2xf32, #tpu.memory_space<vmem>>, vector<1x2xf32>
    %331 = vector.broadcast %330 : vector<1x2xf32> to vector<2x2xf32>
    %332 = arith.addf %329, %331 : vector<2x2xf32>
    %c0_153 = arith.constant 0 : index
    %c0_154 = arith.constant 0 : index
    %333 = vector.load %arg22[%c0_153, %c0_154] : memref<2x2xf32, #tpu.memory_space<vmem>>, vector<2x2xf32>
    tpu.vector_store %arg22[%c0_153, %c0_154], %332 {strides = array<i32>} : memref<2x2xf32, #tpu.memory_space<vmem>>, vector<2x2xf32>,
    return
  }
}

</mosaic_0001>

<llo_original>
// kernel: fine_tuned_bert_forward.1
$region0: #{fine_tuned_bert_forward.1}
  #allocation0 [shape = 'u32[]', space=smem, size = 0x4, offset = 0x4, fixed_abs, tag = 'smem constant byte address 0x4 - core index']
  #allocation1 [shape = 'u32[144,128]{1,0:T(1,128)}', space=vmem, size = 0x12000, scoped, tag = 'internal scratch']
  %s0 = inlined_call_operand.vmem [shape: f32[16,32], index: 0, kind: input, shape index: {}]
  %s1 = inlined_call_operand.vmem [shape: f32[2,8], index: 1, kind: input, shape index: {}]
  %s2 = inlined_call_operand.vmem [shape: f32[1,32], index: 2, kind: input, shape index: {}]
  %s3 = inlined_call_operand.vmem [shape: f32[1,32], index: 3, kind: input, shape index: {}]
  %s4 = inlined_call_operand.vmem [shape: f32[2,32,96], index: 4, kind: input, shape index: {}]
  %s5 = inlined_call_operand.vmem [shape: f32[2,1,96], index: 5, kind: input, shape index: {}]
  %s6 = inlined_call_operand.vmem [shape: f32[2,32,32], index: 6, kind: input, shape index: {}]
  %s7 = inlined_call_operand.vmem [shape: f32[2,1,32], index: 7, kind: input, shape index: {}]
  %s8 = inlined_call_operand.vmem [shape: f32[2,1,32], index: 8, kind: input, shape index: {}]
  %s9 = inlined_call_operand.vmem [shape: f32[2,1,32], index: 9, kind: input, shape index: {}]
  %s10 = inlined_call_operand.vmem [shape: f32[2,32,64], index: 10, kind: input, shape index: {}]
  %s11 = inlined_call_operand.vmem [shape: f32[2,1,64], index: 11, kind: input, shape index: {}]
  %s12 = inlined_call_operand.vmem [shape: f32[2,64,32], index: 12, kind: input, shape index: {}]
  %s13 = inlined_call_operand.vmem [shape: f32[2,1,32], index: 13, kind: input, shape index: {}]
  %s14 = inlined_call_operand.vmem [shape: f32[2,1,32], index: 14, kind: input, shape index: {}]
  %s15 = inlined_call_operand.vmem [shape: f32[2,1,32], index: 15, kind: input, shape index: {}]
  %s16 = inlined_call_operand.vmem [shape: f32[32,32], index: 16, kind: input, shape index: {}]
  %s17 = inlined_call_operand.vmem [shape: f32[1,32], index: 17, kind: input, shape index: {}]
  %s18 = inlined_call_operand.vmem [shape: f32[32,2], index: 18, kind: input, shape index: {}]
  %s19 = inlined_call_operand.vmem [shape: f32[1,2], index: 19, kind: input, shape index: {}]
  %s20 = inlined_call_operand.hbm [shape: f32[2,8,32], index: 20, kind: output, shape index: {0}]
  %s21 = inlined_call_operand.hbm [shape: f32[2,32], index: 21, kind: output, shape index: {1}]
  %s22 = inlined_call_operand.hbm [shape: f32[2,2], index: 22, kind: output, shape index: {2}]
  %23 = xla_tuple %s20, %s21, %s22
  %s24 = sld [smem:[#allocation0]]
  $region106: #{fine_tuned_bert_forward.1} parent=0
    _
  %s26 = ssub.s32 1, %s24
  %s27 = scalar_select 0, %s26, %s24
  $region1: #{fine_tuned_bert_forward.1} parent=0
    #allocation2 [shape = 'u8[8192]{0}', space=vmem, size = 0x2000, scoped, tag = 'output window, operand 0, single buffered']
    #allocation3 [shape = 's32[1]{0}', space=sflag, size = 0x4, scoped, tag = 'scoped memory for fine_tuned_bert_forward.1']
    #allocation4 [shape = 'u8[1024]{0}', space=vmem, size = 0x400, scoped, tag = 'output window, operand 1, single buffered']
    #allocation5 [shape = 's32[1]{0}', space=sflag, size = 0x4, scoped, tag = 'scoped memory for fine_tuned_bert_forward.1']
    #allocation6 [shape = 'u8[1024]{0}', space=vmem, size = 0x400, scoped, tag = 'output window, operand 2, single buffered']
    %28 = vsyncpa [#allocation3], 0
    %29 = vsyncpa [#allocation5], 0
    // Predicated region
    $region2: #{fine_tuned_bert_forward.1} parent=1 // pred_check
      _
    $region3: #{fine_tuned_bert_forward.1} parent=1 // pred_check_branch
      %31 = sbr.rel (0) target = $region5
    $region4: #{fine_tuned_bert_forward.1} parent=1 // pred_region
      _
    $region5: #{fine_tuned_bert_forward.1} parent=1 // pred_fallthru
      _
    // Predicated region
    $region6: #{fine_tuned_bert_forward.1} parent=1 // pred_check
      _
    $region7: #{fine_tuned_bert_forward.1} parent=1 // pred_check_branch
      %33 = sbr.rel (0) target = $region9
    $region8: #{fine_tuned_bert_forward.1} parent=1 // pred_region
      _
    $region9: #{fine_tuned_bert_forward.1} parent=1 // pred_fallthru
      _
    // Predicated region
    $region10: #{fine_tuned_bert_forward.1} parent=1 // pred_check
      _
    $region11: #{fine_tuned_bert_forward.1} parent=1 // pred_check_branch
      %35 = sbr.rel (0) target = $region13
    $region12: #{fine_tuned_bert_forward.1} parent=1 // pred_region
      _
    $region13: #{fine_tuned_bert_forward.1} parent=1 // pred_fallthru
      _
    // Predicated region
    $region14: #{fine_tuned_bert_forward.1} parent=1 // pred_check
      _
    $region15: #{fine_tuned_bert_forward.1} parent=1 // pred_check_branch
      %37 = sbr.rel (0) target = $region17
    $region16: #{fine_tuned_bert_forward.1} parent=1 // pred_region
      _
    $region17: #{fine_tuned_bert_forward.1} parent=1 // pred_fallthru
      _
    // Predicated region
    $region18: #{fine_tuned_bert_forward.1} parent=1 // pred_check
      _
    $region19: #{fine_tuned_bert_forward.1} parent=1 // pred_check_branch
      %39 = sbr.rel (0) target = $region21
    $region20: #{fine_tuned_bert_forward.1} parent=1 // pred_region
      _
    $region21: #{fine_tuned_bert_forward.1} parent=1 // pred_fallthru
      _
    // Predicated region
    $region22: #{fine_tuned_bert_forward.1} parent=1 // pred_check
      _
    $region23: #{fine_tuned_bert_forward.1} parent=1 // pred_check_branch
      %41 = sbr.rel (0) target = $region25
    $region24: #{fine_tuned_bert_forward.1} parent=1 // pred_region
      _
    $region25: #{fine_tuned_bert_forward.1} parent=1 // pred_fallthru
      _
    // Predicated region
    $region26: #{fine_tuned_bert_forward.1} parent=1 // pred_check
      _
    $region27: #{fine_tuned_bert_forward.1} parent=1 // pred_check_branch
      %43 = sbr.rel (0) target = $region29
    $region28: #{fine_tuned_bert_forward.1} parent=1 // pred_region
      _
    $region29: #{fine_tuned_bert_forward.1} parent=1 // pred_fallthru
      _
    // Predicated region
    $region30: #{fine_tuned_bert_forward.1} parent=1 // pred_check
      _
    $region31: #{fine_tuned_bert_forward.1} parent=1 // pred_check_branch
      %45 = sbr.rel (0) target = $region33
    $region32: #{fine_tuned_bert_forward.1} parent=1 // pred_region
      _
    $region33: #{fine_tuned_bert_forward.1} parent=1 // pred_fallthru
      _
    // Predicated region
    $region34: #{fine_tuned_bert_forward.1} parent=1 // pred_check
      _
    $region35: #{fine_tuned_bert_forward.1} parent=1 // pred_check_branch
      %47 = sbr.rel (0) target = $region37
    $region36: #{fine_tuned_bert_forward.1} parent=1 // pred_region
      _
    $region37: #{fine_tuned_bert_forward.1} parent=1 // pred_fallthru
      _
    // Predicated region
    $region38: #{fine_tuned_bert_forward.1} parent=1 // pred_check
      _
    $region39: #{fine_tuned_bert_forward.1} parent=1 // pred_check_branch
      %49 = sbr.rel (0) target = $region41
    $region40: #{fine_tuned_bert_forward.1} parent=1 // pred_region
      _
    $region41: #{fine_tuned_bert_forward.1} parent=1 // pred_fallthru
      _
    // Predicated region
    $region42: #{fine_tuned_bert_forward.1} parent=1 // pred_check
      _
    $region43: #{fine_tuned_bert_forward.1} parent=1 // pred_check_branch
      %51 = sbr.rel (0) target = $region45
    $region44: #{fine_tuned_bert_forward.1} parent=1 // pred_region
      _
    $region45: #{fine_tuned_bert_forward.1} parent=1 // pred_fallthru
      _
    // Predicated region
    $region46: #{fine_tuned_bert_forward.1} parent=1 // pred_check
      _
    $region47: #{fine_tuned_bert_forward.1} parent=1 // pred_check_branch
      %53 = sbr.rel (0) target = $region49
    $region48: #{fine_tuned_bert_forward.1} parent=1 // pred_region
      _
    $region49: #{fine_tuned_bert_forward.1} parent=1 // pred_fallthru
      _
    // Predicated region
    $region50: #{fine_tuned_bert_forward.1} parent=1 // pred_check
      _
    $region51: #{fine_tuned_bert_forward.1} parent=1 // pred_check_branch
      %55 = sbr.rel (0) target = $region53
    $region52: #{fine_tuned_bert_forward.1} parent=1 // pred_region
      _
    $region53: #{fine_tuned_bert_forward.1} parent=1 // pred_fallthru
      _
    // Predicated region
    $region54: #{fine_tuned_bert_forward.1} parent=1 // pred_check
      _
    $region55: #{fine_tuned_bert_forward.1} parent=1 // pred_check_branch
      %57 = sbr.rel (0) target = $region57
    $region56: #{fine_tuned_bert_forward.1} parent=1 // pred_region
      _
    $region57: #{fine_tuned_bert_forward.1} parent=1 // pred_fallthru
      _
    // Predicated region
    $region58: #{fine_tuned_bert_forward.1} parent=1 // pred_check
      _
    $region59: #{fine_tuned_bert_forward.1} parent=1 // pred_check_branch
      %59 = sbr.rel (0) target = $region61
    $region60: #{fine_tuned_bert_forward.1} parent=1 // pred_region
      _
    $region61: #{fine_tuned_bert_forward.1} parent=1 // pred_fallthru
      _
    // Predicated region
    $region62: #{fine_tuned_bert_forward.1} parent=1 // pred_check
      _
    $region63: #{fine_tuned_bert_forward.1} parent=1 // pred_check_branch
      %61 = sbr.rel (0) target = $region65
    $region64: #{fine_tuned_bert_forward.1} parent=1 // pred_region
      _
    $region65: #{fine_tuned_bert_forward.1} parent=1 // pred_fallthru
      _
    // Predicated region
    $region66: #{fine_tuned_bert_forward.1} parent=1 // pred_check
      _
    $region67: #{fine_tuned_bert_forward.1} parent=1 // pred_check_branch
      %63 = sbr.rel (0) target = $region69
    $region68: #{fine_tuned_bert_forward.1} parent=1 // pred_region
      _
    $region69: #{fine_tuned_bert_forward.1} parent=1 // pred_fallthru
      _
    // Predicated region
    $region70: #{fine_tuned_bert_forward.1} parent=1 // pred_check
      _
    $region71: #{fine_tuned_bert_forward.1} parent=1 // pred_check_branch
      %65 = sbr.rel (0) target = $region73
    $region72: #{fine_tuned_bert_forward.1} parent=1 // pred_region
      _
    $region73: #{fine_tuned_bert_forward.1} parent=1 // pred_fallthru
      _
    // Predicated region
    $region74: #{fine_tuned_bert_forward.1} parent=1 // pred_check
      _
    $region75: #{fine_tuned_bert_forward.1} parent=1 // pred_check_branch
      %67 = sbr.rel (0) target = $region77
    $region76: #{fine_tuned_bert_forward.1} parent=1 // pred_region
      _
    $region77: #{fine_tuned_bert_forward.1} parent=1 // pred_fallthru
      _
    // Predicated region
    $region78: #{fine_tuned_bert_forward.1} parent=1 // pred_check
      _
    $region79: #{fine_tuned_bert_forward.1} parent=1 // pred_check_branch
      %69 = sbr.rel (0) target = $region81
    $region80: #{fine_tuned_bert_forward.1} parent=1 // pred_region
      _
    $region81: #{fine_tuned_bert_forward.1} parent=1 // pred_fallthru
      _
    %v70 = vld [vmem:[%s1] sm:$0x3]
    %v71 = vsub.f32 1.0, %v70
    %v72 = vmul.f32 %v71, -1e+09
    %v75 = vunpack.c.l.s4 1966171168
    %v76 = vunpack.c.0.s8 %v75
    %v77 = vlaneseq
    %v78 = vshrl.u32 %v77, 7
    %v79 = vsub.s32 %v76, %v78
    %v80 = vrot.slane %v72, %v79
    %v81 = vcombine.high %v80, %v80
    %v83 = vunpack.c.l.s4 1966171168
    %v84 = vunpack.c.0.s8 %v83
    %v85 = vlaneseq
    %v86 = vshrl.u32 %v85, 7
    %v87 = vsub.s32 %v84, %v86
    %v88 = vrot.slane %v80, %v87
    %v90 = vunpack.c.l.s4 1966171168
    %v91 = vunpack.c.0.s8 %v90
    %v92 = vlaneseq
    %v93 = vshrl.u32 %v92, 7
    %v94 = vsub.s32 %v91, %v93
    %v95 = vrot.slane %v81, %v94
    %v96 = vld [vmem:[%s0] sm:$0xff]
    %v97 = vld [vmem:[%s0 + $0x8] sm:$0xff]
    %v98 = vld [vmem:[%s2] sm:$0x1]
    %v99 = vld [vmem:[%s3] sm:$0x1]
    %vm100 = vcmask 261120
    %v101 = vsel %vm100, %v96, 0.0
    %102 = vadd.xlane.f32.xlu0 %v101
    %v103 = vpop.xlane.xlu0 %102
    %v104 = vsel %vm100, %v97, 0.0
    %105 = vadd.xlane.f32.xlu0 %v104
    %v106 = vpop.xlane.xlu0 %105
    %v107 = vrcp.pop 32.0
    %v108 = vmul.f32 %v103, %v107
    %v109 = vmul.f32 %v106, %v107
    %v110 = vsub.f32 %v96, %v108
    %v111 = vsub.f32 %v97, %v109
    %v112 = vmul.f32 %v110, %v110
    %v113 = vmul.f32 %v111, %v111
    %v114 = vsel %vm100, %v112, 0.0
    %115 = vadd.xlane.f32.xlu0 %v114
    %v116 = vpop.xlane.xlu0 %115
    %v117 = vsel %vm100, %v113, 0.0
    %118 = vadd.xlane.f32.xlu0 %v117
    %v119 = vpop.xlane.xlu0 %118
    %v120 = vmul.f32 %v116, %v107
    %v121 = vmul.f32 %v119, %v107
    %v122 = vadd.f32 %v120, 1e-12
    %v123 = vadd.f32 %v121, 1e-12
    %v124 = vrsqrt.pop %v122
    %v125 = vrsqrt.pop %v123
    %v126 = vmul.f32 %v110, %v124
    %v127 = vmul.f32 %v111, %v125
    %v129 = vlaneseq
    %v130 = vshrl.u32 %v129, 7
    %v131 = vsub.s32 0, %v130
    %v132 = vrot.slane %v98, %v131
    %v134 = vmul.f32 %v126, %v132
    %v135 = vmul.f32 %v127, %v132
    %v137 = vlaneseq
    %v138 = vshrl.u32 %v137, 7
    %v139 = vsub.s32 0, %v138
    %v140 = vrot.slane %v99, %v139
    %v142 = vadd.f32 %v134, %v140
    %v143 = vadd.f32 %v135, %v140
    %v144 = vld [vmem:[%s4] sm:$0xff]
    %v145 = vld [vmem:[%s4 + $0x8] sm:$0xff]
    %v146 = vld [vmem:[%s4 + $0x10] sm:$0xff]
    %v147 = vld [vmem:[%s4 + $0x18] sm:$0xff]
    %v148 = vld [vmem:[%s5] sm:$0x1]
    %v150 = vlaneseq
    %v151 = vshrl.u32 %v150, 7
    %v152 = vsub.s32 0, %v151
    %v153 = vrot.slane %v148, %v152
    %v156 = vsel %vm100, %v142, 0
    %v159 = vsel %vm100, %v143, 0
    %161 = vmatprep.subr.mxu0 0.0
    %162 = vmatpush1.msra.mxu0 %v144
    %163 = vmatprep.subr.mxu0 0.0
    %164 = vmatpush1.msra.mxu0 %v145
    %165 = vmatprep.subr.mxu0 0.0
    %166 = vmatpush1.msra.mxu0 %v146
    %167 = vmatprep.subr.mxu0 0.0
    %168 = vmatpush1.msra.mxu0 %v147
    %169 = vmatprep.subr.mxu0 0.0
    %170 = vmatpush1.msra.mxu0 0.0
    %171 = vmatprep.subr.mxu0 0.0
    %172 = vmatpush1.msra.mxu0 0.0
    %173 = vmatprep.subr.mxu0 0.0
    %174 = vmatpush1.msra.mxu0 0.0
    %175 = vmatprep.subr.mxu0 0.0
    %176 = vmatpush1.msra.mxu0 0.0
    %177 = vmatprep.subr.mxu0 0.0
    %178 = vmatpush1.msra.mxu0 0.0
    %179 = vmatprep.subr.mxu0 0.0
    %180 = vmatpush1.msra.mxu0 0.0
    %181 = vmatprep.subr.mxu0 0.0
    %182 = vmatpush1.msra.mxu0 0.0
    %183 = vmatprep.subr.mxu0 0.0
    %184 = vmatpush1.msra.mxu0 0.0
    %185 = vmatprep.subr.mxu0 0.0
    %186 = vmatpush1.msra.mxu0 0.0
    %187 = vmatprep.subr.mxu0 0.0
    %188 = vmatpush1.msra.mxu0 0.0
    %189 = vmatprep.subr.mxu0 0.0
    %190 = vmatpush1.msra.mxu0 0.0
    %191 = vmatprep.subr.mxu0 0.0
    %192 = vmatpush1.msra.mxu0 0.0
    %193 = vmatprep.subr.mxu0 0.0
    %194 = vmatpush1.msra.mxu0 0.0
    %195 = vmatprep.subr.mxu0 0.0
    %196 = vmatpush1.msra.mxu0 0.0
    %197 = vmatprep.subr.mxu0 0.0
    %198 = vmatpush1.msra.mxu0 0.0
    %199 = vmatprep.subr.mxu0 0.0
    %200 = vmatpush1.msra.mxu0 0.0
    %201 = vmatprep.subr.mxu0 0.0
    %202 = vmatpush1.msra.mxu0 0.0
    %203 = vmatprep.subr.mxu0 0.0
    %204 = vmatpush1.msra.mxu0 0.0
    %205 = vmatprep.subr.mxu0 0.0
    %206 = vmatpush1.msra.mxu0 0.0
    %207 = vmatprep.subr.mxu0 0.0
    %208 = vmatpush1.msra.mxu0 0.0
    %209 = vmatprep.subr.mxu0 0.0
    %210 = vmatpush1.msra.mxu0 0.0
    %211 = vmatprep.subr.mxu0 0.0
    %212 = vmatpush1.msra.mxu0 0.0
    %213 = vmatprep.subr.mxu0 0.0
    %214 = vmatpush1.msra.mxu0 0.0
    %215 = vmatprep.subr.mxu0 0.0
    %216 = vmatpush1.msra.mxu0 0.0
    %217 = vmatprep.subr.mxu0 0.0
    %218 = vmatpush1.msra.mxu0 0.0
    %219 = vmatprep.subr.mxu0 0.0
    %220 = vmatpush1.msra.mxu0 0.0
    %221 = vmatprep.subr.mxu0 0.0
    %222 = vmatpush1.msra.mxu0 0.0
    %223 = vmatprep.subr.mxu0 0.0
    %224 = vmatpush1.msra.mxu0 0.0
    %225 = vmatprep.mubr.f32.mxu0 0.0
    %226 = vmatmul.mubr.f32.gmra.mrb[0].mxu0 %v156
    %v227 = vpop.f32.mrb[0].mxu0
    %v228 = vadd.f32 %v153, %v227
    %v229 = vpop.f32.mrb[0].mxu0
    %230 = vmatprep.mubr.f32.mxu0 0.0
    %231 = vmatmul.mubr.f32.gmra.mrb[0].mxu0 %v159
    %v232 = vpop.f32.mrb[0].mxu0
    %v233 = vadd.f32 %v153, %v232
    %v234 = vpop.f32.mrb[0].mxu0
    %235 = vdwg.mxu0
    %237 = vrot.lane.b32.xlu0 %v228, 96
    %v238 = vpop.permute.xlu0 %237
    %vm239 = vcmask 130048
    %v240 = vsel %vm239, %v228, 0
    %v242 = vsel %vm239, %v238, 0
    %244 = vmatprep.subr.mxu0 0.0
    %245 = vmatpush1.xpose.msra.mxu0 %v242
    %246 = vmatprep.subr.mxu0 0.0
    %247 = vmatpush1.xpose.msra.mxu0 0.0
    %248 = vmatprep.subr.mxu0 0.0
    %249 = vmatpush1.xpose.msra.mxu0 0.0
    %250 = vmatprep.subr.mxu0 0.0
    %251 = vmatpush1.xpose.msra.mxu0 0.0
    %252 = vmatprep.subr.mxu0 0.0
    %253 = vmatpush1.xpose.msra.mxu0 0.0
    %254 = vmatprep.subr.mxu0 0.0
    %255 = vmatpush1.xpose.msra.mxu0 0.0
    %256 = vmatprep.subr.mxu0 0.0
    %257 = vmatpush1.xpose.msra.mxu0 0.0
    %258 = vmatprep.subr.mxu0 0.0
    %259 = vmatpush1.xpose.msra.mxu0 0.0
    %260 = vmatprep.subr.mxu0 0.0
    %261 = vmatpush1.xpose.msra.mxu0 0.0
    %262 = vmatprep.subr.mxu0 0.0
    %263 = vmatpush1.xpose.msra.mxu0 0.0
    %264 = vmatprep.subr.mxu0 0.0
    %265 = vmatpush1.xpose.msra.mxu0 0.0
    %266 = vmatprep.subr.mxu0 0.0
    %267 = vmatpush1.xpose.msra.mxu0 0.0
    %268 = vmatprep.subr.mxu0 0.0
    %269 = vmatpush1.xpose.msra.mxu0 0.0
    %270 = vmatprep.subr.mxu0 0.0
    %271 = vmatpush1.xpose.msra.mxu0 0.0
    %272 = vmatprep.subr.mxu0 0.0
    %273 = vmatpush1.xpose.msra.mxu0 0.0
    %274 = vmatprep.subr.mxu0 0.0
    %275 = vmatpush1.xpose.msra.mxu0 0.0
    %276 = vmatprep.subr.mxu0 0.0
    %277 = vmatpush1.xpose.msra.mxu0 0.0
    %278 = vmatprep.subr.mxu0 0.0
    %279 = vmatpush1.xpose.msra.mxu0 0.0
    %280 = vmatprep.subr.mxu0 0.0
    %281 = vmatpush1.xpose.msra.mxu0 0.0
    %282 = vmatprep.subr.mxu0 0.0
    %283 = vmatpush1.xpose.msra.mxu0 0.0
    %284 = vmatprep.subr.mxu0 0.0
    %285 = vmatpush1.xpose.msra.mxu0 0.0
    %286 = vmatprep.subr.mxu0 0.0
    %287 = vmatpush1.xpose.msra.mxu0 0.0
    %288 = vmatprep.subr.mxu0 0.0
    %289 = vmatpush1.xpose.msra.mxu0 0.0
    %290 = vmatprep.subr.mxu0 0.0
    %291 = vmatpush1.xpose.msra.mxu0 0.0
    %292 = vmatprep.subr.mxu0 0.0
    %293 = vmatpush1.xpose.msra.mxu0 0.0
    %294 = vmatprep.subr.mxu0 0.0
    %295 = vmatpush1.xpose.msra.mxu0 0.0
    %296 = vmatprep.subr.mxu0 0.0
    %297 = vmatpush1.xpose.msra.mxu0 0.0
    %298 = vmatprep.subr.mxu0 0.0
    %299 = vmatpush1.xpose.msra.mxu0 0.0
    %300 = vmatprep.subr.mxu0 0.0
    %301 = vmatpush1.xpose.msra.mxu0 0.0
    %302 = vmatprep.subr.mxu0 0.0
    %303 = vmatpush1.xpose.msra.mxu0 0.0
    %304 = vmatprep.subr.mxu0 0.0
    %305 = vmatpush1.xpose.msra.mxu0 0.0
    %306 = vmatprep.subr.mxu0 0.0
    %307 = vmatpush1.xpose.msra.mxu0 0.0
    %308 = vmatprep.mubr.f32.mxu0 0.0
    %309 = vmatmul.mubr.f32.gmra.mrb[0].mxu0 %v240
    %v310 = vpop.f32.mrb[0].mxu0
    %v311 = vadd.f32 0.0, %v310
    %v312 = vpop.f32.mrb[0].mxu0
    %313 = vdwg.mxu0
    %315 = vrot.lane.b32.xlu0 %v233, 96
    %v316 = vpop.permute.xlu0 %315
    %v317 = vsel %vm239, %v233, 0
    %v319 = vsel %vm239, %v316, 0
    %321 = vmatprep.subr.mxu0 0.0
    %322 = vmatpush1.xpose.msra.mxu0 %v319
    %323 = vmatprep.subr.mxu0 0.0
    %324 = vmatpush1.xpose.msra.mxu0 0.0
    %325 = vmatprep.subr.mxu0 0.0
    %326 = vmatpush1.xpose.msra.mxu0 0.0
    %327 = vmatprep.subr.mxu0 0.0
    %328 = vmatpush1.xpose.msra.mxu0 0.0
    %329 = vmatprep.subr.mxu0 0.0
    %330 = vmatpush1.xpose.msra.mxu0 0.0
    %331 = vmatprep.subr.mxu0 0.0
    %332 = vmatpush1.xpose.msra.mxu0 0.0
    %333 = vmatprep.subr.mxu0 0.0
    %334 = vmatpush1.xpose.msra.mxu0 0.0
    %335 = vmatprep.subr.mxu0 0.0
    %336 = vmatpush1.xpose.msra.mxu0 0.0
    %337 = vmatprep.subr.mxu0 0.0
    %338 = vmatpush1.xpose.msra.mxu0 0.0
    %339 = vmatprep.subr.mxu0 0.0
    %340 = vmatpush1.xpose.msra.mxu0 0.0
    %341 = vmatprep.subr.mxu0 0.0
    %342 = vmatpush1.xpose.msra.mxu0 0.0
    %343 = vmatprep.subr.mxu0 0.0
    %344 = vmatpush1.xpose.msra.mxu0 0.0
    %345 = vmatprep.subr.mxu0 0.0
    %346 = vmatpush1.xpose.msra.mxu0 0.0
    %347 = vmatprep.subr.mxu0 0.0
    %348 = vmatpush1.xpose.msra.mxu0 0.0
    %349 = vmatprep.subr.mxu0 0.0
    %350 = vmatpush1.xpose.msra.mxu0 0.0
    %351 = vmatprep.subr.mxu0 0.0
    %352 = vmatpush1.xpose.msra.mxu0 0.0
    %353 = vmatprep.subr.mxu0 0.0
    %354 = vmatpush1.xpose.msra.mxu0 0.0
    %355 = vmatprep.subr.mxu0 0.0
    %356 = vmatpush1.xpose.msra.mxu0 0.0
    %357 = vmatprep.subr.mxu0 0.0
    %358 = vmatpush1.xpose.msra.mxu0 0.0
    %359 = vmatprep.subr.mxu0 0.0
    %360 = vmatpush1.xpose.msra.mxu0 0.0
    %361 = vmatprep.subr.mxu0 0.0
    %362 = vmatpush1.xpose.msra.mxu0 0.0
    %363 = vmatprep.subr.mxu0 0.0
    %364 = vmatpush1.xpose.msra.mxu0 0.0
    %365 = vmatprep.subr.mxu0 0.0
    %366 = vmatpush1.xpose.msra.mxu0 0.0
    %367 = vmatprep.subr.mxu0 0.0
    %368 = vmatpush1.xpose.msra.mxu0 0.0
    %369 = vmatprep.subr.mxu0 0.0
    %370 = vmatpush1.xpose.msra.mxu0 0.0
    %371 = vmatprep.subr.mxu0 0.0
    %372 = vmatpush1.xpose.msra.mxu0 0.0
    %373 = vmatprep.subr.mxu0 0.0
    %374 = vmatpush1.xpose.msra.mxu0 0.0
    %375 = vmatprep.subr.mxu0 0.0
    %376 = vmatpush1.xpose.msra.mxu0 0.0
    %377 = vmatprep.subr.mxu0 0.0
    %378 = vmatpush1.xpose.msra.mxu0 0.0
    %379 = vmatprep.subr.mxu0 0.0
    %380 = vmatpush1.xpose.msra.mxu0 0.0
    %381 = vmatprep.subr.mxu0 0.0
    %382 = vmatpush1.xpose.msra.mxu0 0.0
    %383 = vmatprep.subr.mxu0 0.0
    %384 = vmatpush1.xpose.msra.mxu0 0.0
    %385 = vmatprep.mubr.f32.mxu0 0.0
    %386 = vmatmul.mubr.f32.gmra.mrb[0].mxu0 %v317
    %v387 = vpop.f32.mrb[0].mxu0
    %v388 = vadd.f32 0.0, %v387
    %v389 = vpop.f32.mrb[0].mxu0
    %390 = vdwg.mxu0
    %v391 = vmul.f32 %v311, 0.25
    %v392 = vmul.f32 %v388, 0.25
    %v393 = vlaneseq
    %v394 = vshrl.u32 %v393, 7
    %v395 = vsub.s32 0, %v394
    %v396 = vrot.slane %v88, %v395
    %v397 = vlaneseq
    %v398 = vshrl.u32 %v397, 7
    %v399 = vsub.s32 0, %v398
    %v400 = vrot.slane %v95, %v399
    %v403 = vadd.f32 %v391, %v396
    %v404 = vadd.f32 %v392, %v400
    %vm405 = vcmask 64512
    %v406 = vsel %vm405, %v403, -inf
    %407 = vmax.xlane.f32.xlu0 %v406
    %v408 = vpop.xlane.xlu0 %407
    %v409 = vsel %vm405, %v404, -inf
    %410 = vmax.xlane.f32.xlu0 %v409
    %v411 = vpop.xlane.xlu0 %410
    %v412 = vsub.f32 %v403, %v408
    %v413 = vsub.f32 %v404, %v411
    %v414 = vmul.f32 %v412, 1.442695
    %v415 = vpow.pop %v414
    %v416 = vmul.f32 %v413, 1.442695
    %v417 = vpow.pop %v416
    %v418 = vsel %vm405, %v415, 0.0
    %419 = vadd.xlane.f32.xlu0 %v418
    %v420 = vpop.xlane.xlu0 %419
    %v421 = vsel %vm405, %v417, 0.0
    %422 = vadd.xlane.f32.xlu0 %v421
    %v423 = vpop.xlane.xlu0 %422
    %v424 = vrcp.pop %v420
    %v425 = vrcp.pop %v423
    %v426 = vmul.f32 %v415, %v424
    %v427 = vmul.f32 %v417, %v425
    %428 = vrot.lane.b32.xlu0 %v228, 64
    %v429 = vpop.permute.xlu0 %428
    %v432 = vsel %vm405, %v426, 0
    %434 = vmatprep.subr.mxu0 0.0
    %435 = vmatpush1.msra.mxu0 %v429
    %436 = vmatprep.subr.mxu0 0.0
    %437 = vmatpush1.msra.mxu0 0.0
    %438 = vmatprep.subr.mxu0 0.0
    %439 = vmatpush1.msra.mxu0 0.0
    %440 = vmatprep.subr.mxu0 0.0
    %441 = vmatpush1.msra.mxu0 0.0
    %442 = vmatprep.subr.mxu0 0.0
    %443 = vmatpush1.msra.mxu0 0.0
    %444 = vmatprep.subr.mxu0 0.0
    %445 = vmatpush1.msra.mxu0 0.0
    %446 = vmatprep.subr.mxu0 0.0
    %447 = vmatpush1.msra.mxu0 0.0
    %448 = vmatprep.subr.mxu0 0.0
    %449 = vmatpush1.msra.mxu0 0.0
    %450 = vmatprep.subr.mxu0 0.0
    %451 = vmatpush1.msra.mxu0 0.0
    %452 = vmatprep.subr.mxu0 0.0
    %453 = vmatpush1.msra.mxu0 0.0
    %454 = vmatprep.subr.mxu0 0.0
    %455 = vmatpush1.msra.mxu0 0.0
    %456 = vmatprep.subr.mxu0 0.0
    %457 = vmatpush1.msra.mxu0 0.0
    %458 = vmatprep.subr.mxu0 0.0
    %459 = vmatpush1.msra.mxu0 0.0
    %460 = vmatprep.subr.mxu0 0.0
    %461 = vmatpush1.msra.mxu0 0.0
    %462 = vmatprep.subr.mxu0 0.0
    %463 = vmatpush1.msra.mxu0 0.0
    %464 = vmatprep.subr.mxu0 0.0
    %465 = vmatpush1.msra.mxu0 0.0
    %466 = vmatprep.subr.mxu0 0.0
    %467 = vmatpush1.msra.mxu0 0.0
    %468 = vmatprep.subr.mxu0 0.0
    %469 = vmatpush1.msra.mxu0 0.0
    %470 = vmatprep.subr.mxu0 0.0
    %471 = vmatpush1.msra.mxu0 0.0
    %472 = vmatprep.subr.mxu0 0.0
    %473 = vmatpush1.msra.mxu0 0.0
    %474 = vmatprep.subr.mxu0 0.0
    %475 = vmatpush1.msra.mxu0 0.0
    %476 = vmatprep.subr.mxu0 0.0
    %477 = vmatpush1.msra.mxu0 0.0
    %478 = vmatprep.subr.mxu0 0.0
    %479 = vmatpush1.msra.mxu0 0.0
    %480 = vmatprep.subr.mxu0 0.0
    %481 = vmatpush1.msra.mxu0 0.0
    %482 = vmatprep.subr.mxu0 0.0
    %483 = vmatpush1.msra.mxu0 0.0
    %484 = vmatprep.subr.mxu0 0.0
    %485 = vmatpush1.msra.mxu0 0.0
    %486 = vmatprep.subr.mxu0 0.0
    %487 = vmatpush1.msra.mxu0 0.0
    %488 = vmatprep.subr.mxu0 0.0
    %489 = vmatpush1.msra.mxu0 0.0
    %490 = vmatprep.subr.mxu0 0.0
    %491 = vmatpush1.msra.mxu0 0.0
    %492 = vmatprep.subr.mxu0 0.0
    %493 = vmatpush1.msra.mxu0 0.0
    %494 = vmatprep.subr.mxu0 0.0
    %495 = vmatpush1.msra.mxu0 0.0
    %496 = vmatprep.subr.mxu0 0.0
    %497 = vmatpush1.msra.mxu0 0.0
    %498 = vmatprep.mubr.f32.mxu0 0.0
    %499 = vmatmul.mubr.f32.gmra.mrb[0].mxu0 %v432
    %v500 = vpop.f32.mrb[0].mxu0
    %v501 = vadd.f32 0.0, %v500
    %v502 = vpop.f32.mrb[0].mxu0
    %503 = vdwg.mxu0
    %504 = vrot.lane.b32.xlu0 %v233, 64
    %v505 = vpop.permute.xlu0 %504
    %v508 = vsel %vm405, %v427, 0
    %510 = vmatprep.subr.mxu0 0.0
    %511 = vmatpush1.msra.mxu0 %v505
    %512 = vmatprep.subr.mxu0 0.0
    %513 = vmatpush1.msra.mxu0 0.0
    %514 = vmatprep.subr.mxu0 0.0
    %515 = vmatpush1.msra.mxu0 0.0
    %516 = vmatprep.subr.mxu0 0.0
    %517 = vmatpush1.msra.mxu0 0.0
    %518 = vmatprep.subr.mxu0 0.0
    %519 = vmatpush1.msra.mxu0 0.0
    %520 = vmatprep.subr.mxu0 0.0
    %521 = vmatpush1.msra.mxu0 0.0
    %522 = vmatprep.subr.mxu0 0.0
    %523 = vmatpush1.msra.mxu0 0.0
    %524 = vmatprep.subr.mxu0 0.0
    %525 = vmatpush1.msra.mxu0 0.0
    %526 = vmatprep.subr.mxu0 0.0
    %527 = vmatpush1.msra.mxu0 0.0
    %528 = vmatprep.subr.mxu0 0.0
    %529 = vmatpush1.msra.mxu0 0.0
    %530 = vmatprep.subr.mxu0 0.0
    %531 = vmatpush1.msra.mxu0 0.0
    %532 = vmatprep.subr.mxu0 0.0
    %533 = vmatpush1.msra.mxu0 0.0
    %534 = vmatprep.subr.mxu0 0.0
    %535 = vmatpush1.msra.mxu0 0.0
    %536 = vmatprep.subr.mxu0 0.0
    %537 = vmatpush1.msra.mxu0 0.0
    %538 = vmatprep.subr.mxu0 0.0
    %539 = vmatpush1.msra.mxu0 0.0
    %540 = vmatprep.subr.mxu0 0.0
    %541 = vmatpush1.msra.mxu0 0.0
    %542 = vmatprep.subr.mxu0 0.0
    %543 = vmatpush1.msra.mxu0 0.0
    %544 = vmatprep.subr.mxu0 0.0
    %545 = vmatpush1.msra.mxu0 0.0
    %546 = vmatprep.subr.mxu0 0.0
    %547 = vmatpush1.msra.mxu0 0.0
    %548 = vmatprep.subr.mxu0 0.0
    %549 = vmatpush1.msra.mxu0 0.0
    %550 = vmatprep.subr.mxu0 0.0
    %551 = vmatpush1.msra.mxu0 0.0
    %552 = vmatprep.subr.mxu0 0.0
    %553 = vmatpush1.msra.mxu0 0.0
    %554 = vmatprep.subr.mxu0 0.0
    %555 = vmatpush1.msra.mxu0 0.0
    %556 = vmatprep.subr.mxu0 0.0
    %557 = vmatpush1.msra.mxu0 0.0
    %558 = vmatprep.subr.mxu0 0.0
    %559 = vmatpush1.msra.mxu0 0.0
    %560 = vmatprep.subr.mxu0 0.0
    %561 = vmatpush1.msra.mxu0 0.0
    %562 = vmatprep.subr.mxu0 0.0
    %563 = vmatpush1.msra.mxu0 0.0
    %564 = vmatprep.subr.mxu0 0.0
    %565 = vmatpush1.msra.mxu0 0.0
    %566 = vmatprep.subr.mxu0 0.0
    %567 = vmatpush1.msra.mxu0 0.0
    %568 = vmatprep.subr.mxu0 0.0
    %569 = vmatpush1.msra.mxu0 0.0
    %570 = vmatprep.subr.mxu0 0.0
    %571 = vmatpush1.msra.mxu0 0.0
    %572 = vmatprep.subr.mxu0 0.0
    %573 = vmatpush1.msra.mxu0 0.0
    %574 = vmatprep.mubr.f32.mxu0 0.0
    %575 = vmatmul.mubr.f32.gmra.mrb[0].mxu0 %v508
    %v576 = vpop.f32.mrb[0].mxu0
    %v577 = vadd.f32 0.0, %v576
    %v578 = vpop.f32.mrb[0].mxu0
    %579 = vdwg.mxu0
    %580 = vrot.lane.b32.xlu0 %v228, 112
    %v581 = vpop.permute.xlu0 %580
    %582 = vrot.lane.b32.xlu0 %v228, 80
    %v583 = vpop.permute.xlu0 %582
    %v584 = vsel %vm239, %v581, 0
    %v586 = vsel %vm239, %v583, 0
    %588 = vmatprep.subr.mxu0 0.0
    %589 = vmatpush1.xpose.msra.mxu0 %v586
    %590 = vmatprep.subr.mxu0 0.0
    %591 = vmatpush1.xpose.msra.mxu0 0.0
    %592 = vmatprep.subr.mxu0 0.0
    %593 = vmatpush1.xpose.msra.mxu0 0.0
    %594 = vmatprep.subr.mxu0 0.0
    %595 = vmatpush1.xpose.msra.mxu0 0.0
    %596 = vmatprep.subr.mxu0 0.0
    %597 = vmatpush1.xpose.msra.mxu0 0.0
    %598 = vmatprep.subr.mxu0 0.0
    %599 = vmatpush1.xpose.msra.mxu0 0.0
    %600 = vmatprep.subr.mxu0 0.0
    %601 = vmatpush1.xpose.msra.mxu0 0.0
    %602 = vmatprep.subr.mxu0 0.0
    %603 = vmatpush1.xpose.msra.mxu0 0.0
    %604 = vmatprep.subr.mxu0 0.0
    %605 = vmatpush1.xpose.msra.mxu0 0.0
    %606 = vmatprep.subr.mxu0 0.0
    %607 = vmatpush1.xpose.msra.mxu0 0.0
    %608 = vmatprep.subr.mxu0 0.0
    %609 = vmatpush1.xpose.msra.mxu0 0.0
    %610 = vmatprep.subr.mxu0 0.0
    %611 = vmatpush1.xpose.msra.mxu0 0.0
    %612 = vmatprep.subr.mxu0 0.0
    %613 = vmatpush1.xpose.msra.mxu0 0.0
    %614 = vmatprep.subr.mxu0 0.0
    %615 = vmatpush1.xpose.msra.mxu0 0.0
    %616 = vmatprep.subr.mxu0 0.0
    %617 = vmatpush1.xpose.msra.mxu0 0.0
    %618 = vmatprep.subr.mxu0 0.0
    %619 = vmatpush1.xpose.msra.mxu0 0.0
    %620 = vmatprep.subr.mxu0 0.0
    %621 = vmatpush1.xpose.msra.mxu0 0.0
    %622 = vmatprep.subr.mxu0 0.0
    %623 = vmatpush1.xpose.msra.mxu0 0.0
    %624 = vmatprep.subr.mxu0 0.0
    %625 = vmatpush1.xpose.msra.mxu0 0.0
    %626 = vmatprep.subr.mxu0 0.0
    %627 = vmatpush1.xpose.msra.mxu0 0.0
    %628 = vmatprep.subr.mxu0 0.0
    %629 = vmatpush1.xpose.msra.mxu0 0.0
    %630 = vmatprep.subr.mxu0 0.0
    %631 = vmatpush1.xpose.msra.mxu0 0.0
    %632 = vmatprep.subr.mxu0 0.0
    %633 = vmatpush1.xpose.msra.mxu0 0.0
    %634 = vmatprep.subr.mxu0 0.0
    %635 = vmatpush1.xpose.msra.mxu0 0.0
    %636 = vmatprep.subr.mxu0 0.0
    %637 = vmatpush1.xpose.msra.mxu0 0.0
    %638 = vmatprep.subr.mxu0 0.0
    %639 = vmatpush1.xpose.msra.mxu0 0.0
    %640 = vmatprep.subr.mxu0 0.0
    %641 = vmatpush1.xpose.msra.mxu0 0.0
    %642 = vmatprep.subr.mxu0 0.0
    %643 = vmatpush1.xpose.msra.mxu0 0.0
    %644 = vmatprep.subr.mxu0 0.0
    %645 = vmatpush1.xpose.msra.mxu0 0.0
    %646 = vmatprep.subr.mxu0 0.0
    %647 = vmatpush1.xpose.msra.mxu0 0.0
    %648 = vmatprep.subr.mxu0 0.0
    %649 = vmatpush1.xpose.msra.mxu0 0.0
    %650 = vmatprep.subr.mxu0 0.0
    %651 = vmatpush1.xpose.msra.mxu0 0.0
    %652 = vmatprep.mubr.f32.mxu0 0.0
    %653 = vmatmul.mubr.f32.gmra.mrb[0].mxu0 %v584
    %v654 = vpop.f32.mrb[0].mxu0
    %v655 = vadd.f32 0.0, %v654
    %v656 = vpop.f32.mrb[0].mxu0
    %657 = vdwg.mxu0
    %658 = vrot.lane.b32.xlu0 %v233, 112
    %v659 = vpop.permute.xlu0 %658
    %660 = vrot.lane.b32.xlu0 %v233, 80
    %v661 = vpop.permute.xlu0 %660
    %v662 = vsel %vm239, %v659, 0
    %v664 = vsel %vm239, %v661, 0
    %666 = vmatprep.subr.mxu0 0.0
    %667 = vmatpush1.xpose.msra.mxu0 %v664
    %668 = vmatprep.subr.mxu0 0.0
    %669 = vmatpush1.xpose.msra.mxu0 0.0
    %670 = vmatprep.subr.mxu0 0.0
    %671 = vmatpush1.xpose.msra.mxu0 0.0
    %672 = vmatprep.subr.mxu0 0.0
    %673 = vmatpush1.xpose.msra.mxu0 0.0
    %674 = vmatprep.subr.mxu0 0.0
    %675 = vmatpush1.xpose.msra.mxu0 0.0
    %676 = vmatprep.subr.mxu0 0.0
    %677 = vmatpush1.xpose.msra.mxu0 0.0
    %678 = vmatprep.subr.mxu0 0.0
    %679 = vmatpush1.xpose.msra.mxu0 0.0
    %680 = vmatprep.subr.mxu0 0.0
    %681 = vmatpush1.xpose.msra.mxu0 0.0
    %682 = vmatprep.subr.mxu0 0.0
    %683 = vmatpush1.xpose.msra.mxu0 0.0
    %684 = vmatprep.subr.mxu0 0.0
    %685 = vmatpush1.xpose.msra.mxu0 0.0
    %686 = vmatprep.subr.mxu0 0.0
    %687 = vmatpush1.xpose.msra.mxu0 0.0
    %688 = vmatprep.subr.mxu0 0.0
    %689 = vmatpush1.xpose.msra.mxu0 0.0
    %690 = vmatprep.subr.mxu0 0.0
    %691 = vmatpush1.xpose.msra.mxu0 0.0
    %692 = vmatprep.subr.mxu0 0.0
    %693 = vmatpush1.xpose.msra.mxu0 0.0
    %694 = vmatprep.subr.mxu0 0.0
    %695 = vmatpush1.xpose.msra.mxu0 0.0
    %696 = vmatprep.subr.mxu0 0.0
    %697 = vmatpush1.xpose.msra.mxu0 0.0
    %698 = vmatprep.subr.mxu0 0.0
    %699 = vmatpush1.xpose.msra.mxu0 0.0
    %700 = vmatprep.subr.mxu0 0.0
    %701 = vmatpush1.xpose.msra.mxu0 0.0
    %702 = vmatprep.subr.mxu0 0.0
    %703 = vmatpush1.xpose.msra.mxu0 0.0
    %704 = vmatprep.subr.mxu0 0.0
    %705 = vmatpush1.xpose.msra.mxu0 0.0
    %706 = vmatprep.subr.mxu0 0.0
    %707 = vmatpush1.xpose.msra.mxu0 0.0
    %708 = vmatprep.subr.mxu0 0.0
    %709 = vmatpush1.xpose.msra.mxu0 0.0
    %710 = vmatprep.subr.mxu0 0.0
    %711 = vmatpush1.xpose.msra.mxu0 0.0
    %712 = vmatprep.subr.mxu0 0.0
    %713 = vmatpush1.xpose.msra.mxu0 0.0
    %714 = vmatprep.subr.mxu0 0.0
    %715 = vmatpush1.xpose.msra.mxu0 0.0
    %716 = vmatprep.subr.mxu0 0.0
    %717 = vmatpush1.xpose.msra.mxu0 0.0
    %718 = vmatprep.subr.mxu0 0.0
    %719 = vmatpush1.xpose.msra.mxu0 0.0
    %720 = vmatprep.subr.mxu0 0.0
    %721 = vmatpush1.xpose.msra.mxu0 0.0
    %722 = vmatprep.subr.mxu0 0.0
    %723 = vmatpush1.xpose.msra.mxu0 0.0
    %724 = vmatprep.subr.mxu0 0.0
    %725 = vmatpush1.xpose.msra.mxu0 0.0
    %726 = vmatprep.subr.mxu0 0.0
    %727 = vmatpush1.xpose.msra.mxu0 0.0
    %728 = vmatprep.subr.mxu0 0.0
    %729 = vmatpush1.xpose.msra.mxu0 0.0
    %730 = vmatprep.mubr.f32.mxu0 0.0
    %731 = vmatmul.mubr.f32.gmra.mrb[0].mxu0 %v662
    %v732 = vpop.f32.mrb[0].mxu0
    %v733 = vadd.f32 0.0, %v732
    %v734 = vpop.f32.mrb[0].mxu0
    %735 = vdwg.mxu0
    %v736 = vmul.f32 %v655, 0.25
    %v737 = vmul.f32 %v733, 0.25
    %v738 = vadd.f32 %v736, %v396
    %v739 = vadd.f32 %v737, %v400
    %v740 = vsel %vm405, %v738, -inf
    %741 = vmax.xlane.f32.xlu0 %v740
    %v742 = vpop.xlane.xlu0 %741
    %v743 = vsel %vm405, %v739, -inf
    %744 = vmax.xlane.f32.xlu0 %v743
    %v745 = vpop.xlane.xlu0 %744
    %v746 = vsub.f32 %v738, %v742
    %v747 = vsub.f32 %v739, %v745
    %v748 = vmul.f32 %v746, 1.442695
    %v749 = vpow.pop %v748
    %v750 = vmul.f32 %v747, 1.442695
    %v751 = vpow.pop %v750
    %v752 = vsel %vm405, %v749, 0.0
    %753 = vadd.xlane.f32.xlu0 %v752
    %v754 = vpop.xlane.xlu0 %753
    %v755 = vsel %vm405, %v751, 0.0
    %756 = vadd.xlane.f32.xlu0 %v755
    %v757 = vpop.xlane.xlu0 %756
    %v758 = vrcp.pop %v754
    %v759 = vrcp.pop %v757
    %v760 = vmul.f32 %v749, %v758
    %v761 = vmul.f32 %v751, %v759
    %762 = vrot.lane.b32.xlu0 %v228, 48
    %v763 = vpop.permute.xlu0 %762
    %v766 = vsel %vm405, %v760, 0
    %768 = vmatprep.subr.mxu0 0.0
    %769 = vmatpush1.msra.mxu0 %v763
    %770 = vmatprep.subr.mxu0 0.0
    %771 = vmatpush1.msra.mxu0 0.0
    %772 = vmatprep.subr.mxu0 0.0
    %773 = vmatpush1.msra.mxu0 0.0
    %774 = vmatprep.subr.mxu0 0.0
    %775 = vmatpush1.msra.mxu0 0.0
    %776 = vmatprep.subr.mxu0 0.0
    %777 = vmatpush1.msra.mxu0 0.0
    %778 = vmatprep.subr.mxu0 0.0
    %779 = vmatpush1.msra.mxu0 0.0
    %780 = vmatprep.subr.mxu0 0.0
    %781 = vmatpush1.msra.mxu0 0.0
    %782 = vmatprep.subr.mxu0 0.0
    %783 = vmatpush1.msra.mxu0 0.0
    %784 = vmatprep.subr.mxu0 0.0
    %785 = vmatpush1.msra.mxu0 0.0
    %786 = vmatprep.subr.mxu0 0.0
    %787 = vmatpush1.msra.mxu0 0.0
    %788 = vmatprep.subr.mxu0 0.0
    %789 = vmatpush1.msra.mxu0 0.0
    %790 = vmatprep.subr.mxu0 0.0
    %791 = vmatpush1.msra.mxu0 0.0
    %792 = vmatprep.subr.mxu0 0.0
    %793 = vmatpush1.msra.mxu0 0.0
    %794 = vmatprep.subr.mxu0 0.0
    %795 = vmatpush1.msra.mxu0 0.0
    %796 = vmatprep.subr.mxu0 0.0
    %797 = vmatpush1.msra.mxu0 0.0
    %798 = vmatprep.subr.mxu0 0.0
    %799 = vmatpush1.msra.mxu0 0.0
    %800 = vmatprep.subr.mxu0 0.0
    %801 = vmatpush1.msra.mxu0 0.0
    %802 = vmatprep.subr.mxu0 0.0
    %803 = vmatpush1.msra.mxu0 0.0
    %804 = vmatprep.subr.mxu0 0.0
    %805 = vmatpush1.msra.mxu0 0.0
    %806 = vmatprep.subr.mxu0 0.0
    %807 = vmatpush1.msra.mxu0 0.0
    %808 = vmatprep.subr.mxu0 0.0
    %809 = vmatpush1.msra.mxu0 0.0
    %810 = vmatprep.subr.mxu0 0.0
    %811 = vmatpush1.msra.mxu0 0.0
    %812 = vmatprep.subr.mxu0 0.0
    %813 = vmatpush1.msra.mxu0 0.0
    %814 = vmatprep.subr.mxu0 0.0
    %815 = vmatpush1.msra.mxu0 0.0
    %816 = vmatprep.subr.mxu0 0.0
    %817 = vmatpush1.msra.mxu0 0.0
    %818 = vmatprep.subr.mxu0 0.0
    %819 = vmatpush1.msra.mxu0 0.0
    %820 = vmatprep.subr.mxu0 0.0
    %821 = vmatpush1.msra.mxu0 0.0
    %822 = vmatprep.subr.mxu0 0.0
    %823 = vmatpush1.msra.mxu0 0.0
    %824 = vmatprep.subr.mxu0 0.0
    %825 = vmatpush1.msra.mxu0 0.0
    %826 = vmatprep.subr.mxu0 0.0
    %827 = vmatpush1.msra.mxu0 0.0
    %828 = vmatprep.subr.mxu0 0.0
    %829 = vmatpush1.msra.mxu0 0.0
    %830 = vmatprep.subr.mxu0 0.0
    %831 = vmatpush1.msra.mxu0 0.0
    %832 = vmatprep.mubr.f32.mxu0 0.0
    %833 = vmatmul.mubr.f32.gmra.mrb[0].mxu0 %v766
    %v834 = vpop.f32.mrb[0].mxu0
    %v835 = vadd.f32 0.0, %v834
    %v836 = vpop.f32.mrb[0].mxu0
    %837 = vdwg.mxu0
    %838 = vrot.lane.b32.xlu0 %v233, 48
    %v839 = vpop.permute.xlu0 %838
    %v842 = vsel %vm405, %v761, 0
    %844 = vmatprep.subr.mxu0 0.0
    %845 = vmatpush1.msra.mxu0 %v839
    %846 = vmatprep.subr.mxu0 0.0
    %847 = vmatpush1.msra.mxu0 0.0
    %848 = vmatprep.subr.mxu0 0.0
    %849 = vmatpush1.msra.mxu0 0.0
    %850 = vmatprep.subr.mxu0 0.0
    %851 = vmatpush1.msra.mxu0 0.0
    %852 = vmatprep.subr.mxu0 0.0
    %853 = vmatpush1.msra.mxu0 0.0
    %854 = vmatprep.subr.mxu0 0.0
    %855 = vmatpush1.msra.mxu0 0.0
    %856 = vmatprep.subr.mxu0 0.0
    %857 = vmatpush1.msra.mxu0 0.0
    %858 = vmatprep.subr.mxu0 0.0
    %859 = vmatpush1.msra.mxu0 0.0
    %860 = vmatprep.subr.mxu0 0.0
    %861 = vmatpush1.msra.mxu0 0.0
    %862 = vmatprep.subr.mxu0 0.0
    %863 = vmatpush1.msra.mxu0 0.0
    %864 = vmatprep.subr.mxu0 0.0
    %865 = vmatpush1.msra.mxu0 0.0
    %866 = vmatprep.subr.mxu0 0.0
    %867 = vmatpush1.msra.mxu0 0.0
    %868 = vmatprep.subr.mxu0 0.0
    %869 = vmatpush1.msra.mxu0 0.0
    %870 = vmatprep.subr.mxu0 0.0
    %871 = vmatpush1.msra.mxu0 0.0
    %872 = vmatprep.subr.mxu0 0.0
    %873 = vmatpush1.msra.mxu0 0.0
    %874 = vmatprep.subr.mxu0 0.0
    %875 = vmatpush1.msra.mxu0 0.0
    %876 = vmatprep.subr.mxu0 0.0
    %877 = vmatpush1.msra.mxu0 0.0
    %878 = vmatprep.subr.mxu0 0.0
    %879 = vmatpush1.msra.mxu0 0.0
    %880 = vmatprep.subr.mxu0 0.0
    %881 = vmatpush1.msra.mxu0 0.0
    %882 = vmatprep.subr.mxu0 0.0
    %883 = vmatpush1.msra.mxu0 0.0
    %884 = vmatprep.subr.mxu0 0.0
    %885 = vmatpush1.msra.mxu0 0.0
    %886 = vmatprep.subr.mxu0 0.0
    %887 = vmatpush1.msra.mxu0 0.0
    %888 = vmatprep.subr.mxu0 0.0
    %889 = vmatpush1.msra.mxu0 0.0
    %890 = vmatprep.subr.mxu0 0.0
    %891 = vmatpush1.msra.mxu0 0.0
    %892 = vmatprep.subr.mxu0 0.0
    %893 = vmatpush1.msra.mxu0 0.0
    %894 = vmatprep.subr.mxu0 0.0
    %895 = vmatpush1.msra.mxu0 0.0
    %896 = vmatprep.subr.mxu0 0.0
    %897 = vmatpush1.msra.mxu0 0.0
    %898 = vmatprep.subr.mxu0 0.0
    %899 = vmatpush1.msra.mxu0 0.0
    %900 = vmatprep.subr.mxu0 0.0
    %901 = vmatpush1.msra.mxu0 0.0
    %902 = vmatprep.subr.mxu0 0.0
    %903 = vmatpush1.msra.mxu0 0.0
    %904 = vmatprep.subr.mxu0 0.0
    %905 = vmatpush1.msra.mxu0 0.0
    %906 = vmatprep.subr.mxu0 0.0
    %907 = vmatpush1.msra.mxu0 0.0
    %908 = vmatprep.mubr.f32.mxu0 0.0
    %909 = vmatmul.mubr.f32.gmra.mrb[0].mxu0 %v842
    %v910 = vpop.f32.mrb[0].mxu0
    %v911 = vadd.f32 0.0, %v910
    %v912 = vpop.f32.mrb[0].mxu0
    %913 = vdwg.mxu0
    %916 = vrot.lane.b32.xlu0 %v835, 16
    %v917 = vpop.permute.xlu0 %916
    %918 = vrot.lane.b32.xlu0 %v911, 16
    %v919 = vpop.permute.xlu0 %918
    %v922 = vsel %vm239, %v501, %v917
    %v923 = vsel %vm239, %v577, %v919
    %v924 = vld [vmem:[%s6] sm:$0xff]
    %v925 = vld [vmem:[%s6 + $0x8] sm:$0xff]
    %v926 = vld [vmem:[%s6 + $0x10] sm:$0xff]
    %v927 = vld [vmem:[%s6 + $0x18] sm:$0xff]
    %v928 = vld [vmem:[%s7] sm:$0x1]
    %v930 = vlaneseq
    %v931 = vshrl.u32 %v930, 7
    %v932 = vsub.s32 0, %v931
    %v933 = vrot.slane %v928, %v932
    %v936 = vsel %vm100, %v922, 0
    %v939 = vsel %vm100, %v923, 0
    %941 = vmatprep.subr.mxu0 0.0
    %942 = vmatpush1.msra.mxu0 %v924
    %943 = vmatprep.subr.mxu0 0.0
    %944 = vmatpush1.msra.mxu0 %v925
    %945 = vmatprep.subr.mxu0 0.0
    %946 = vmatpush1.msra.mxu0 %v926
    %947 = vmatprep.subr.mxu0 0.0
    %948 = vmatpush1.msra.mxu0 %v927
    %949 = vmatprep.subr.mxu0 0.0
    %950 = vmatpush1.msra.mxu0 0.0
    %951 = vmatprep.subr.mxu0 0.0
    %952 = vmatpush1.msra.mxu0 0.0
    %953 = vmatprep.subr.mxu0 0.0
    %954 = vmatpush1.msra.mxu0 0.0
    %955 = vmatprep.subr.mxu0 0.0
    %956 = vmatpush1.msra.mxu0 0.0
    %957 = vmatprep.subr.mxu0 0.0
    %958 = vmatpush1.msra.mxu0 0.0
    %959 = vmatprep.subr.mxu0 0.0
    %960 = vmatpush1.msra.mxu0 0.0
    %961 = vmatprep.subr.mxu0 0.0
    %962 = vmatpush1.msra.mxu0 0.0
    %963 = vmatprep.subr.mxu0 0.0
    %964 = vmatpush1.msra.mxu0 0.0
    %965 = vmatprep.subr.mxu0 0.0
    %966 = vmatpush1.msra.mxu0 0.0
    %967 = vmatprep.subr.mxu0 0.0
    %968 = vmatpush1.msra.mxu0 0.0
    %969 = vmatprep.subr.mxu0 0.0
    %970 = vmatpush1.msra.mxu0 0.0
    %971 = vmatprep.subr.mxu0 0.0
    %972 = vmatpush1.msra.mxu0 0.0
    %973 = vmatprep.subr.mxu0 0.0
    %974 = vmatpush1.msra.mxu0 0.0
    %975 = vmatprep.subr.mxu0 0.0
    %976 = vmatpush1.msra.mxu0 0.0
    %977 = vmatprep.subr.mxu0 0.0
    %978 = vmatpush1.msra.mxu0 0.0
    %979 = vmatprep.subr.mxu0 0.0
    %980 = vmatpush1.msra.mxu0 0.0
    %981 = vmatprep.subr.mxu0 0.0
    %982 = vmatpush1.msra.mxu0 0.0
    %983 = vmatprep.subr.mxu0 0.0
    %984 = vmatpush1.msra.mxu0 0.0
    %985 = vmatprep.subr.mxu0 0.0
    %986 = vmatpush1.msra.mxu0 0.0
    %987 = vmatprep.subr.mxu0 0.0
    %988 = vmatpush1.msra.mxu0 0.0
    %989 = vmatprep.subr.mxu0 0.0
    %990 = vmatpush1.msra.mxu0 0.0
    %991 = vmatprep.subr.mxu0 0.0
    %992 = vmatpush1.msra.mxu0 0.0
    %993 = vmatprep.subr.mxu0 0.0
    %994 = vmatpush1.msra.mxu0 0.0
    %995 = vmatprep.subr.mxu0 0.0
    %996 = vmatpush1.msra.mxu0 0.0
    %997 = vmatprep.subr.mxu0 0.0
    %998 = vmatpush1.msra.mxu0 0.0
    %999 = vmatprep.subr.mxu0 0.0
    %1000 = vmatpush1.msra.mxu0 0.0
    %1001 = vmatprep.subr.mxu0 0.0
    %1002 = vmatpush1.msra.mxu0 0.0
    %1003 = vmatprep.subr.mxu0 0.0
    %1004 = vmatpush1.msra.mxu0 0.0
    %1005 = vmatprep.mubr.f32.mxu0 0.0
    %1006 = vmatmul.mubr.f32.gmra.mrb[0].mxu0 %v936
    %v1007 = vpop.f32.mrb[0].mxu0
    %v1008 = vadd.f32 %v933, %v1007
    %v1009 = vpop.f32.mrb[0].mxu0
    %1010 = vmatprep.mubr.f32.mxu0 0.0
    %1011 = vmatmul.mubr.f32.gmra.mrb[0].mxu0 %v939
    %v1012 = vpop.f32.mrb[0].mxu0
    %v1013 = vadd.f32 %v933, %v1012
    %v1014 = vpop.f32.mrb[0].mxu0
    %1015 = vdwg.mxu0
    %v1016 = vadd.f32 %v142, %v1008
    %v1017 = vadd.f32 %v143, %v1013
    %v1018 = vld [vmem:[%s8] sm:$0x1]
    %v1019 = vld [vmem:[%s9] sm:$0x1]
    %v1020 = vsel %vm100, %v1016, 0.0
    %1021 = vadd.xlane.f32.xlu0 %v1020
    %v1022 = vpop.xlane.xlu0 %1021
    %v1023 = vsel %vm100, %v1017, 0.0
    %1024 = vadd.xlane.f32.xlu0 %v1023
    %v1025 = vpop.xlane.xlu0 %1024
    %v1026 = vmul.f32 %v1022, %v107
    %v1027 = vmul.f32 %v1025, %v107
    %v1028 = vsub.f32 %v1016, %v1026
    %v1029 = vsub.f32 %v1017, %v1027
    %v1030 = vmul.f32 %v1028, %v1028
    %v1031 = vmul.f32 %v1029, %v1029
    %v1032 = vsel %vm100, %v1030, 0.0
    %1033 = vadd.xlane.f32.xlu0 %v1032
    %v1034 = vpop.xlane.xlu0 %1033
    %v1035 = vsel %vm100, %v1031, 0.0
    %1036 = vadd.xlane.f32.xlu0 %v1035
    %v1037 = vpop.xlane.xlu0 %1036
    %v1038 = vmul.f32 %v1034, %v107
    %v1039 = vmul.f32 %v1037, %v107
    %v1040 = vadd.f32 %v1038, 1e-12
    %v1041 = vadd.f32 %v1039, 1e-12
    %v1042 = vrsqrt.pop %v1040
    %v1043 = vrsqrt.pop %v1041
    %v1044 = vmul.f32 %v1028, %v1042
    %v1045 = vmul.f32 %v1029, %v1043
    %v1047 = vlaneseq
    %v1048 = vshrl.u32 %v1047, 7
    %v1049 = vsub.s32 0, %v1048
    %v1050 = vrot.slane %v1018, %v1049
    %v1052 = vmul.f32 %v1044, %v1050
    %v1053 = vmul.f32 %v1045, %v1050
    %v1055 = vlaneseq
    %v1056 = vshrl.u32 %v1055, 7
    %v1057 = vsub.s32 0, %v1056
    %v1058 = vrot.slane %v1019, %v1057
    %v1060 = vadd.f32 %v1052, %v1058
    %v1061 = vadd.f32 %v1053, %v1058
    %v1062 = vld [vmem:[%s10] sm:$0xff]
    %v1063 = vld [vmem:[%s10 + $0x8] sm:$0xff]
    %v1064 = vld [vmem:[%s10 + $0x10] sm:$0xff]
    %v1065 = vld [vmem:[%s10 + $0x18] sm:$0xff]
    %v1066 = vld [vmem:[%s11] sm:$0x1]
    %v1068 = vlaneseq
    %v1069 = vshrl.u32 %v1068, 7
    %v1070 = vsub.s32 0, %v1069
    %v1071 = vrot.slane %v1066, %v1070
    %v1074 = vsel %vm100, %v1060, 0
    %v1077 = vsel %vm100, %v1061, 0
    %1079 = vmatprep.subr.mxu0 0.0
    %1080 = vmatpush1.msra.mxu0 %v1062
    %1081 = vmatprep.subr.mxu0 0.0
    %1082 = vmatpush1.msra.mxu0 %v1063
    %1083 = vmatprep.subr.mxu0 0.0
    %1084 = vmatpush1.msra.mxu0 %v1064
    %1085 = vmatprep.subr.mxu0 0.0
    %1086 = vmatpush1.msra.mxu0 %v1065
    %1087 = vmatprep.subr.mxu0 0.0
    %1088 = vmatpush1.msra.mxu0 0.0
    %1089 = vmatprep.subr.mxu0 0.0
    %1090 = vmatpush1.msra.mxu0 0.0
    %1091 = vmatprep.subr.mxu0 0.0
    %1092 = vmatpush1.msra.mxu0 0.0
    %1093 = vmatprep.subr.mxu0 0.0
    %1094 = vmatpush1.msra.mxu0 0.0
    %1095 = vmatprep.subr.mxu0 0.0
    %1096 = vmatpush1.msra.mxu0 0.0
    %1097 = vmatprep.subr.mxu0 0.0
    %1098 = vmatpush1.msra.mxu0 0.0
    %1099 = vmatprep.subr.mxu0 0.0
    %1100 = vmatpush1.msra.mxu0 0.0
    %1101 = vmatprep.subr.mxu0 0.0
    %1102 = vmatpush1.msra.mxu0 0.0
    %1103 = vmatprep.subr.mxu0 0.0
    %1104 = vmatpush1.msra.mxu0 0.0
    %1105 = vmatprep.subr.mxu0 0.0
    %1106 = vmatpush1.msra.mxu0 0.0
    %1107 = vmatprep.subr.mxu0 0.0
    %1108 = vmatpush1.msra.mxu0 0.0
    %1109 = vmatprep.subr.mxu0 0.0
    %1110 = vmatpush1.msra.mxu0 0.0
    %1111 = vmatprep.subr.mxu0 0.0
    %1112 = vmatpush1.msra.mxu0 0.0
    %1113 = vmatprep.subr.mxu0 0.0
    %1114 = vmatpush1.msra.mxu0 0.0
    %1115 = vmatprep.subr.mxu0 0.0
    %1116 = vmatpush1.msra.mxu0 0.0
    %1117 = vmatprep.subr.mxu0 0.0
    %1118 = vmatpush1.msra.mxu0 0.0
    %1119 = vmatprep.subr.mxu0 0.0
    %1120 = vmatpush1.msra.mxu0 0.0
    %1121 = vmatprep.subr.mxu0 0.0
    %1122 = vmatpush1.msra.mxu0 0.0
    %1123 = vmatprep.subr.mxu0 0.0
    %1124 = vmatpush1.msra.mxu0 0.0
    %1125 = vmatprep.subr.mxu0 0.0
    %1126 = vmatpush1.msra.mxu0 0.0
    %1127 = vmatprep.subr.mxu0 0.0
    %1128 = vmatpush1.msra.mxu0 0.0
    %1129 = vmatprep.subr.mxu0 0.0
    %1130 = vmatpush1.msra.mxu0 0.0
    %1131 = vmatprep.subr.mxu0 0.0
    %1132 = vmatpush1.msra.mxu0 0.0
    %1133 = vmatprep.subr.mxu0 0.0
    %1134 = vmatpush1.msra.mxu0 0.0
    %1135 = vmatprep.subr.mxu0 0.0
    %1136 = vmatpush1.msra.mxu0 0.0
    %1137 = vmatprep.subr.mxu0 0.0
    %1138 = vmatpush1.msra.mxu0 0.0
    %1139 = vmatprep.subr.mxu0 0.0
    %1140 = vmatpush1.msra.mxu0 0.0
    %1141 = vmatprep.subr.mxu0 0.0
    %1142 = vmatpush1.msra.mxu0 0.0
    %1143 = vmatprep.mubr.f32.mxu0 0.0
    %1144 = vmatmul.mubr.f32.gmra.mrb[0].mxu0 %v1074
    %v1145 = vpop.f32.mrb[0].mxu0
    %v1146 = vadd.f32 %v1071, %v1145
    %v1147 = vpop.f32.mrb[0].mxu0
    %1148 = vmatprep.mubr.f32.mxu0 0.0
    %1149 = vmatmul.mubr.f32.gmra.mrb[0].mxu0 %v1077
    %v1150 = vpop.f32.mrb[0].mxu0
    %v1151 = vadd.f32 %v1071, %v1150
    %v1152 = vpop.f32.mrb[0].mxu0
    %1153 = vdwg.mxu0
    %v1154 = vmul.f32 %v1146, 0.5
    %v1155 = vmul.f32 %v1151, 0.5
    %v1156 = vmul.f32 %v1146, 0.044715
    %v1157 = vmul.f32 %v1151, 0.044715
    %v1158 = vmul.f32 %v1156, %v1146
    %v1159 = vmul.f32 %v1157, %v1151
    %v1160 = vmul.f32 %v1158, %v1146
    %v1161 = vmul.f32 %v1159, %v1151
    %v1162 = vadd.f32 %v1146, %v1160
    %v1163 = vadd.f32 %v1151, %v1161
    %v1164 = vmul.f32 %v1162, 0.7978846
    %v1165 = vmul.f32 %v1163, 0.7978846
    %v1166 = vtanh.pop %v1164
    %v1167 = vtanh.pop %v1165
    %v1168 = vadd.f32 %v1166, 1.0
    %v1169 = vadd.f32 %v1167, 1.0
    %v1170 = vmul.f32 %v1154, %v1168
    %v1171 = vmul.f32 %v1155, %v1169
    %v1172 = vld [vmem:[%s12] sm:$0xff]
    %v1173 = vld [vmem:[%s12 + $0x8] sm:$0xff]
    %v1174 = vld [vmem:[%s12 + $0x10] sm:$0xff]
    %v1175 = vld [vmem:[%s12 + $0x18] sm:$0xff]
    %v1176 = vld [vmem:[%s12 + $0x20] sm:$0xff]
    %v1177 = vld [vmem:[%s12 + $0x28] sm:$0xff]
    %v1178 = vld [vmem:[%s12 + $0x30] sm:$0xff]
    %v1179 = vld [vmem:[%s12 + $0x38] sm:$0xff]
    %v1180 = vld [vmem:[%s13] sm:$0x1]
    %v1182 = vlaneseq
    %v1183 = vshrl.u32 %v1182, 7
    %v1184 = vsub.s32 0, %v1183
    %v1185 = vrot.slane %v1180, %v1184
    %vm1187 = vcmask 523264
    %v1189 = vsel %vm1187, %v1170, 0
    %v1192 = vsel %vm1187, %v1171, 0
    %1194 = vmatprep.subr.mxu0 0.0
    %1195 = vmatpush1.msra.mxu0 %v1172
    %1196 = vmatprep.subr.mxu0 0.0
    %1197 = vmatpush1.msra.mxu0 %v1173
    %1198 = vmatprep.subr.mxu0 0.0
    %1199 = vmatpush1.msra.mxu0 %v1174
    %1200 = vmatprep.subr.mxu0 0.0
    %1201 = vmatpush1.msra.mxu0 %v1175
    %1202 = vmatprep.subr.mxu0 0.0
    %1203 = vmatpush1.msra.mxu0 %v1176
    %1204 = vmatprep.subr.mxu0 0.0
    %1205 = vmatpush1.msra.mxu0 %v1177
    %1206 = vmatprep.subr.mxu0 0.0
    %1207 = vmatpush1.msra.mxu0 %v1178
    %1208 = vmatprep.subr.mxu0 0.0
    %1209 = vmatpush1.msra.mxu0 %v1179
    %1210 = vmatprep.subr.mxu0 0.0
    %1211 = vmatpush1.msra.mxu0 0.0
    %1212 = vmatprep.subr.mxu0 0.0
    %1213 = vmatpush1.msra.mxu0 0.0
    %1214 = vmatprep.subr.mxu0 0.0
    %1215 = vmatpush1.msra.mxu0 0.0
    %1216 = vmatprep.subr.mxu0 0.0
    %1217 = vmatpush1.msra.mxu0 0.0
    %1218 = vmatprep.subr.mxu0 0.0
    %1219 = vmatpush1.msra.mxu0 0.0
    %1220 = vmatprep.subr.mxu0 0.0
    %1221 = vmatpush1.msra.mxu0 0.0
    %1222 = vmatprep.subr.mxu0 0.0
    %1223 = vmatpush1.msra.mxu0 0.0
    %1224 = vmatprep.subr.mxu0 0.0
    %1225 = vmatpush1.msra.mxu0 0.0
    %1226 = vmatprep.subr.mxu0 0.0
    %1227 = vmatpush1.msra.mxu0 0.0
    %1228 = vmatprep.subr.mxu0 0.0
    %1229 = vmatpush1.msra.mxu0 0.0
    %1230 = vmatprep.subr.mxu0 0.0
    %1231 = vmatpush1.msra.mxu0 0.0
    %1232 = vmatprep.subr.mxu0 0.0
    %1233 = vmatpush1.msra.mxu0 0.0
    %1234 = vmatprep.subr.mxu0 0.0
    %1235 = vmatpush1.msra.mxu0 0.0
    %1236 = vmatprep.subr.mxu0 0.0
    %1237 = vmatpush1.msra.mxu0 0.0
    %1238 = vmatprep.subr.mxu0 0.0
    %1239 = vmatpush1.msra.mxu0 0.0
    %1240 = vmatprep.subr.mxu0 0.0
    %1241 = vmatpush1.msra.mxu0 0.0
    %1242 = vmatprep.subr.mxu0 0.0
    %1243 = vmatpush1.msra.mxu0 0.0
    %1244 = vmatprep.subr.mxu0 0.0
    %1245 = vmatpush1.msra.mxu0 0.0
    %1246 = vmatprep.subr.mxu0 0.0
    %1247 = vmatpush1.msra.mxu0 0.0
    %1248 = vmatprep.subr.mxu0 0.0
    %1249 = vmatpush1.msra.mxu0 0.0
    %1250 = vmatprep.subr.mxu0 0.0
    %1251 = vmatpush1.msra.mxu0 0.0
    %1252 = vmatprep.subr.mxu0 0.0
    %1253 = vmatpush1.msra.mxu0 0.0
    %1254 = vmatprep.subr.mxu0 0.0
    %1255 = vmatpush1.msra.mxu0 0.0
    %1256 = vmatprep.subr.mxu0 0.0
    %1257 = vmatpush1.msra.mxu0 0.0
    %1258 = vmatprep.mubr.f32.mxu0 0.0
    %1259 = vmatmul.mubr.f32.gmra.mrb[0].mxu0 %v1189
    %v1260 = vpop.f32.mrb[0].mxu0
    %v1261 = vadd.f32 %v1185, %v1260
    %v1262 = vpop.f32.mrb[0].mxu0
    %1263 = vmatprep.mubr.f32.mxu0 0.0
    %1264 = vmatmul.mubr.f32.gmra.mrb[0].mxu0 %v1192
    %v1265 = vpop.f32.mrb[0].mxu0
    %v1266 = vadd.f32 %v1185, %v1265
    %v1267 = vpop.f32.mrb[0].mxu0
    %1268 = vdwg.mxu0
    %v1269 = vadd.f32 %v1060, %v1261
    %v1270 = vadd.f32 %v1061, %v1266
    %v1271 = vld [vmem:[%s14] sm:$0x1]
    %v1272 = vld [vmem:[%s15] sm:$0x1]
    %v1273 = vsel %vm100, %v1269, 0.0
    %1274 = vadd.xlane.f32.xlu0 %v1273
    %v1275 = vpop.xlane.xlu0 %1274
    %v1276 = vsel %vm100, %v1270, 0.0
    %1277 = vadd.xlane.f32.xlu0 %v1276
    %v1278 = vpop.xlane.xlu0 %1277
    %v1279 = vmul.f32 %v1275, %v107
    %v1280 = vmul.f32 %v1278, %v107
    %v1281 = vsub.f32 %v1269, %v1279
    %v1282 = vsub.f32 %v1270, %v1280
    %v1283 = vmul.f32 %v1281, %v1281
    %v1284 = vmul.f32 %v1282, %v1282
    %v1285 = vsel %vm100, %v1283, 0.0
    %1286 = vadd.xlane.f32.xlu0 %v1285
    %v1287 = vpop.xlane.xlu0 %1286
    %v1288 = vsel %vm100, %v1284, 0.0
    %1289 = vadd.xlane.f32.xlu0 %v1288
    %v1290 = vpop.xlane.xlu0 %1289
    %v1291 = vmul.f32 %v1287, %v107
    %v1292 = vmul.f32 %v1290, %v107
    %v1293 = vadd.f32 %v1291, 1e-12
    %v1294 = vadd.f32 %v1292, 1e-12
    %v1295 = vrsqrt.pop %v1293
    %v1296 = vrsqrt.pop %v1294
    %v1297 = vmul.f32 %v1281, %v1295
    %v1298 = vmul.f32 %v1282, %v1296
    %v1300 = vlaneseq
    %v1301 = vshrl.u32 %v1300, 7
    %v1302 = vsub.s32 0, %v1301
    %v1303 = vrot.slane %v1271, %v1302
    %v1305 = vmul.f32 %v1297, %v1303
    %v1306 = vmul.f32 %v1298, %v1303
    %v1308 = vlaneseq
    %v1309 = vshrl.u32 %v1308, 7
    %v1310 = vsub.s32 0, %v1309
    %v1311 = vrot.slane %v1272, %v1310
    %v1313 = vadd.f32 %v1305, %v1311
    %v1314 = vadd.f32 %v1306, %v1311
    %s1315 = scalar_lea.vmem %s4, 32
    %v1316 = vld [vmem:[%s1315] sm:$0xff]
    %v1317 = vld [vmem:[%s1315 + $0x8] sm:$0xff]
    %v1318 = vld [vmem:[%s1315 + $0x10] sm:$0xff]
    %v1319 = vld [vmem:[%s1315 + $0x18] sm:$0xff]
    %s1320 = scalar_lea.vmem %s5, 1
    %v1321 = vld [vmem:[%s1320] sm:$0x1]
    %v1323 = vlaneseq
    %v1324 = vshrl.u32 %v1323, 7
    %v1325 = vsub.s32 0, %v1324
    %v1326 = vrot.slane %v1321, %v1325
    %v1329 = vsel %vm100, %v1313, 0
    %v1332 = vsel %vm100, %v1314, 0
    %1334 = vmatprep.subr.mxu0 0.0
    %1335 = vmatpush1.msra.mxu0 %v1316
    %1336 = vmatprep.subr.mxu0 0.0
    %1337 = vmatpush1.msra.mxu0 %v1317
    %1338 = vmatprep.subr.mxu0 0.0
    %1339 = vmatpush1.msra.mxu0 %v1318
    %1340 = vmatprep.subr.mxu0 0.0
    %1341 = vmatpush1.msra.mxu0 %v1319
    %1342 = vmatprep.subr.mxu0 0.0
    %1343 = vmatpush1.msra.mxu0 0.0
    %1344 = vmatprep.subr.mxu0 0.0
    %1345 = vmatpush1.msra.mxu0 0.0
    %1346 = vmatprep.subr.mxu0 0.0
    %1347 = vmatpush1.msra.mxu0 0.0
    %1348 = vmatprep.subr.mxu0 0.0
    %1349 = vmatpush1.msra.mxu0 0.0
    %1350 = vmatprep.subr.mxu0 0.0
    %1351 = vmatpush1.msra.mxu0 0.0
    %1352 = vmatprep.subr.mxu0 0.0
    %1353 = vmatpush1.msra.mxu0 0.0
    %1354 = vmatprep.subr.mxu0 0.0
    %1355 = vmatpush1.msra.mxu0 0.0
    %1356 = vmatprep.subr.mxu0 0.0
    %1357 = vmatpush1.msra.mxu0 0.0
    %1358 = vmatprep.subr.mxu0 0.0
    %1359 = vmatpush1.msra.mxu0 0.0
    %1360 = vmatprep.subr.mxu0 0.0
    %1361 = vmatpush1.msra.mxu0 0.0
    %1362 = vmatprep.subr.mxu0 0.0
    %1363 = vmatpush1.msra.mxu0 0.0
    %1364 = vmatprep.subr.mxu0 0.0
    %1365 = vmatpush1.msra.mxu0 0.0
    %1366 = vmatprep.subr.mxu0 0.0
    %1367 = vmatpush1.msra.mxu0 0.0
    %1368 = vmatprep.subr.mxu0 0.0
    %1369 = vmatpush1.msra.mxu0 0.0
    %1370 = vmatprep.subr.mxu0 0.0
    %1371 = vmatpush1.msra.mxu0 0.0
    %1372 = vmatprep.subr.mxu0 0.0
    %1373 = vmatpush1.msra.mxu0 0.0
    %1374 = vmatprep.subr.mxu0 0.0
    %1375 = vmatpush1.msra.mxu0 0.0
    %1376 = vmatprep.subr.mxu0 0.0
    %1377 = vmatpush1.msra.mxu0 0.0
    %1378 = vmatprep.subr.mxu0 0.0
    %1379 = vmatpush1.msra.mxu0 0.0
    %1380 = vmatprep.subr.mxu0 0.0
    %1381 = vmatpush1.msra.mxu0 0.0
    %1382 = vmatprep.subr.mxu0 0.0
    %1383 = vmatpush1.msra.mxu0 0.0
    %1384 = vmatprep.subr.mxu0 0.0
    %1385 = vmatpush1.msra.mxu0 0.0
    %1386 = vmatprep.subr.mxu0 0.0
    %1387 = vmatpush1.msra.mxu0 0.0
    %1388 = vmatprep.subr.mxu0 0.0
    %1389 = vmatpush1.msra.mxu0 0.0
    %1390 = vmatprep.subr.mxu0 0.0
    %1391 = vmatpush1.msra.mxu0 0.0
    %1392 = vmatprep.subr.mxu0 0.0
    %1393 = vmatpush1.msra.mxu0 0.0
    %1394 = vmatprep.subr.mxu0 0.0
    %1395 = vmatpush1.msra.mxu0 0.0
    %1396 = vmatprep.subr.mxu0 0.0
    %1397 = vmatpush1.msra.mxu0 0.0
    %1398 = vmatprep.mubr.f32.mxu0 0.0
    %1399 = vmatmul.mubr.f32.gmra.mrb[0].mxu0 %v1329
    %v1400 = vpop.f32.mrb[0].mxu0
    %v1401 = vadd.f32 %v1326, %v1400
    %v1402 = vpop.f32.mrb[0].mxu0
    %1403 = vmatprep.mubr.f32.mxu0 0.0
    %1404 = vmatmul.mubr.f32.gmra.mrb[0].mxu0 %v1332
    %v1405 = vpop.f32.mrb[0].mxu0
    %v1406 = vadd.f32 %v1326, %v1405
    %v1407 = vpop.f32.mrb[0].mxu0
    %1408 = vdwg.mxu0
    %1410 = vrot.lane.b32.xlu0 %v1401, 96
    %v1411 = vpop.permute.xlu0 %1410
    %v1412 = vsel %vm239, %v1401, 0
    %v1414 = vsel %vm239, %v1411, 0
    %1416 = vmatprep.subr.mxu0 0.0
    %1417 = vmatpush1.xpose.msra.mxu0 %v1414
    %1418 = vmatprep.subr.mxu0 0.0
    %1419 = vmatpush1.xpose.msra.mxu0 0.0
    %1420 = vmatprep.subr.mxu0 0.0
    %1421 = vmatpush1.xpose.msra.mxu0 0.0
    %1422 = vmatprep.subr.mxu0 0.0
    %1423 = vmatpush1.xpose.msra.mxu0 0.0
    %1424 = vmatprep.subr.mxu0 0.0
    %1425 = vmatpush1.xpose.msra.mxu0 0.0
    %1426 = vmatprep.subr.mxu0 0.0
    %1427 = vmatpush1.xpose.msra.mxu0 0.0
    %1428 = vmatprep.subr.mxu0 0.0
    %1429 = vmatpush1.xpose.msra.mxu0 0.0
    %1430 = vmatprep.subr.mxu0 0.0
    %1431 = vmatpush1.xpose.msra.mxu0 0.0
    %1432 = vmatprep.subr.mxu0 0.0
    %1433 = vmatpush1.xpose.msra.mxu0 0.0
    %1434 = vmatprep.subr.mxu0 0.0
    %1435 = vmatpush1.xpose.msra.mxu0 0.0
    %1436 = vmatprep.subr.mxu0 0.0
    %1437 = vmatpush1.xpose.msra.mxu0 0.0
    %1438 = vmatprep.subr.mxu0 0.0
    %1439 = vmatpush1.xpose.msra.mxu0 0.0
    %1440 = vmatprep.subr.mxu0 0.0
    %1441 = vmatpush1.xpose.msra.mxu0 0.0
    %1442 = vmatprep.subr.mxu0 0.0
    %1443 = vmatpush1.xpose.msra.mxu0 0.0
    %1444 = vmatprep.subr.mxu0 0.0
    %1445 = vmatpush1.xpose.msra.mxu0 0.0
    %1446 = vmatprep.subr.mxu0 0.0
    %1447 = vmatpush1.xpose.msra.mxu0 0.0
    %1448 = vmatprep.subr.mxu0 0.0
    %1449 = vmatpush1.xpose.msra.mxu0 0.0
    %1450 = vmatprep.subr.mxu0 0.0
    %1451 = vmatpush1.xpose.msra.mxu0 0.0
    %1452 = vmatprep.subr.mxu0 0.0
    %1453 = vmatpush1.xpose.msra.mxu0 0.0
    %1454 = vmatprep.subr.mxu0 0.0
    %1455 = vmatpush1.xpose.msra.mxu0 0.0
    %1456 = vmatprep.subr.mxu0 0.0
    %1457 = vmatpush1.xpose.msra.mxu0 0.0
    %1458 = vmatprep.subr.mxu0 0.0
    %1459 = vmatpush1.xpose.msra.mxu0 0.0
    %1460 = vmatprep.subr.mxu0 0.0
    %1461 = vmatpush1.xpose.msra.mxu0 0.0
    %1462 = vmatprep.subr.mxu0 0.0
    %1463 = vmatpush1.xpose.msra.mxu0 0.0
    %1464 = vmatprep.subr.mxu0 0.0
    %1465 = vmatpush1.xpose.msra.mxu0 0.0
    %1466 = vmatprep.subr.mxu0 0.0
    %1467 = vmatpush1.xpose.msra.mxu0 0.0
    %1468 = vmatprep.subr.mxu0 0.0
    %1469 = vmatpush1.xpose.msra.mxu0 0.0
    %1470 = vmatprep.subr.mxu0 0.0
    %1471 = vmatpush1.xpose.msra.mxu0 0.0
    %1472 = vmatprep.subr.mxu0 0.0
    %1473 = vmatpush1.xpose.msra.mxu0 0.0
    %1474 = vmatprep.subr.mxu0 0.0
    %1475 = vmatpush1.xpose.msra.mxu0 0.0
    %1476 = vmatprep.subr.mxu0 0.0
    %1477 = vmatpush1.xpose.msra.mxu0 0.0
    %1478 = vmatprep.subr.mxu0 0.0
    %1479 = vmatpush1.xpose.msra.mxu0 0.0
    %1480 = vmatprep.mubr.f32.mxu0 0.0
    %1481 = vmatmul.mubr.f32.gmra.mrb[0].mxu0 %v1412
    %v1482 = vpop.f32.mrb[0].mxu0
    %v1483 = vadd.f32 0.0, %v1482
    %v1484 = vpop.f32.mrb[0].mxu0
    %1485 = vdwg.mxu0
    %1487 = vrot.lane.b32.xlu0 %v1406, 96
    %v1488 = vpop.permute.xlu0 %1487
    %v1489 = vsel %vm239, %v1406, 0
    %v1491 = vsel %vm239, %v1488, 0
    %1493 = vmatprep.subr.mxu0 0.0
    %1494 = vmatpush1.xpose.msra.mxu0 %v1491
    %1495 = vmatprep.subr.mxu0 0.0
    %1496 = vmatpush1.xpose.msra.mxu0 0.0
    %1497 = vmatprep.subr.mxu0 0.0
    %1498 = vmatpush1.xpose.msra.mxu0 0.0
    %1499 = vmatprep.subr.mxu0 0.0
    %1500 = vmatpush1.xpose.msra.mxu0 0.0
    %1501 = vmatprep.subr.mxu0 0.0
    %1502 = vmatpush1.xpose.msra.mxu0 0.0
    %1503 = vmatprep.subr.mxu0 0.0
    %1504 = vmatpush1.xpose.msra.mxu0 0.0
    %1505 = vmatprep.subr.mxu0 0.0
    %1506 = vmatpush1.xpose.msra.mxu0 0.0
    %1507 = vmatprep.subr.mxu0 0.0
    %1508 = vmatpush1.xpose.msra.mxu0 0.0
    %1509 = vmatprep.subr.mxu0 0.0
    %1510 = vmatpush1.xpose.msra.mxu0 0.0
    %1511 = vmatprep.subr.mxu0 0.0
    %1512 = vmatpush1.xpose.msra.mxu0 0.0
    %1513 = vmatprep.subr.mxu0 0.0
    %1514 = vmatpush1.xpose.msra.mxu0 0.0
    %1515 = vmatprep.subr.mxu0 0.0
    %1516 = vmatpush1.xpose.msra.mxu0 0.0
    %1517 = vmatprep.subr.mxu0 0.0
    %1518 = vmatpush1.xpose.msra.mxu0 0.0
    %1519 = vmatprep.subr.mxu0 0.0
    %1520 = vmatpush1.xpose.msra.mxu0 0.0
    %1521 = vmatprep.subr.mxu0 0.0
    %1522 = vmatpush1.xpose.msra.mxu0 0.0
    %1523 = vmatprep.subr.mxu0 0.0
    %1524 = vmatpush1.xpose.msra.mxu0 0.0
    %1525 = vmatprep.subr.mxu0 0.0
    %1526 = vmatpush1.xpose.msra.mxu0 0.0
    %1527 = vmatprep.subr.mxu0 0.0
    %1528 = vmatpush1.xpose.msra.mxu0 0.0
    %1529 = vmatprep.subr.mxu0 0.0
    %1530 = vmatpush1.xpose.msra.mxu0 0.0
    %1531 = vmatprep.subr.mxu0 0.0
    %1532 = vmatpush1.xpose.msra.mxu0 0.0
    %1533 = vmatprep.subr.mxu0 0.0
    %1534 = vmatpush1.xpose.msra.mxu0 0.0
    %1535 = vmatprep.subr.mxu0 0.0
    %1536 = vmatpush1.xpose.msra.mxu0 0.0
    %1537 = vmatprep.subr.mxu0 0.0
    %1538 = vmatpush1.xpose.msra.mxu0 0.0
    %1539 = vmatprep.subr.mxu0 0.0
    %1540 = vmatpush1.xpose.msra.mxu0 0.0
    %1541 = vmatprep.subr.mxu0 0.0
    %1542 = vmatpush1.xpose.msra.mxu0 0.0
    %1543 = vmatprep.subr.mxu0 0.0
    %1544 = vmatpush1.xpose.msra.mxu0 0.0
    %1545 = vmatprep.subr.mxu0 0.0
    %1546 = vmatpush1.xpose.msra.mxu0 0.0
    %1547 = vmatprep.subr.mxu0 0.0
    %1548 = vmatpush1.xpose.msra.mxu0 0.0
    %1549 = vmatprep.subr.mxu0 0.0
    %1550 = vmatpush1.xpose.msra.mxu0 0.0
    %1551 = vmatprep.subr.mxu0 0.0
    %1552 = vmatpush1.xpose.msra.mxu0 0.0
    %1553 = vmatprep.subr.mxu0 0.0
    %1554 = vmatpush1.xpose.msra.mxu0 0.0
    %1555 = vmatprep.subr.mxu0 0.0
    %1556 = vmatpush1.xpose.msra.mxu0 0.0
    %1557 = vmatprep.mubr.f32.mxu0 0.0
    %1558 = vmatmul.mubr.f32.gmra.mrb[0].mxu0 %v1489
    %v1559 = vpop.f32.mrb[0].mxu0
    %v1560 = vadd.f32 0.0, %v1559
    %v1561 = vpop.f32.mrb[0].mxu0
    %1562 = vdwg.mxu0
    %v1563 = vmul.f32 %v1483, 0.25
    %v1564 = vmul.f32 %v1560, 0.25
    %v1565 = vadd.f32 %v1563, %v396
    %v1566 = vadd.f32 %v1564, %v400
    %v1567 = vsel %vm405, %v1565, -inf
    %1568 = vmax.xlane.f32.xlu0 %v1567
    %v1569 = vpop.xlane.xlu0 %1568
    %v1570 = vsel %vm405, %v1566, -inf
    %1571 = vmax.xlane.f32.xlu0 %v1570
    %v1572 = vpop.xlane.xlu0 %1571
    %v1573 = vsub.f32 %v1565, %v1569
    %v1574 = vsub.f32 %v1566, %v1572
    %v1575 = vmul.f32 %v1573, 1.442695
    %v1576 = vpow.pop %v1575
    %v1577 = vmul.f32 %v1574, 1.442695
    %v1578 = vpow.pop %v1577
    %v1579 = vsel %vm405, %v1576, 0.0
    %1580 = vadd.xlane.f32.xlu0 %v1579
    %v1581 = vpop.xlane.xlu0 %1580
    %v1582 = vsel %vm405, %v1578, 0.0
    %1583 = vadd.xlane.f32.xlu0 %v1582
    %v1584 = vpop.xlane.xlu0 %1583
    %v1585 = vrcp.pop %v1581
    %v1586 = vrcp.pop %v1584
    %v1587 = vmul.f32 %v1576, %v1585
    %v1588 = vmul.f32 %v1578, %v1586
    %1589 = vrot.lane.b32.xlu0 %v1401, 64
    %v1590 = vpop.permute.xlu0 %1589
    %v1593 = vsel %vm405, %v1587, 0
    %1595 = vmatprep.subr.mxu0 0.0
    %1596 = vmatpush1.msra.mxu0 %v1590
    %1597 = vmatprep.subr.mxu0 0.0
    %1598 = vmatpush1.msra.mxu0 0.0
    %1599 = vmatprep.subr.mxu0 0.0
    %1600 = vmatpush1.msra.mxu0 0.0
    %1601 = vmatprep.subr.mxu0 0.0
    %1602 = vmatpush1.msra.mxu0 0.0
    %1603 = vmatprep.subr.mxu0 0.0
    %1604 = vmatpush1.msra.mxu0 0.0
    %1605 = vmatprep.subr.mxu0 0.0
    %1606 = vmatpush1.msra.mxu0 0.0
    %1607 = vmatprep.subr.mxu0 0.0
    %1608 = vmatpush1.msra.mxu0 0.0
    %1609 = vmatprep.subr.mxu0 0.0
    %1610 = vmatpush1.msra.mxu0 0.0
    %1611 = vmatprep.subr.mxu0 0.0
    %1612 = vmatpush1.msra.mxu0 0.0
    %1613 = vmatprep.subr.mxu0 0.0
    %1614 = vmatpush1.msra.mxu0 0.0
    %1615 = vmatprep.subr.mxu0 0.0
    %1616 = vmatpush1.msra.mxu0 0.0
    %1617 = vmatprep.subr.mxu0 0.0
    %1618 = vmatpush1.msra.mxu0 0.0
    %1619 = vmatprep.subr.mxu0 0.0
    %1620 = vmatpush1.msra.mxu0 0.0
    %1621 = vmatprep.subr.mxu0 0.0
    %1622 = vmatpush1.msra.mxu0 0.0
    %1623 = vmatprep.subr.mxu0 0.0
    %1624 = vmatpush1.msra.mxu0 0.0
    %1625 = vmatprep.subr.mxu0 0.0
    %1626 = vmatpush1.msra.mxu0 0.0
    %1627 = vmatprep.subr.mxu0 0.0
    %1628 = vmatpush1.msra.mxu0 0.0
    %1629 = vmatprep.subr.mxu0 0.0
    %1630 = vmatpush1.msra.mxu0 0.0
    %1631 = vmatprep.subr.mxu0 0.0
    %1632 = vmatpush1.msra.mxu0 0.0
    %1633 = vmatprep.subr.mxu0 0.0
    %1634 = vmatpush1.msra.mxu0 0.0
    %1635 = vmatprep.subr.mxu0 0.0
    %1636 = vmatpush1.msra.mxu0 0.0
    %1637 = vmatprep.subr.mxu0 0.0
    %1638 = vmatpush1.msra.mxu0 0.0
    %1639 = vmatprep.subr.mxu0 0.0
    %1640 = vmatpush1.msra.mxu0 0.0
    %1641 = vmatprep.subr.mxu0 0.0
    %1642 = vmatpush1.msra.mxu0 0.0
    %1643 = vmatprep.subr.mxu0 0.0
    %1644 = vmatpush1.msra.mxu0 0.0
    %1645 = vmatprep.subr.mxu0 0.0
    %1646 = vmatpush1.msra.mxu0 0.0
    %1647 = vmatprep.subr.mxu0 0.0
    %1648 = vmatpush1.msra.mxu0 0.0
    %1649 = vmatprep.subr.mxu0 0.0
    %1650 = vmatpush1.msra.mxu0 0.0
    %1651 = vmatprep.subr.mxu0 0.0
    %1652 = vmatpush1.msra.mxu0 0.0
    %1653 = vmatprep.subr.mxu0 0.0
    %1654 = vmatpush1.msra.mxu0 0.0
    %1655 = vmatprep.subr.mxu0 0.0
    %1656 = vmatpush1.msra.mxu0 0.0
    %1657 = vmatprep.subr.mxu0 0.0
    %1658 = vmatpush1.msra.mxu0 0.0
    %1659 = vmatprep.mubr.f32.mxu0 0.0
    %1660 = vmatmul.mubr.f32.gmra.mrb[0].mxu0 %v1593
    %v1661 = vpop.f32.mrb[0].mxu0
    %v1662 = vadd.f32 0.0, %v1661
    %v1663 = vpop.f32.mrb[0].mxu0
    %1664 = vdwg.mxu0
    %1665 = vrot.lane.b32.xlu0 %v1406, 64
    %v1666 = vpop.permute.xlu0 %1665
    %v1669 = vsel %vm405, %v1588, 0
    %1671 = vmatprep.subr.mxu0 0.0
    %1672 = vmatpush1.msra.mxu0 %v1666
    %1673 = vmatprep.subr.mxu0 0.0
    %1674 = vmatpush1.msra.mxu0 0.0
    %1675 = vmatprep.subr.mxu0 0.0
    %1676 = vmatpush1.msra.mxu0 0.0
    %1677 = vmatprep.subr.mxu0 0.0
    %1678 = vmatpush1.msra.mxu0 0.0
    %1679 = vmatprep.subr.mxu0 0.0
    %1680 = vmatpush1.msra.mxu0 0.0
    %1681 = vmatprep.subr.mxu0 0.0
    %1682 = vmatpush1.msra.mxu0 0.0
    %1683 = vmatprep.subr.mxu0 0.0
    %1684 = vmatpush1.msra.mxu0 0.0
    %1685 = vmatprep.subr.mxu0 0.0
    %1686 = vmatpush1.msra.mxu0 0.0
    %1687 = vmatprep.subr.mxu0 0.0
    %1688 = vmatpush1.msra.mxu0 0.0
    %1689 = vmatprep.subr.mxu0 0.0
    %1690 = vmatpush1.msra.mxu0 0.0
    %1691 = vmatprep.subr.mxu0 0.0
    %1692 = vmatpush1.msra.mxu0 0.0
    %1693 = vmatprep.subr.mxu0 0.0
    %1694 = vmatpush1.msra.mxu0 0.0
    %1695 = vmatprep.subr.mxu0 0.0
    %1696 = vmatpush1.msra.mxu0 0.0
    %1697 = vmatprep.subr.mxu0 0.0
    %1698 = vmatpush1.msra.mxu0 0.0
    %1699 = vmatprep.subr.mxu0 0.0
    %1700 = vmatpush1.msra.mxu0 0.0
    %1701 = vmatprep.subr.mxu0 0.0
    %1702 = vmatpush1.msra.mxu0 0.0
    %1703 = vmatprep.subr.mxu0 0.0
    %1704 = vmatpush1.msra.mxu0 0.0
    %1705 = vmatprep.subr.mxu0 0.0
    %1706 = vmatpush1.msra.mxu0 0.0
    %1707 = vmatprep.subr.mxu0 0.0
    %1708 = vmatpush1.msra.mxu0 0.0
    %1709 = vmatprep.subr.mxu0 0.0
    %1710 = vmatpush1.msra.mxu0 0.0
    %1711 = vmatprep.subr.mxu0 0.0
    %1712 = vmatpush1.msra.mxu0 0.0
    %1713 = vmatprep.subr.mxu0 0.0
    %1714 = vmatpush1.msra.mxu0 0.0
    %1715 = vmatprep.subr.mxu0 0.0
    %1716 = vmatpush1.msra.mxu0 0.0
    %1717 = vmatprep.subr.mxu0 0.0
    %1718 = vmatpush1.msra.mxu0 0.0
    %1719 = vmatprep.subr.mxu0 0.0
    %1720 = vmatpush1.msra.mxu0 0.0
    %1721 = vmatprep.subr.mxu0 0.0
    %1722 = vmatpush1.msra.mxu0 0.0
    %1723 = vmatprep.subr.mxu0 0.0
    %1724 = vmatpush1.msra.mxu0 0.0
    %1725 = vmatprep.subr.mxu0 0.0
    %1726 = vmatpush1.msra.mxu0 0.0
    %1727 = vmatprep.subr.mxu0 0.0
    %1728 = vmatpush1.msra.mxu0 0.0
    %1729 = vmatprep.subr.mxu0 0.0
    %1730 = vmatpush1.msra.mxu0 0.0
    %1731 = vmatprep.subr.mxu0 0.0
    %1732 = vmatpush1.msra.mxu0 0.0
    %1733 = vmatprep.subr.mxu0 0.0
    %1734 = vmatpush1.msra.mxu0 0.0
    %1735 = vmatprep.mubr.f32.mxu0 0.0
    %1736 = vmatmul.mubr.f32.gmra.mrb[0].mxu0 %v1669
    %v1737 = vpop.f32.mrb[0].mxu0
    %v1738 = vadd.f32 0.0, %v1737
    %v1739 = vpop.f32.mrb[0].mxu0
    %1740 = vdwg.mxu0
    %1741 = vrot.lane.b32.xlu0 %v1401, 112
    %v1742 = vpop.permute.xlu0 %1741
    %1743 = vrot.lane.b32.xlu0 %v1401, 80
    %v1744 = vpop.permute.xlu0 %1743
    %v1745 = vsel %vm239, %v1742, 0
    %v1747 = vsel %vm239, %v1744, 0
    %1749 = vmatprep.subr.mxu0 0.0
    %1750 = vmatpush1.xpose.msra.mxu0 %v1747
    %1751 = vmatprep.subr.mxu0 0.0
    %1752 = vmatpush1.xpose.msra.mxu0 0.0
    %1753 = vmatprep.subr.mxu0 0.0
    %1754 = vmatpush1.xpose.msra.mxu0 0.0
    %1755 = vmatprep.subr.mxu0 0.0
    %1756 = vmatpush1.xpose.msra.mxu0 0.0
    %1757 = vmatprep.subr.mxu0 0.0
    %1758 = vmatpush1.xpose.msra.mxu0 0.0
    %1759 = vmatprep.subr.mxu0 0.0
    %1760 = vmatpush1.xpose.msra.mxu0 0.0
    %1761 = vmatprep.subr.mxu0 0.0
    %1762 = vmatpush1.xpose.msra.mxu0 0.0
    %1763 = vmatprep.subr.mxu0 0.0
    %1764 = vmatpush1.xpose.msra.mxu0 0.0
    %1765 = vmatprep.subr.mxu0 0.0
    %1766 = vmatpush1.xpose.msra.mxu0 0.0
    %1767 = vmatprep.subr.mxu0 0.0
    %1768 = vmatpush1.xpose.msra.mxu0 0.0
    %1769 = vmatprep.subr.mxu0 0.0
    %1770 = vmatpush1.xpose.msra.mxu0 0.0
    %1771 = vmatprep.subr.mxu0 0.0
    %1772 = vmatpush1.xpose.msra.mxu0 0.0
    %1773 = vmatprep.subr.mxu0 0.0
    %1774 = vmatpush1.xpose.msra.mxu0 0.0
    %1775 = vmatprep.subr.mxu0 0.0
    %1776 = vmatpush1.xpose.msra.mxu0 0.0
    %1777 = vmatprep.subr.mxu0 0.0
    %1778 = vmatpush1.xpose.msra.mxu0 0.0
    %1779 = vmatprep.subr.mxu0 0.0
    %1780 = vmatpush1.xpose.msra.mxu0 0.0
    %1781 = vmatprep.subr.mxu0 0.0
    %1782 = vmatpush1.xpose.msra.mxu0 0.0
    %1783 = vmatprep.subr.mxu0 0.0
    %1784 = vmatpush1.xpose.msra.mxu0 0.0
    %1785 = vmatprep.subr.mxu0 0.0
    %1786 = vmatpush1.xpose.msra.mxu0 0.0
    %1787 = vmatprep.subr.mxu0 0.0
    %1788 = vmatpush1.xpose.msra.mxu0 0.0
    %1789 = vmatprep.subr.mxu0 0.0
    %1790 = vmatpush1.xpose.msra.mxu0 0.0
    %1791 = vmatprep.subr.mxu0 0.0
    %1792 = vmatpush1.xpose.msra.mxu0 0.0
    %1793 = vmatprep.subr.mxu0 0.0
    %1794 = vmatpush1.xpose.msra.mxu0 0.0
    %1795 = vmatprep.subr.mxu0 0.0
    %1796 = vmatpush1.xpose.msra.mxu0 0.0
    %1797 = vmatprep.subr.mxu0 0.0
    %1798 = vmatpush1.xpose.msra.mxu0 0.0
    %1799 = vmatprep.subr.mxu0 0.0
    %1800 = vmatpush1.xpose.msra.mxu0 0.0
    %1801 = vmatprep.subr.mxu0 0.0
    %1802 = vmatpush1.xpose.msra.mxu0 0.0
    %1803 = vmatprep.subr.mxu0 0.0
    %1804 = vmatpush1.xpose.msra.mxu0 0.0
    %1805 = vmatprep.subr.mxu0 0.0
    %1806 = vmatpush1.xpose.msra.mxu0 0.0
    %1807 = vmatprep.subr.mxu0 0.0
    %1808 = vmatpush1.xpose.msra.mxu0 0.0
    %1809 = vmatprep.subr.mxu0 0.0
    %1810 = vmatpush1.xpose.msra.mxu0 0.0
    %1811 = vmatprep.subr.mxu0 0.0
    %1812 = vmatpush1.xpose.msra.mxu0 0.0
    %1813 = vmatprep.mubr.f32.mxu0 0.0
    %1814 = vmatmul.mubr.f32.gmra.mrb[0].mxu0 %v1745
    %v1815 = vpop.f32.mrb[0].mxu0
    %v1816 = vadd.f32 0.0, %v1815
    %v1817 = vpop.f32.mrb[0].mxu0
    %1818 = vdwg.mxu0
    %1819 = vrot.lane.b32.xlu0 %v1406, 112
    %v1820 = vpop.permute.xlu0 %1819
    %1821 = vrot.lane.b32.xlu0 %v1406, 80
    %v1822 = vpop.permute.xlu0 %1821
    %v1823 = vsel %vm239, %v1820, 0
    %v1825 = vsel %vm239, %v1822, 0
    %1827 = vmatprep.subr.mxu0 0.0
    %1828 = vmatpush1.xpose.msra.mxu0 %v1825
    %1829 = vmatprep.subr.mxu0 0.0
    %1830 = vmatpush1.xpose.msra.mxu0 0.0
    %1831 = vmatprep.subr.mxu0 0.0
    %1832 = vmatpush1.xpose.msra.mxu0 0.0
    %1833 = vmatprep.subr.mxu0 0.0
    %1834 = vmatpush1.xpose.msra.mxu0 0.0
    %1835 = vmatprep.subr.mxu0 0.0
    %1836 = vmatpush1.xpose.msra.mxu0 0.0
    %1837 = vmatprep.subr.mxu0 0.0
    %1838 = vmatpush1.xpose.msra.mxu0 0.0
    %1839 = vmatprep.subr.mxu0 0.0
    %1840 = vmatpush1.xpose.msra.mxu0 0.0
    %1841 = vmatprep.subr.mxu0 0.0
    %1842 = vmatpush1.xpose.msra.mxu0 0.0
    %1843 = vmatprep.subr.mxu0 0.0
    %1844 = vmatpush1.xpose.msra.mxu0 0.0
    %1845 = vmatprep.subr.mxu0 0.0
    %1846 = vmatpush1.xpose.msra.mxu0 0.0
    %1847 = vmatprep.subr.mxu0 0.0
    %1848 = vmatpush1.xpose.msra.mxu0 0.0
    %1849 = vmatprep.subr.mxu0 0.0
    %1850 = vmatpush1.xpose.msra.mxu0 0.0
    %1851 = vmatprep.subr.mxu0 0.0
    %1852 = vmatpush1.xpose.msra.mxu0 0.0
    %1853 = vmatprep.subr.mxu0 0.0
    %1854 = vmatpush1.xpose.msra.mxu0 0.0
    %1855 = vmatprep.subr.mxu0 0.0
    %1856 = vmatpush1.xpose.msra.mxu0 0.0
    %1857 = vmatprep.subr.mxu0 0.0
    %1858 = vmatpush1.xpose.msra.mxu0 0.0
    %1859 = vmatprep.subr.mxu0 0.0
    %1860 = vmatpush1.xpose.msra.mxu0 0.0
    %1861 = vmatprep.subr.mxu0 0.0
    %1862 = vmatpush1.xpose.msra.mxu0 0.0
    %1863 = vmatprep.subr.mxu0 0.0
    %1864 = vmatpush1.xpose.msra.mxu0 0.0
    %1865 = vmatprep.subr.mxu0 0.0
    %1866 = vmatpush1.xpose.msra.mxu0 0.0
    %1867 = vmatprep.subr.mxu0 0.0
    %1868 = vmatpush1.xpose.msra.mxu0 0.0
    %1869 = vmatprep.subr.mxu0 0.0
    %1870 = vmatpush1.xpose.msra.mxu0 0.0
    %1871 = vmatprep.subr.mxu0 0.0
    %1872 = vmatpush1.xpose.msra.mxu0 0.0
    %1873 = vmatprep.subr.mxu0 0.0
    %1874 = vmatpush1.xpose.msra.mxu0 0.0
    %1875 = vmatprep.subr.mxu0 0.0
    %1876 = vmatpush1.xpose.msra.mxu0 0.0
    %1877 = vmatprep.subr.mxu0 0.0
    %1878 = vmatpush1.xpose.msra.mxu0 0.0
    %1879 = vmatprep.subr.mxu0 0.0
    %1880 = vmatpush1.xpose.msra.mxu0 0.0
    %1881 = vmatprep.subr.mxu0 0.0
    %1882 = vmatpush1.xpose.msra.mxu0 0.0
    %1883 = vmatprep.subr.mxu0 0.0
    %1884 = vmatpush1.xpose.msra.mxu0 0.0
    %1885 = vmatprep.subr.mxu0 0.0
    %1886 = vmatpush1.xpose.msra.mxu0 0.0
    %1887 = vmatprep.subr.mxu0 0.0
    %1888 = vmatpush1.xpose.msra.mxu0 0.0
    %1889 = vmatprep.subr.mxu0 0.0
    %1890 = vmatpush1.xpose.msra.mxu0 0.0
    %1891 = vmatprep.mubr.f32.mxu0 0.0
    %1892 = vmatmul.mubr.f32.gmra.mrb[0].mxu0 %v1823
    %v1893 = vpop.f32.mrb[0].mxu0
    %v1894 = vadd.f32 0.0, %v1893
    %v1895 = vpop.f32.mrb[0].mxu0
    %1896 = vdwg.mxu0
    %v1897 = vmul.f32 %v1816, 0.25
    %v1898 = vmul.f32 %v1894, 0.25
    %v1899 = vadd.f32 %v1897, %v396
    %v1900 = vadd.f32 %v1898, %v400
    %v1901 = vsel %vm405, %v1899, -inf
    %1902 = vmax.xlane.f32.xlu0 %v1901
    %v1903 = vpop.xlane.xlu0 %1902
    %v1904 = vsel %vm405, %v1900, -inf
    %1905 = vmax.xlane.f32.xlu0 %v1904
    %v1906 = vpop.xlane.xlu0 %1905
    %v1907 = vsub.f32 %v1899, %v1903
    %v1908 = vsub.f32 %v1900, %v1906
    %v1909 = vmul.f32 %v1907, 1.442695
    %v1910 = vpow.pop %v1909
    %v1911 = vmul.f32 %v1908, 1.442695
    %v1912 = vpow.pop %v1911
    %v1913 = vsel %vm405, %v1910, 0.0
    %1914 = vadd.xlane.f32.xlu0 %v1913
    %v1915 = vpop.xlane.xlu0 %1914
    %v1916 = vsel %vm405, %v1912, 0.0
    %1917 = vadd.xlane.f32.xlu0 %v1916
    %v1918 = vpop.xlane.xlu0 %1917
    %v1919 = vrcp.pop %v1915
    %v1920 = vrcp.pop %v1918
    %v1921 = vmul.f32 %v1910, %v1919
    %v1922 = vmul.f32 %v1912, %v1920
    %1923 = vrot.lane.b32.xlu0 %v1401, 48
    %v1924 = vpop.permute.xlu0 %1923
    %v1927 = vsel %vm405, %v1921, 0
    %1929 = vmatprep.subr.mxu0 0.0
    %1930 = vmatpush1.msra.mxu0 %v1924
    %1931 = vmatprep.subr.mxu0 0.0
    %1932 = vmatpush1.msra.mxu0 0.0
    %1933 = vmatprep.subr.mxu0 0.0
    %1934 = vmatpush1.msra.mxu0 0.0
    %1935 = vmatprep.subr.mxu0 0.0
    %1936 = vmatpush1.msra.mxu0 0.0
    %1937 = vmatprep.subr.mxu0 0.0
    %1938 = vmatpush1.msra.mxu0 0.0
    %1939 = vmatprep.subr.mxu0 0.0
    %1940 = vmatpush1.msra.mxu0 0.0
    %1941 = vmatprep.subr.mxu0 0.0
    %1942 = vmatpush1.msra.mxu0 0.0
    %1943 = vmatprep.subr.mxu0 0.0
    %1944 = vmatpush1.msra.mxu0 0.0
    %1945 = vmatprep.subr.mxu0 0.0
    %1946 = vmatpush1.msra.mxu0 0.0
    %1947 = vmatprep.subr.mxu0 0.0
    %1948 = vmatpush1.msra.mxu0 0.0
    %1949 = vmatprep.subr.mxu0 0.0
    %1950 = vmatpush1.msra.mxu0 0.0
    %1951 = vmatprep.subr.mxu0 0.0
    %1952 = vmatpush1.msra.mxu0 0.0
    %1953 = vmatprep.subr.mxu0 0.0
    %1954 = vmatpush1.msra.mxu0 0.0
    %1955 = vmatprep.subr.mxu0 0.0
    %1956 = vmatpush1.msra.mxu0 0.0
    %1957 = vmatprep.subr.mxu0 0.0
    %1958 = vmatpush1.msra.mxu0 0.0
    %1959 = vmatprep.subr.mxu0 0.0
    %1960 = vmatpush1.msra.mxu0 0.0
    %1961 = vmatprep.subr.mxu0 0.0
    %1962 = vmatpush1.msra.mxu0 0.0
    %1963 = vmatprep.subr.mxu0 0.0
    %1964 = vmatpush1.msra.mxu0 0.0
    %1965 = vmatprep.subr.mxu0 0.0
    %1966 = vmatpush1.msra.mxu0 0.0
    %1967 = vmatprep.subr.mxu0 0.0
    %1968 = vmatpush1.msra.mxu0 0.0
    %1969 = vmatprep.subr.mxu0 0.0
    %1970 = vmatpush1.msra.mxu0 0.0
    %1971 = vmatprep.subr.mxu0 0.0
    %1972 = vmatpush1.msra.mxu0 0.0
    %1973 = vmatprep.subr.mxu0 0.0
    %1974 = vmatpush1.msra.mxu0 0.0
    %1975 = vmatprep.subr.mxu0 0.0
    %1976 = vmatpush1.msra.mxu0 0.0
    %1977 = vmatprep.subr.mxu0 0.0
    %1978 = vmatpush1.msra.mxu0 0.0
    %1979 = vmatprep.subr.mxu0 0.0
    %1980 = vmatpush1.msra.mxu0 0.0
    %1981 = vmatprep.subr.mxu0 0.0
    %1982 = vmatpush1.msra.mxu0 0.0
    %1983 = vmatprep.subr.mxu0 0.0
    %1984 = vmatpush1.msra.mxu0 0.0
    %1985 = vmatprep.subr.mxu0 0.0
    %1986 = vmatpush1.msra.mxu0 0.0
    %1987 = vmatprep.subr.mxu0 0.0
    %1988 = vmatpush1.msra.mxu0 0.0
    %1989 = vmatprep.subr.mxu0 0.0
    %1990 = vmatpush1.msra.mxu0 0.0
    %1991 = vmatprep.subr.mxu0 0.0
    %1992 = vmatpush1.msra.mxu0 0.0
    %1993 = vmatprep.mubr.f32.mxu0 0.0
    %1994 = vmatmul.mubr.f32.gmra.mrb[0].mxu0 %v1927
    %v1995 = vpop.f32.mrb[0].mxu0
    %v1996 = vadd.f32 0.0, %v1995
    %v1997 = vpop.f32.mrb[0].mxu0
    %1998 = vdwg.mxu0
    %1999 = vrot.lane.b32.xlu0 %v1406, 48
    %v2000 = vpop.permute.xlu0 %1999
    %v2003 = vsel %vm405, %v1922, 0
    %2005 = vmatprep.subr.mxu0 0.0
    %2006 = vmatpush1.msra.mxu0 %v2000
    %2007 = vmatprep.subr.mxu0 0.0
    %2008 = vmatpush1.msra.mxu0 0.0
    %2009 = vmatprep.subr.mxu0 0.0
    %2010 = vmatpush1.msra.mxu0 0.0
    %2011 = vmatprep.subr.mxu0 0.0
    %2012 = vmatpush1.msra.mxu0 0.0
    %2013 = vmatprep.subr.mxu0 0.0
    %2014 = vmatpush1.msra.mxu0 0.0
    %2015 = vmatprep.subr.mxu0 0.0
    %2016 = vmatpush1.msra.mxu0 0.0
    %2017 = vmatprep.subr.mxu0 0.0
    %2018 = vmatpush1.msra.mxu0 0.0
    %2019 = vmatprep.subr.mxu0 0.0
    %2020 = vmatpush1.msra.mxu0 0.0
    %2021 = vmatprep.subr.mxu0 0.0
    %2022 = vmatpush1.msra.mxu0 0.0
    %2023 = vmatprep.subr.mxu0 0.0
    %2024 = vmatpush1.msra.mxu0 0.0
    %2025 = vmatprep.subr.mxu0 0.0
    %2026 = vmatpush1.msra.mxu0 0.0
    %2027 = vmatprep.subr.mxu0 0.0
    %2028 = vmatpush1.msra.mxu0 0.0
    %2029 = vmatprep.subr.mxu0 0.0
    %2030 = vmatpush1.msra.mxu0 0.0
    %2031 = vmatprep.subr.mxu0 0.0
    %2032 = vmatpush1.msra.mxu0 0.0
    %2033 = vmatprep.subr.mxu0 0.0
    %2034 = vmatpush1.msra.mxu0 0.0
    %2035 = vmatprep.subr.mxu0 0.0
    %2036 = vmatpush1.msra.mxu0 0.0
    %2037 = vmatprep.subr.mxu0 0.0
    %2038 = vmatpush1.msra.mxu0 0.0
    %2039 = vmatprep.subr.mxu0 0.0
    %2040 = vmatpush1.msra.mxu0 0.0
    %2041 = vmatprep.subr.mxu0 0.0
    %2042 = vmatpush1.msra.mxu0 0.0
    %2043 = vmatprep.subr.mxu0 0.0
    %2044 = vmatpush1.msra.mxu0 0.0
    %2045 = vmatprep.subr.mxu0 0.0
    %2046 = vmatpush1.msra.mxu0 0.0
    %2047 = vmatprep.subr.mxu0 0.0
    %2048 = vmatpush1.msra.mxu0 0.0
    %2049 = vmatprep.subr.mxu0 0.0
    %2050 = vmatpush1.msra.mxu0 0.0
    %2051 = vmatprep.subr.mxu0 0.0
    %2052 = vmatpush1.msra.mxu0 0.0
    %2053 = vmatprep.subr.mxu0 0.0
    %2054 = vmatpush1.msra.mxu0 0.0
    %2055 = vmatprep.subr.mxu0 0.0
    %2056 = vmatpush1.msra.mxu0 0.0
    %2057 = vmatprep.subr.mxu0 0.0
    %2058 = vmatpush1.msra.mxu0 0.0
    %2059 = vmatprep.subr.mxu0 0.0
    %2060 = vmatpush1.msra.mxu0 0.0
    %2061 = vmatprep.subr.mxu0 0.0
    %2062 = vmatpush1.msra.mxu0 0.0
    %2063 = vmatprep.subr.mxu0 0.0
    %2064 = vmatpush1.msra.mxu0 0.0
    %2065 = vmatprep.subr.mxu0 0.0
    %2066 = vmatpush1.msra.mxu0 0.0
    %2067 = vmatprep.subr.mxu0 0.0
    %2068 = vmatpush1.msra.mxu0 0.0
    %2069 = vmatprep.mubr.f32.mxu0 0.0
    %2070 = vmatmul.mubr.f32.gmra.mrb[0].mxu0 %v2003
    %v2071 = vpop.f32.mrb[0].mxu0
    %v2072 = vadd.f32 0.0, %v2071
    %v2073 = vpop.f32.mrb[0].mxu0
    %2074 = vdwg.mxu0
    %2077 = vrot.lane.b32.xlu0 %v1996, 16
    %v2078 = vpop.permute.xlu0 %2077
    %2079 = vrot.lane.b32.xlu0 %v2072, 16
    %v2080 = vpop.permute.xlu0 %2079
    %v2083 = vsel %vm239, %v1662, %v2078
    %v2084 = vsel %vm239, %v1738, %v2080
    %s2085 = scalar_lea.vmem %s6, 32
    %v2086 = vld [vmem:[%s2085] sm:$0xff]
    %v2087 = vld [vmem:[%s2085 + $0x8] sm:$0xff]
    %v2088 = vld [vmem:[%s2085 + $0x10] sm:$0xff]
    %v2089 = vld [vmem:[%s2085 + $0x18] sm:$0xff]
    %s2090 = scalar_lea.vmem %s7, 1
    %v2091 = vld [vmem:[%s2090] sm:$0x1]
    %v2093 = vlaneseq
    %v2094 = vshrl.u32 %v2093, 7
    %v2095 = vsub.s32 0, %v2094
    %v2096 = vrot.slane %v2091, %v2095
    %v2099 = vsel %vm100, %v2083, 0
    %v2102 = vsel %vm100, %v2084, 0
    %2104 = vmatprep.subr.mxu0 0.0
    %2105 = vmatpush1.msra.mxu0 %v2086
    %2106 = vmatprep.subr.mxu0 0.0
    %2107 = vmatpush1.msra.mxu0 %v2087
    %2108 = vmatprep.subr.mxu0 0.0
    %2109 = vmatpush1.msra.mxu0 %v2088
    %2110 = vmatprep.subr.mxu0 0.0
    %2111 = vmatpush1.msra.mxu0 %v2089
    %2112 = vmatprep.subr.mxu0 0.0
    %2113 = vmatpush1.msra.mxu0 0.0
    %2114 = vmatprep.subr.mxu0 0.0
    %2115 = vmatpush1.msra.mxu0 0.0
    %2116 = vmatprep.subr.mxu0 0.0
    %2117 = vmatpush1.msra.mxu0 0.0
    %2118 = vmatprep.subr.mxu0 0.0
    %2119 = vmatpush1.msra.mxu0 0.0
    %2120 = vmatprep.subr.mxu0 0.0
    %2121 = vmatpush1.msra.mxu0 0.0
    %2122 = vmatprep.subr.mxu0 0.0
    %2123 = vmatpush1.msra.mxu0 0.0
    %2124 = vmatprep.subr.mxu0 0.0
    %2125 = vmatpush1.msra.mxu0 0.0
    %2126 = vmatprep.subr.mxu0 0.0
    %2127 = vmatpush1.msra.mxu0 0.0
    %2128 = vmatprep.subr.mxu0 0.0
    %2129 = vmatpush1.msra.mxu0 0.0
    %2130 = vmatprep.subr.mxu0 0.0
    %2131 = vmatpush1.msra.mxu0 0.0
    %2132 = vmatprep.subr.mxu0 0.0
    %2133 = vmatpush1.msra.mxu0 0.0
    %2134 = vmatprep.subr.mxu0 0.0
    %2135 = vmatpush1.msra.mxu0 0.0
    %2136 = vmatprep.subr.mxu0 0.0
    %2137 = vmatpush1.msra.mxu0 0.0
    %2138 = vmatprep.subr.mxu0 0.0
    %2139 = vmatpush1.msra.mxu0 0.0
    %2140 = vmatprep.subr.mxu0 0.0
    %2141 = vmatpush1.msra.mxu0 0.0
    %2142 = vmatprep.subr.mxu0 0.0
    %2143 = vmatpush1.msra.mxu0 0.0
    %2144 = vmatprep.subr.mxu0 0.0
    %2145 = vmatpush1.msra.mxu0 0.0
    %2146 = vmatprep.subr.mxu0 0.0
    %2147 = vmatpush1.msra.mxu0 0.0
    %2148 = vmatprep.subr.mxu0 0.0
    %2149 = vmatpush1.msra.mxu0 0.0
    %2150 = vmatprep.subr.mxu0 0.0
    %2151 = vmatpush1.msra.mxu0 0.0
    %2152 = vmatprep.subr.mxu0 0.0
    %2153 = vmatpush1.msra.mxu0 0.0
    %2154 = vmatprep.subr.mxu0 0.0
    %2155 = vmatpush1.msra.mxu0 0.0
    %2156 = vmatprep.subr.mxu0 0.0
    %2157 = vmatpush1.msra.mxu0 0.0
    %2158 = vmatprep.subr.mxu0 0.0
    %2159 = vmatpush1.msra.mxu0 0.0
    %2160 = vmatprep.subr.mxu0 0.0
    %2161 = vmatpush1.msra.mxu0 0.0
    %2162 = vmatprep.subr.mxu0 0.0
    %2163 = vmatpush1.msra.mxu0 0.0
    %2164 = vmatprep.subr.mxu0 0.0
    %2165 = vmatpush1.msra.mxu0 0.0
    %2166 = vmatprep.subr.mxu0 0.0
    %2167 = vmatpush1.msra.mxu0 0.0
    %2168 = vmatprep.mubr.f32.mxu0 0.0
    %2169 = vmatmul.mubr.f32.gmra.mrb[0].mxu0 %v2099
    %v2170 = vpop.f32.mrb[0].mxu0
    %v2171 = vadd.f32 %v2096, %v2170
    %v2172 = vpop.f32.mrb[0].mxu0
    %2173 = vmatprep.mubr.f32.mxu0 0.0
    %2174 = vmatmul.mubr.f32.gmra.mrb[0].mxu0 %v2102
    %v2175 = vpop.f32.mrb[0].mxu0
    %v2176 = vadd.f32 %v2096, %v2175
    %v2177 = vpop.f32.mrb[0].mxu0
    %2178 = vdwg.mxu0
    %v2179 = vadd.f32 %v1313, %v2171
    %v2180 = vadd.f32 %v1314, %v2176
    %s2181 = scalar_lea.vmem %s8, 1
    %v2182 = vld [vmem:[%s2181] sm:$0x1]
    %s2183 = scalar_lea.vmem %s9, 1
    %v2184 = vld [vmem:[%s2183] sm:$0x1]
    %v2185 = vsel %vm100, %v2179, 0.0
    %2186 = vadd.xlane.f32.xlu0 %v2185
    %v2187 = vpop.xlane.xlu0 %2186
    %v2188 = vsel %vm100, %v2180, 0.0
    %2189 = vadd.xlane.f32.xlu0 %v2188
    %v2190 = vpop.xlane.xlu0 %2189
    %v2191 = vmul.f32 %v2187, %v107
    %v2192 = vmul.f32 %v2190, %v107
    %v2193 = vsub.f32 %v2179, %v2191
    %v2194 = vsub.f32 %v2180, %v2192
    %v2195 = vmul.f32 %v2193, %v2193
    %v2196 = vmul.f32 %v2194, %v2194
    %v2197 = vsel %vm100, %v2195, 0.0
    %2198 = vadd.xlane.f32.xlu0 %v2197
    %v2199 = vpop.xlane.xlu0 %2198
    %v2200 = vsel %vm100, %v2196, 0.0
    %2201 = vadd.xlane.f32.xlu0 %v2200
    %v2202 = vpop.xlane.xlu0 %2201
    %v2203 = vmul.f32 %v2199, %v107
    %v2204 = vmul.f32 %v2202, %v107
    %v2205 = vadd.f32 %v2203, 1e-12
    %v2206 = vadd.f32 %v2204, 1e-12
    %v2207 = vrsqrt.pop %v2205
    %v2208 = vrsqrt.pop %v2206
    %v2209 = vmul.f32 %v2193, %v2207
    %v2210 = vmul.f32 %v2194, %v2208
    %v2212 = vlaneseq
    %v2213 = vshrl.u32 %v2212, 7
    %v2214 = vsub.s32 0, %v2213
    %v2215 = vrot.slane %v2182, %v2214
    %v2217 = vmul.f32 %v2209, %v2215
    %v2218 = vmul.f32 %v2210, %v2215
    %v2220 = vlaneseq
    %v2221 = vshrl.u32 %v2220, 7
    %v2222 = vsub.s32 0, %v2221
    %v2223 = vrot.slane %v2184, %v2222
    %v2225 = vadd.f32 %v2217, %v2223
    %v2226 = vadd.f32 %v2218, %v2223
    %s2227 = scalar_lea.vmem %s10, 32
    %v2228 = vld [vmem:[%s2227] sm:$0xff]
    %v2229 = vld [vmem:[%s2227 + $0x8] sm:$0xff]
    %v2230 = vld [vmem:[%s2227 + $0x10] sm:$0xff]
    %v2231 = vld [vmem:[%s2227 + $0x18] sm:$0xff]
    %s2232 = scalar_lea.vmem %s11, 1
    %v2233 = vld [vmem:[%s2232] sm:$0x1]
    %v2235 = vlaneseq
    %v2236 = vshrl.u32 %v2235, 7
    %v2237 = vsub.s32 0, %v2236
    %v2238 = vrot.slane %v2233, %v2237
    %v2241 = vsel %vm100, %v2225, 0
    %v2244 = vsel %vm100, %v2226, 0
    %2246 = vmatprep.subr.mxu0 0.0
    %2247 = vmatpush1.msra.mxu0 %v2228
    %2248 = vmatprep.subr.mxu0 0.0
    %2249 = vmatpush1.msra.mxu0 %v2229
    %2250 = vmatprep.subr.mxu0 0.0
    %2251 = vmatpush1.msra.mxu0 %v2230
    %2252 = vmatprep.subr.mxu0 0.0
    %2253 = vmatpush1.msra.mxu0 %v2231
    %2254 = vmatprep.subr.mxu0 0.0
    %2255 = vmatpush1.msra.mxu0 0.0
    %2256 = vmatprep.subr.mxu0 0.0
    %2257 = vmatpush1.msra.mxu0 0.0
    %2258 = vmatprep.subr.mxu0 0.0
    %2259 = vmatpush1.msra.mxu0 0.0
    %2260 = vmatprep.subr.mxu0 0.0
    %2261 = vmatpush1.msra.mxu0 0.0
    %2262 = vmatprep.subr.mxu0 0.0
    %2263 = vmatpush1.msra.mxu0 0.0
    %2264 = vmatprep.subr.mxu0 0.0
    %2265 = vmatpush1.msra.mxu0 0.0
    %2266 = vmatprep.subr.mxu0 0.0
    %2267 = vmatpush1.msra.mxu0 0.0
    %2268 = vmatprep.subr.mxu0 0.0
    %2269 = vmatpush1.msra.mxu0 0.0
    %2270 = vmatprep.subr.mxu0 0.0
    %2271 = vmatpush1.msra.mxu0 0.0
    %2272 = vmatprep.subr.mxu0 0.0
    %2273 = vmatpush1.msra.mxu0 0.0
    %2274 = vmatprep.subr.mxu0 0.0
    %2275 = vmatpush1.msra.mxu0 0.0
    %2276 = vmatprep.subr.mxu0 0.0
    %2277 = vmatpush1.msra.mxu0 0.0
    %2278 = vmatprep.subr.mxu0 0.0
    %2279 = vmatpush1.msra.mxu0 0.0
    %2280 = vmatprep.subr.mxu0 0.0
    %2281 = vmatpush1.msra.mxu0 0.0
    %2282 = vmatprep.subr.mxu0 0.0
    %2283 = vmatpush1.msra.mxu0 0.0
    %2284 = vmatprep.subr.mxu0 0.0
    %2285 = vmatpush1.msra.mxu0 0.0
    %2286 = vmatprep.subr.mxu0 0.0
    %2287 = vmatpush1.msra.mxu0 0.0
    %2288 = vmatprep.subr.mxu0 0.0
    %2289 = vmatpush1.msra.mxu0 0.0
    %2290 = vmatprep.subr.mxu0 0.0
    %2291 = vmatpush1.msra.mxu0 0.0
    %2292 = vmatprep.subr.mxu0 0.0
    %2293 = vmatpush1.msra.mxu0 0.0
    %2294 = vmatprep.subr.mxu0 0.0
    %2295 = vmatpush1.msra.mxu0 0.0
    %2296 = vmatprep.subr.mxu0 0.0
    %2297 = vmatpush1.msra.mxu0 0.0
    %2298 = vmatprep.subr.mxu0 0.0
    %2299 = vmatpush1.msra.mxu0 0.0
    %2300 = vmatprep.subr.mxu0 0.0
    %2301 = vmatpush1.msra.mxu0 0.0
    %2302 = vmatprep.subr.mxu0 0.0
    %2303 = vmatpush1.msra.mxu0 0.0
    %2304 = vmatprep.subr.mxu0 0.0
    %2305 = vmatpush1.msra.mxu0 0.0
    %2306 = vmatprep.subr.mxu0 0.0
    %2307 = vmatpush1.msra.mxu0 0.0
    %2308 = vmatprep.subr.mxu0 0.0
    %2309 = vmatpush1.msra.mxu0 0.0
    %2310 = vmatprep.mubr.f32.mxu0 0.0
    %2311 = vmatmul.mubr.f32.gmra.mrb[0].mxu0 %v2241
    %v2312 = vpop.f32.mrb[0].mxu0
    %v2313 = vadd.f32 %v2238, %v2312
    %v2314 = vpop.f32.mrb[0].mxu0
    %2315 = vmatprep.mubr.f32.mxu0 0.0
    %2316 = vmatmul.mubr.f32.gmra.mrb[0].mxu0 %v2244
    %v2317 = vpop.f32.mrb[0].mxu0
    %v2318 = vadd.f32 %v2238, %v2317
    %v2319 = vpop.f32.mrb[0].mxu0
    %2320 = vdwg.mxu0
    %v2321 = vmul.f32 %v2313, 0.5
    %v2322 = vmul.f32 %v2318, 0.5
    %v2323 = vmul.f32 %v2313, 0.044715
    %v2324 = vmul.f32 %v2318, 0.044715
    %v2325 = vmul.f32 %v2323, %v2313
    %v2326 = vmul.f32 %v2324, %v2318
    %v2327 = vmul.f32 %v2325, %v2313
    %v2328 = vmul.f32 %v2326, %v2318
    %v2329 = vadd.f32 %v2313, %v2327
    %v2330 = vadd.f32 %v2318, %v2328
    %v2331 = vmul.f32 %v2329, 0.7978846
    %v2332 = vmul.f32 %v2330, 0.7978846
    %v2333 = vtanh.pop %v2331
    %v2334 = vtanh.pop %v2332
    %v2335 = vadd.f32 %v2333, 1.0
    %v2336 = vadd.f32 %v2334, 1.0
    %v2337 = vmul.f32 %v2321, %v2335
    %v2338 = vmul.f32 %v2322, %v2336
    %s2339 = scalar_lea.vmem %s12, 64
    %v2340 = vld [vmem:[%s2339] sm:$0xff]
    %v2341 = vld [vmem:[%s2339 + $0x8] sm:$0xff]
    %v2342 = vld [vmem:[%s2339 + $0x10] sm:$0xff]
    %v2343 = vld [vmem:[%s2339 + $0x18] sm:$0xff]
    %v2344 = vld [vmem:[%s2339 + $0x20] sm:$0xff]
    %v2345 = vld [vmem:[%s2339 + $0x28] sm:$0xff]
    %v2346 = vld [vmem:[%s2339 + $0x30] sm:$0xff]
    %v2347 = vld [vmem:[%s2339 + $0x38] sm:$0xff]
    %s2348 = scalar_lea.vmem %s13, 1
    %v2349 = vld [vmem:[%s2348] sm:$0x1]
    %v2351 = vlaneseq
    %v2352 = vshrl.u32 %v2351, 7
    %v2353 = vsub.s32 0, %v2352
    %v2354 = vrot.slane %v2349, %v2353
    %v2357 = vsel %vm1187, %v2337, 0
    %v2360 = vsel %vm1187, %v2338, 0
    %2362 = vmatprep.subr.mxu0 0.0
    %2363 = vmatpush1.msra.mxu0 %v2340
    %2364 = vmatprep.subr.mxu0 0.0
    %2365 = vmatpush1.msra.mxu0 %v2341
    %2366 = vmatprep.subr.mxu0 0.0
    %2367 = vmatpush1.msra.mxu0 %v2342
    %2368 = vmatprep.subr.mxu0 0.0
    %2369 = vmatpush1.msra.mxu0 %v2343
    %2370 = vmatprep.subr.mxu0 0.0
    %2371 = vmatpush1.msra.mxu0 %v2344
    %2372 = vmatprep.subr.mxu0 0.0
    %2373 = vmatpush1.msra.mxu0 %v2345
    %2374 = vmatprep.subr.mxu0 0.0
    %2375 = vmatpush1.msra.mxu0 %v2346
    %2376 = vmatprep.subr.mxu0 0.0
    %2377 = vmatpush1.msra.mxu0 %v2347
    %2378 = vmatprep.subr.mxu0 0.0
    %2379 = vmatpush1.msra.mxu0 0.0
    %2380 = vmatprep.subr.mxu0 0.0
    %2381 = vmatpush1.msra.mxu0 0.0
    %2382 = vmatprep.subr.mxu0 0.0
    %2383 = vmatpush1.msra.mxu0 0.0
    %2384 = vmatprep.subr.mxu0 0.0
    %2385 = vmatpush1.msra.mxu0 0.0
    %2386 = vmatprep.subr.mxu0 0.0
    %2387 = vmatpush1.msra.mxu0 0.0
    %2388 = vmatprep.subr.mxu0 0.0
    %2389 = vmatpush1.msra.mxu0 0.0
    %2390 = vmatprep.subr.mxu0 0.0
    %2391 = vmatpush1.msra.mxu0 0.0
    %2392 = vmatprep.subr.mxu0 0.0
    %2393 = vmatpush1.msra.mxu0 0.0
    %2394 = vmatprep.subr.mxu0 0.0
    %2395 = vmatpush1.msra.mxu0 0.0
    %2396 = vmatprep.subr.mxu0 0.0
    %2397 = vmatpush1.msra.mxu0 0.0
    %2398 = vmatprep.subr.mxu0 0.0
    %2399 = vmatpush1.msra.mxu0 0.0
    %2400 = vmatprep.subr.mxu0 0.0
    %2401 = vmatpush1.msra.mxu0 0.0
    %2402 = vmatprep.subr.mxu0 0.0
    %2403 = vmatpush1.msra.mxu0 0.0
    %2404 = vmatprep.subr.mxu0 0.0
    %2405 = vmatpush1.msra.mxu0 0.0
    %2406 = vmatprep.subr.mxu0 0.0
    %2407 = vmatpush1.msra.mxu0 0.0
    %2408 = vmatprep.subr.mxu0 0.0
    %2409 = vmatpush1.msra.mxu0 0.0
    %2410 = vmatprep.subr.mxu0 0.0
    %2411 = vmatpush1.msra.mxu0 0.0
    %2412 = vmatprep.subr.mxu0 0.0
    %2413 = vmatpush1.msra.mxu0 0.0
    %2414 = vmatprep.subr.mxu0 0.0
    %2415 = vmatpush1.msra.mxu0 0.0
    %2416 = vmatprep.subr.mxu0 0.0
    %2417 = vmatpush1.msra.mxu0 0.0
    %2418 = vmatprep.subr.mxu0 0.0
    %2419 = vmatpush1.msra.mxu0 0.0
    %2420 = vmatprep.subr.mxu0 0.0
    %2421 = vmatpush1.msra.mxu0 0.0
    %2422 = vmatprep.subr.mxu0 0.0
    %2423 = vmatpush1.msra.mxu0 0.0
    %2424 = vmatprep.subr.mxu0 0.0
    %2425 = vmatpush1.msra.mxu0 0.0
    %2426 = vmatprep.mubr.f32.mxu0 0.0
    %2427 = vmatmul.mubr.f32.gmra.mrb[0].mxu0 %v2357
    %v2428 = vpop.f32.mrb[0].mxu0
    %v2429 = vadd.f32 %v2354, %v2428
    %v2430 = vpop.f32.mrb[0].mxu0
    %2431 = vmatprep.mubr.f32.mxu0 0.0
    %2432 = vmatmul.mubr.f32.gmra.mrb[0].mxu0 %v2360
    %v2433 = vpop.f32.mrb[0].mxu0
    %v2434 = vadd.f32 %v2354, %v2433
    %v2435 = vpop.f32.mrb[0].mxu0
    %2436 = vdwg.mxu0
    %v2437 = vadd.f32 %v2225, %v2429
    %v2438 = vadd.f32 %v2226, %v2434
    %s2439 = scalar_lea.vmem %s14, 1
    %v2440 = vld [vmem:[%s2439] sm:$0x1]
    %s2441 = scalar_lea.vmem %s15, 1
    %v2442 = vld [vmem:[%s2441] sm:$0x1]
    %v2443 = vsel %vm100, %v2437, 0.0
    %2444 = vadd.xlane.f32.xlu0 %v2443
    %v2445 = vpop.xlane.xlu0 %2444
    %v2446 = vsel %vm100, %v2438, 0.0
    %2447 = vadd.xlane.f32.xlu0 %v2446
    %v2448 = vpop.xlane.xlu0 %2447
    %v2449 = vmul.f32 %v2445, %v107
    %v2450 = vmul.f32 %v2448, %v107
    %v2451 = vsub.f32 %v2437, %v2449
    %v2452 = vsub.f32 %v2438, %v2450
    %v2453 = vmul.f32 %v2451, %v2451
    %v2454 = vmul.f32 %v2452, %v2452
    %v2455 = vsel %vm100, %v2453, 0.0
    %2456 = vadd.xlane.f32.xlu0 %v2455
    %v2457 = vpop.xlane.xlu0 %2456
    %v2458 = vsel %vm100, %v2454, 0.0
    %2459 = vadd.xlane.f32.xlu0 %v2458
    %v2460 = vpop.xlane.xlu0 %2459
    %v2461 = vmul.f32 %v2457, %v107
    %v2462 = vmul.f32 %v2460, %v107
    %v2463 = vadd.f32 %v2461, 1e-12
    %v2464 = vadd.f32 %v2462, 1e-12
    %v2465 = vrsqrt.pop %v2463
    %v2466 = vrsqrt.pop %v2464
    %v2467 = vmul.f32 %v2451, %v2465
    %v2468 = vmul.f32 %v2452, %v2466
    %v2470 = vlaneseq
    %v2471 = vshrl.u32 %v2470, 7
    %v2472 = vsub.s32 0, %v2471
    %v2473 = vrot.slane %v2440, %v2472
    %v2475 = vmul.f32 %v2467, %v2473
    %v2476 = vmul.f32 %v2468, %v2473
    %v2478 = vlaneseq
    %v2479 = vshrl.u32 %v2478, 7
    %v2480 = vsub.s32 0, %v2479
    %v2481 = vrot.slane %v2442, %v2480
    %v2483 = vadd.f32 %v2475, %v2481
    %v2484 = vadd.f32 %v2476, %v2481
    %2485 = vst.msk [vmem:[#allocation2] sm:$0xff] %vm100, %v2483
    %2486 = vst.msk [vmem:[#allocation2 + $0x8] sm:$0xff] %vm100, %v2484
    %v2487 = vlaneseq
    %v2488 = vshrl.u32 %v2487, 7
    %v2489 = vsub.s32 0, %v2488
    %v2490 = vrot.slane %v70, %v2489
    %2492 = vbcast.lane.b32.xlu0 %v2490, 256
    %v2493 = vpop.permute.xlu0 %2492
    %v2494 = vlaneseq
    %v2495 = vshrl.u32 %v2494, 7
    %v2496 = vsub.s32 1, %v2495
    %v2497 = vrot.slane %v70, %v2496
    %2499 = vbcast.lane.b32.xlu0 %v2497, 256
    %v2500 = vpop.permute.xlu0 %2499
    %v2501 = vmul.f32 %v2483, %v2493
    %v2502 = vmul.f32 %v2484, %v2500
    %v2503 = vsel %vm100, %v2501, 0.0
    %v2504 = vrot.slane %v2503, 4
    %v2505 = vadd.f32 %v2503, %v2504
    %v2506 = vrot.slane %v2505, 2
    %v2507 = vadd.f32 %v2505, %v2506
    %v2508 = vrot.slane %v2507, 1
    %v2509 = vadd.f32 %v2507, %v2508
    %v2510 = vsel %vm100, %v2502, 0.0
    %v2511 = vrot.slane %v2510, 4
    %v2512 = vadd.f32 %v2510, %v2511
    %v2513 = vrot.slane %v2512, 2
    %v2514 = vadd.f32 %v2512, %v2513
    %v2515 = vrot.slane %v2514, 1
    %v2516 = vadd.f32 %v2514, %v2515
    %vm2517 = vcmask 58368
    %v2518 = vsel %vm2517, %v70, 0.0
    %2519 = vadd.xlane.f32.xlu0 %v2518
    %v2520 = vpop.xlane.xlu0 %2519
    %v2521 = vmax.f32 %v2520, 1e-09
    %v2523 = vrot.slane %v2521, 1
    %v2526 = vrcp.pop %v2521
    %v2527 = vmul.f32 %v2509, %v2526
    %v2528 = vrcp.pop %v2523
    %v2529 = vmul.f32 %v2516, %v2528
    %v2532 = vrot.slane %v2529, 7
    %vm2533 = vcmask 1041409
    %v2534 = vsel %vm2533, %v2532, %v2527
    %vm2536 = vcmask 254976
    %2537 = vst.msk [vmem:[#allocation4] sm:$0x3] %vm2536, %v2534
    %v2538 = vld [vmem:[%s18] sm:$0xff]
    %v2539 = vld [vmem:[%s18 + $0x8] sm:$0xff]
    %v2540 = vld [vmem:[%s18 + $0x10] sm:$0xff]
    %v2541 = vld [vmem:[%s18 + $0x18] sm:$0xff]
    %v2542 = vld [vmem:[%s19] sm:$0x1]
    %v2544 = vlaneseq
    %v2545 = vshrl.u32 %v2544, 7
    %v2546 = vsub.s32 0, %v2545
    %v2547 = vrot.slane %v2542, %v2546
    %v2549 = vsel %vm100, %v2534, 0
    %2551 = vmatprep.subr.mxu0 0.0
    %2552 = vmatpush1.msra.mxu0 %v2538
    %2553 = vmatprep.subr.mxu0 0.0
    %2554 = vmatpush1.msra.mxu0 %v2539
    %2555 = vmatprep.subr.mxu0 0.0
    %2556 = vmatpush1.msra.mxu0 %v2540
    %2557 = vmatprep.subr.mxu0 0.0
    %2558 = vmatpush1.msra.mxu0 %v2541
    %2559 = vmatprep.subr.mxu0 0.0
    %2560 = vmatpush1.msra.mxu0 0.0
    %2561 = vmatprep.subr.mxu0 0.0
    %2562 = vmatpush1.msra.mxu0 0.0
    %2563 = vmatprep.subr.mxu0 0.0
    %2564 = vmatpush1.msra.mxu0 0.0
    %2565 = vmatprep.subr.mxu0 0.0
    %2566 = vmatpush1.msra.mxu0 0.0
    %2567 = vmatprep.subr.mxu0 0.0
    %2568 = vmatpush1.msra.mxu0 0.0
    %2569 = vmatprep.subr.mxu0 0.0
    %2570 = vmatpush1.msra.mxu0 0.0
    %2571 = vmatprep.subr.mxu0 0.0
    %2572 = vmatpush1.msra.mxu0 0.0
    %2573 = vmatprep.subr.mxu0 0.0
    %2574 = vmatpush1.msra.mxu0 0.0
    %2575 = vmatprep.subr.mxu0 0.0
    %2576 = vmatpush1.msra.mxu0 0.0
    %2577 = vmatprep.subr.mxu0 0.0
    %2578 = vmatpush1.msra.mxu0 0.0
    %2579 = vmatprep.subr.mxu0 0.0
    %2580 = vmatpush1.msra.mxu0 0.0
    %2581 = vmatprep.subr.mxu0 0.0
    %2582 = vmatpush1.msra.mxu0 0.0
    %2583 = vmatprep.subr.mxu0 0.0
    %2584 = vmatpush1.msra.mxu0 0.0
    %2585 = vmatprep.subr.mxu0 0.0
    %2586 = vmatpush1.msra.mxu0 0.0
    %2587 = vmatprep.subr.mxu0 0.0
    %2588 = vmatpush1.msra.mxu0 0.0
    %2589 = vmatprep.subr.mxu0 0.0
    %2590 = vmatpush1.msra.mxu0 0.0
    %2591 = vmatprep.subr.mxu0 0.0
    %2592 = vmatpush1.msra.mxu0 0.0
    %2593 = vmatprep.subr.mxu0 0.0
    %2594 = vmatpush1.msra.mxu0 0.0
    %2595 = vmatprep.subr.mxu0 0.0
    %2596 = vmatpush1.msra.mxu0 0.0
    %2597 = vmatprep.subr.mxu0 0.0
    %2598 = vmatpush1.msra.mxu0 0.0
    %2599 = vmatprep.subr.mxu0 0.0
    %2600 = vmatpush1.msra.mxu0 0.0
    %2601 = vmatprep.subr.mxu0 0.0
    %2602 = vmatpush1.msra.mxu0 0.0
    %2603 = vmatprep.subr.mxu0 0.0
    %2604 = vmatpush1.msra.mxu0 0.0
    %2605 = vmatprep.subr.mxu0 0.0
    %2606 = vmatpush1.msra.mxu0 0.0
    %2607 = vmatprep.subr.mxu0 0.0
    %2608 = vmatpush1.msra.mxu0 0.0
    %2609 = vmatprep.subr.mxu0 0.0
    %2610 = vmatpush1.msra.mxu0 0.0
    %2611 = vmatprep.subr.mxu0 0.0
    %2612 = vmatpush1.msra.mxu0 0.0
    %2613 = vmatprep.subr.mxu0 0.0
    %2614 = vmatpush1.msra.mxu0 0.0
    %2615 = vmatprep.mubr.f32.mxu0 0.0
    %2616 = vmatmul.mubr.f32.gmra.mrb[0].mxu0 %v2549
    %v2617 = vpop.f32.mrb[0].mxu0
    %v2618 = vadd.f32 %v2547, %v2617
    %v2619 = vpop.f32.mrb[0].mxu0
    %2620 = vdwg.mxu0
    %vm2621 = vcmask 9216
    %2622 = vst.msk [vmem:[#allocation6] sm:$0x3] %vm2621, %v2618
    // Predicated region
    $region82: #{fine_tuned_bert_forward.1} parent=1 // pred_check
      _
    $region83: #{fine_tuned_bert_forward.1} parent=1 // pred_check_branch
      %2624 = sbr.rel (0) target = $region85
    $region84: #{fine_tuned_bert_forward.1} parent=1 // pred_region
      %s2626 = ssub.s32 256, 256
      %2627 = vsyncadd [#allocation3], %s2626
      %s2628 = sshll.u32 [#allocation2], 4
      %s2629 = int_to_ptr.vmem [resolvable:$true] %s2628
      %2634 = dma.vmem_to_hbm [thread:$0]  %s2629, 256, %s20, [#allocation3], 128, 128, 8
    $region85: #{fine_tuned_bert_forward.1} parent=1 // pred_fallthru
      _
    // Predicated region
    $region86: #{fine_tuned_bert_forward.1} parent=1 // pred_check
      _
    $region87: #{fine_tuned_bert_forward.1} parent=1 // pred_check_branch
      %2636 = sbr.rel (0) target = $region89
    $region88: #{fine_tuned_bert_forward.1} parent=1 // pred_region
      %s2638 = ssub.s32 32, 32
      %2639 = vsyncadd [#allocation5], %s2638
      %s2641 = sshll.u32 [#allocation4], 4
      %s2642 = int_to_ptr.vmem [resolvable:$true] %s2641
      %2644 = dma.vmem_to_hbm [thread:$0]  %s2642, 32, %s21, [#allocation5]
    $region89: #{fine_tuned_bert_forward.1} parent=1 // pred_fallthru
      _
    // Predicated region
    $region90: #{fine_tuned_bert_forward.1} parent=1 // pred_check
      _
    $region91: #{fine_tuned_bert_forward.1} parent=1 // pred_check_branch
      %2646 = sbr.rel (0) target = $region93
    $region92: #{fine_tuned_bert_forward.1} parent=1 // pred_region
      %s2648 = ssub.s32 32, 32
      %2649 = vsyncadd [#allocation5], %s2648
      %s2651 = sshll.u32 [#allocation6], 4
      %s2652 = int_to_ptr.vmem [resolvable:$true] %s2651
      %2654 = dma.vmem_to_hbm [thread:$0]  %s2652, 32, %s22, [#allocation5]
    $region93: #{fine_tuned_bert_forward.1} parent=1 // pred_fallthru
      _
    // Predicated region
    $region94: #{fine_tuned_bert_forward.1} parent=1 // pred_check
      _
    $region95: #{fine_tuned_bert_forward.1} parent=1 // pred_check_branch
      %2656 = sbr.rel (0) target = $region97
    $region96: #{fine_tuned_bert_forward.1} parent=1 // pred_region
      %2657 = dma.done [#allocation3], 256
    $region97: #{fine_tuned_bert_forward.1} parent=1 // pred_fallthru
      _
    // Predicated region
    $region98: #{fine_tuned_bert_forward.1} parent=1 // pred_check
      _
    $region99: #{fine_tuned_bert_forward.1} parent=1 // pred_check_branch
      %2659 = sbr.rel (0) target = $region101
    $region100: #{fine_tuned_bert_forward.1} parent=1 // pred_region
      %2660 = dma.done [#allocation5], 32
    $region101: #{fine_tuned_bert_forward.1} parent=1 // pred_fallthru
      _
    // Predicated region
    $region102: #{fine_tuned_bert_forward.1} parent=1 // pred_check
      _
    $region103: #{fine_tuned_bert_forward.1} parent=1 // pred_check_branch
      %2662 = sbr.rel (0) target = $region105
    $region104: #{fine_tuned_bert_forward.1} parent=1 // pred_region
      %2663 = dma.done [#allocation5], 32
    $region105: #{fine_tuned_bert_forward.1} parent=1 // pred_fallthru
      _
    %2664 = vsyncpa [#allocation3], 1
    %2665 = vsyncpa [#allocation5], 1

</llo_original>
